<compile_context>
chip_gen: v5e
topology: v5e:2x2
jax: 0.10.0
libtpu: 0.0.40
codegen_flags: <defaults>
</compile_context>

<pallas_src>
import functools

import jax
import jax.numpy as jnp
from jax import lax
from jax.experimental import pallas as pl
from jax.experimental.pallas import tpu as pltpu

_SQRT_HALF = 0.7071067811865476
_LANE = 128
_SUBLANE = 8


def _select_vmem_budget():
    """Generation-aware (working-set budget, scoped-VMEM limit) in bytes."""
    cap = None
    try:
        info = pltpu.get_tpu_info()
        cap = int(getattr(info, "vmem_capacity_bytes", 0)) or None
    except Exception:
        cap = None
    if cap is None:
        cap = 64 * 1024 * 1024                    # be conservative (v7x size)
    if cap <= 64 * 1024 * 1024:                   # v7x: 64MiB physical VMEM
        return 20 * 1024 * 1024, 48 * 1024 * 1024
    return 32 * 1024 * 1024, 96 * 1024 * 1024     # v5e / v6e: 128MiB physical


_VMEM_BUDGET, _VMEM_LIMIT = _select_vmem_budget()


def _cparams(n_axes):
    return pltpu.CompilerParams(
        dimension_semantics=("parallel",) * n_axes,
        vmem_limit_bytes=_VMEM_LIMIT)


def _ceil_to(x, m):
    return ((x + m - 1) // m) * m


def _vmem_bytes(shape, itemsize):
    """VMEM footprint of a buffer with (8,128) minor-dim padding."""
    *lead, s, l = shape
    n = 1
    for d in lead:
        n *= d
    return n * _ceil_to(s, _SUBLANE) * _ceil_to(l, _LANE) * itemsize


def _pick_tile(n, *, unit, cost_fn, budget, batch):
    """Largest divisor d of n (with d*unit % 8 == 0, or d == n) fitting budget.

    If the whole extent fits and the grid would have <4 steps with a tiny
    batch (v7x: 2 TCs share the parallel grid), prefer a split that keeps
    tiles large (>= budget/8 working set) but gives both cores work.
    """
    cands = [d for d in range(n, 0, -1)
             if n % d == 0 and (d == n or (d * unit) % _SUBLANE == 0)]
    fitting = [d for d in cands if cost_fn(d) <= budget]
    if not fitting:
        # Nothing meets the budget even at the smallest legal tile: take the
        # smallest legal tile and rely on vmem_limit_bytes headroom.
        return cands[-1]
    d = fitting[0]
    if batch * (n // d) < 4:
        for c in fitting:
            if batch * (n // c) >= 4 and cost_fn(c) >= budget // 8:
                d = c
                break
    return d


# -----------------------------------------------------------------------------
# In-kernel math helpers
# -----------------------------------------------------------------------------
def _erf(x):
    # Abramowitz & Stegun 7.1.26 polynomial erf, |abs err| < 1.5e-7 (~f32 eps),
    # so GELU is not bit-exact vs torch.nn.GELU but well within f32 tolerance.
    # TODO(synk): switch to lax.erf once Mosaic guarantees an erf_p lowering.
    a1, a2, a3, a4, a5 = (0.254829592, -0.284496736, 1.421413741,
                          -1.453152027, 1.061405429)
    p = 0.3275911
    s = jnp.where(x >= 0, 1.0, -1.0)
    z = jnp.abs(x)
    t = 1.0 / (1.0 + p * z)
    poly = t * (a1 + t * (a2 + t * (a3 + t * (a4 + t * a5))))
    return s * (1.0 - poly * jnp.exp(-z * z))


def _gelu_exact(x):
    # matches torch.nn.GELU() (erf-based, not the tanh approximation); runs in
    # f32 regardless of the activation dtype (v5e has no bf16 VPU/EUP).
    return 0.5 * x * (1.0 + _erf(x * _SQRT_HALF))


# -----------------------------------------------------------------------------
# Pallas kernels
# -----------------------------------------------------------------------------
def _conv3x3_kernel(*refs, W, apply_gelu, has_res):
    """3x3 conv (padding=1), channels-last, on a row-flattened padded slab.

    x_ref holds S = M + 2W + 2 flattened padded rows; tap (dy, dx) of output
    pixel m lives at x_ref[m + dy*W + dx].  Per dx, the three dy taps are
    K-fused into one (M, 3*Cin) @ (3*Cin, Cout) matmul built from a single
    dx-shifted slab slice (3 unaligned slices total instead of 9).  Taps with
    dx != 1 read a wrapped neighbour at the image border, exactly where the
    reference conv sees zero padding, so those LHS slabs are masked per column
    before the matmul.  Bias + GELU + residual-add are fused in the epilogue.
    """
    if has_res:
        x_ref, w_ref, b_ref, res_ref, o_ref = refs
    else:
        x_ref, w_ref, b_ref, o_ref = refs
        res_ref = None
    M, Cout = o_ref.shape
    L = M + 2 * W
    dt = x_ref.dtype
    # slab row r is the tap for output pixel m = r - dy*W, and (r % W) == (m % W)
    col = lax.broadcasted_iota(jnp.int32, (L, 1), 0) % W

    acc = jnp.zeros((M, Cout), jnp.float32)
    for dx in range(3):
        sh = x_ref[pl.ds(dx, L), :]                       # (L, Cin)
        if dx == 0:
            sh = sh * (col > 0).astype(dt)                # left border -> 0
        elif dx == 2:
            sh = sh * (col < (W - 1)).astype(dt)          # right border -> 0
        lhs = jnp.concatenate(
            [sh[dy * W:dy * W + M, :] for dy in range(3)], axis=-1)  # (M, 3*Cin)
        acc = acc + jnp.dot(lhs, w_ref[dx],
                            preferred_element_type=jnp.float32)
    acc = acc + b_ref[...]
    if apply_gelu:
        acc = _gelu_exact(acc)
    if has_res:
        acc = acc + res_ref[...].astype(jnp.float32)
    # TODO(synk): Cout=12/48 stores are lane-masked; pack spatial columns into
    # lanes (free HBM-layout-preserving reshape) once Mosaic reshape relayout
    # is verified on these shapes.
    o_ref[...] = acc.astype(o_ref.dtype)


def _conv3x3_cmajor_kernel(scale_ref, x_ref, w_ref, b_ref, res_ref, o_ref, *, W):
    """3x3 conv in channel-major (transposed) form with fused 'x*scale + res'.

    x_ref: (Cin, Mp) flat-padded spatial on lanes.  Output (Cout, M) is
    lane-dense along spatial (Cout=3 here), stores unmasked, and the result is
    already in NCHW layout, so no final transpose is needed.
    """
    Cout, M = o_ref.shape
    acc_c = jnp.zeros((Cout, M), jnp.float32)   # dx == 1 taps
    acc_l = jnp.zeros((Cout, M), jnp.float32)   # dx == 0 taps
    acc_r = jnp.zeros((Cout, M), jnp.float32)   # dx == 2 taps
    for dy in range(3):
        for dx in range(3):
            rhs = x_ref[:, pl.ds(dy * W + dx, M)]          # (Cin, M)
            contrib = jnp.dot(w_ref[dy * 3 + dx], rhs,
                              preferred_element_type=jnp.float32)
            if dx == 0:
                acc_l = acc_l + contrib
            elif dx == 2:
                acc_r = acc_r + contrib
            else:
                acc_c = acc_c + contrib
    col = lax.broadcasted_iota(jnp.int32, (1, M), 1) % W
    left_ok = (col > 0).astype(jnp.float32)
    right_ok = (col < (W - 1)).astype(jnp.float32)
    acc = acc_c + acc_l * left_ok + acc_r * right_ok + b_ref[...]
    o_ref[...] = (acc * scale_ref[0] + res_ref[...].astype(jnp.float32)
                  ).astype(o_ref.dtype)


def _convt_kernel(x_ref, w_ref, b_ref, o_ref, *, apply_gelu):
    # ConvTranspose2d(k=2, s=2) as one per-pixel matmul with all four taps
    # concatenated along Cout (single MXU issue), bias + GELU fused.
    y = jnp.dot(x_ref[...], w_ref[...],
                preferred_element_type=jnp.float32) + b_ref[...]
    if apply_gelu:
        y = _gelu_exact(y)
    o_ref[...] = y.astype(o_ref.dtype)


# -----------------------------------------------------------------------------
# Wrappers around pallas_call
# -----------------------------------------------------------------------------
def conv2d_3x3(x, w_hwio, bias, *, apply_gelu, residual=None):
    """3x3 conv, padding=1, NHWC; optional fused 'out + residual' epilogue.

    w_hwio: (3,3,Cin,Cout) (PyTorch OIHW checkpoints must be transposed to
    HWIO before use).  residual (if given): NHWC with the output shape.
    """
    B, H, W, Cin = x.shape
    Cout = w_hwio.shape[-1]
    has_res = residual is not None
    act_dt = x.dtype
    itm = jnp.dtype(act_dt).itemsize

    def cost(th):
        m = th * W
        s = m + 2 * W + 2
        c = 2 * _vmem_bytes((s, Cin), itm)           # double-buffered input slab
        c += _vmem_bytes((m + 2 * W, Cin), itm)      # masked dx-slab copy
        c += 2 * _vmem_bytes((m, 3 * Cin), itm)      # in-VMEM im2col LHS (+parts)
        c += _vmem_bytes((m, Cout), 4)               # f32 accumulator
        c += 2 * _vmem_bytes((m, Cout), itm)         # double-buffered output
        if has_res:
            c += 2 * _vmem_bytes((m, Cout), itm)     # double-buffered residual
        c += _vmem_bytes((9 * Cin, Cout), itm)       # weights
        return c

    TH = _pick_tile(H, unit=W, cost_fn=cost, budget=_VMEM_BUDGET, batch=B)
    n_tiles = H // TH
    M = TH * W
    S = M + 2 * W + 2

    # Single flat zero-pad: one padded row above/below plus one flat element on
    # each side == a (W+1, W+1) pad of the row-major flattened image.
    xfl = jnp.pad(x.reshape(B, H * W, Cin), ((0, 0), (W + 1, W + 1), (0, 0)))
    if n_tiles == 1:
        slabs = xfl[:, None]                                 # (B, 1, S, Cin)
    else:
        # Overlapping row tiles with a one-row halo.
        # TODO(synk): for very large images replace this host-side stack (an
        # extra HBM copy) with memory_space=pl.ANY + in-kernel make_async_copy
        # of the overlapping [i*M, i*M+S) window, double-buffered.
        slabs = jnp.stack(
            [xfl[:, i * M:i * M + S] for i in range(n_tiles)], axis=1)

    # weight group g = dx*3 + dy  <->  w_hwio[dy, dx]
    wmat = jnp.transpose(w_hwio, (1, 0, 2, 3)).reshape(3, 3 * Cin, Cout)
    wmat = wmat.astype(act_dt)
    bmat = bias.reshape(1, Cout).astype(jnp.float32)

    kernel = functools.partial(_conv3x3_kernel, W=W, apply_gelu=apply_gelu,
                               has_res=has_res)
    in_specs = [
        pl.BlockSpec((None, None, S, Cin), lambda b, i: (b, i, 0, 0)),
        pl.BlockSpec((3, 3 * Cin, Cout), lambda b, i: (0, 0, 0)),
        pl.BlockSpec((1, Cout), lambda b, i: (0, 0)),
    ]
    args = [slabs, wmat, bmat]
    if has_res:
        in_specs.append(pl.BlockSpec((None, M, Cout), lambda b, i: (b, i, 0)))
        args.append(residual.reshape(B, H * W, Cout))

    out = pl.pallas_call(
        kernel,
        out_shape=jax.ShapeDtypeStruct((B, H * W, Cout), act_dt),
        grid=(B, n_tiles),
        in_specs=in_specs,
        out_specs=pl.BlockSpec((None, M, Cout), lambda b, i: (b, i, 0)),
        compiler_params=_cparams(2),
    )(*args)
    return out.reshape(B, H, W, Cout)


def conv2d_3x3_to_nchw(x_nhwc, w_hwio, bias, *, scale, residual_cm):
    """Final 3x3 conv in channel-major form: returns conv*scale + residual_cm
    as (B, Cout, H*W), i.e. flattened NCHW (no output transpose needed).

    residual_cm: (B, Cout, H*W), f32.  scale: scalar (res_blend parameter).
    """
    B, H, W, Cin = x_nhwc.shape
    Cout = w_hwio.shape[-1]
    M = H * W
    act_dt = x_nhwc.dtype

    # TODO(synk): this NHWC -> channel-major transpose is one small XLA copy;
    # producing the previous conv's output directly channel-major would remove
    # it.  TODO(synk): for very large images, tile the flat spatial (lane) axis
    # with a halo instead of taking the whole image per grid step.
    xT = jnp.transpose(x_nhwc.reshape(B, M, Cin), (0, 2, 1))      # (B, Cin, M)
    xTp = jnp.pad(xT, ((0, 0), (0, 0), (W + 1, W + 1)))           # (B, Cin, Mp)
    Mp = M + 2 * W + 2

    wmat = jnp.transpose(w_hwio, (0, 1, 3, 2)).reshape(9, Cout, Cin)
    wmat = wmat.astype(act_dt)
    bcol = bias.reshape(Cout, 1).astype(jnp.float32)
    scale_arr = jnp.asarray(scale, jnp.float32).reshape(1)

    kernel = functools.partial(_conv3x3_cmajor_kernel, W=W)
    out = pl.pallas_call(
        kernel,
        out_shape=jax.ShapeDtypeStruct((B, Cout, M), jnp.float32),
        grid=(B,),
        in_specs=[
            pl.BlockSpec(memory_space=pltpu.MemorySpace.SMEM),        # scale
            pl.BlockSpec((None, Cin, Mp), lambda b: (b, 0, 0)),
            pl.BlockSpec((9, Cout, Cin), lambda b: (0, 0, 0)),
            pl.BlockSpec((Cout, 1), lambda b: (0, 0)),
            pl.BlockSpec((None, Cout, M), lambda b: (b, 0, 0)),
        ],
        out_specs=pl.BlockSpec((None, Cout, M), lambda b: (b, 0, 0)),
        compiler_params=_cparams(1),
    )(scale_arr, xTp, wmat, bcol, residual_cm)
    return out


def conv_transpose2d_2x2(x, w_hwio, bias, *, apply_gelu):
    """ConvTranspose2d(kernel=2, stride=2) + GELU, NHWC. w_hwio: (2,2,Cin,Cout)."""
    B, H, W, Cin = x.shape
    Cout = w_hwio.shape[-1]
    M_all = H * W
    N = 4 * Cout
    act_dt = x.dtype
    itm = jnp.dtype(act_dt).itemsize

    def cost(tr):
        return (2 * _vmem_bytes((tr, Cin), itm)      # double-buffered input
                + _vmem_bytes((tr, N), 4)            # f32 matmul result
                + 2 * _vmem_bytes((tr, N), itm)      # double-buffered output
                + _vmem_bytes((Cin, N), itm))        # weights

    TR = _pick_tile(M_all, unit=1, cost_fn=cost, budget=_VMEM_BUDGET, batch=B)
    n_tiles = M_all // TR

    xf = x.reshape(B, M_all, Cin)
    # all four 2x2 taps fused into one lane-dense (Cin, 4*Cout) matmul
    wcat = jnp.transpose(w_hwio, (2, 0, 1, 3)).reshape(Cin, N).astype(act_dt)
    bcat = jnp.tile(bias, 4).reshape(1, N).astype(jnp.float32)

    kernel = functools.partial(_convt_kernel, apply_gelu=apply_gelu)
    y = pl.pallas_call(
        kernel,
        out_shape=jax.ShapeDtypeStruct((B, M_all, N), act_dt),
        grid=(B, n_tiles),
        in_specs=[
            pl.BlockSpec((None, TR, Cin), lambda b, i: (b, i, 0)),
            pl.BlockSpec((Cin, N), lambda b, i: (0, 0)),
            pl.BlockSpec((1, N), lambda b, i: (0, 0)),
        ],
        out_specs=pl.BlockSpec((None, TR, N), lambda b, i: (b, i, 0)),
        compiler_params=_cparams(2),
    )(xf, wcat, bcat)
    # tap interleave (B,H,W,ky,kx,C) -> (B,H,ky,W,kx,C) -> (B,2H,2W,C).
    # TODO(synk): move this interleave on-chip (write directly into the
    # (B,H,2,2W*C) layout from the kernel) once Mosaic reshape relayout is
    # verified for these shapes; XLA currently fuses it with the next conv's pad.
    y = y.reshape(B, H, W, 2, 2, Cout).transpose(0, 1, 3, 2, 4, 5)
    return y.reshape(B, 2 * H, 2 * W, Cout)


# -----------------------------------------------------------------------------
# Pure-JAX glue: pixel unshuffle (matches torch.nn.PixelUnshuffle channel order)
# -----------------------------------------------------------------------------
def pixel_unshuffle_nhwc(x, r):
    # out[b, h, w, c*r*r + i*r + j] = x[b, h*r + i, w*r + j, c]
    B, H, W, C = x.shape
    x = x.reshape(B, H // r, r, W // r, r, C)
    x = x.transpose(0, 1, 3, 5, 2, 4)  # (b, h, w, c, i, j)
    return x.reshape(B, H // r, W // r, C * r * r)


# -----------------------------------------------------------------------------
# Parameters (synthetic, deterministic).  Conv weights stored HWIO=(kH,kW,Cin,Cout);
# loading real PyTorch checkpoints (OIHW, IOHW for ConvTranspose2d) requires an
# explicit transpose into this convention.
# -----------------------------------------------------------------------------
def init_params(key, input_size, clip_input_size, downscale_factor):
    in_channels = 3
    subpixel_channels = in_channels * downscale_factor ** 2
    num_up = int((downscale_factor / (input_size // clip_input_size)) // 2)
    keys = iter(jax.random.split(key, 128))

    def conv_p(cin, cout, k):
        w = jax.random.normal(next(keys), (k, k, cin, cout), jnp.float32) * 0.05
        b = jax.random.normal(next(keys), (cout,), jnp.float32) * 0.05
        return {"w": w, "b": b}

    params = {"conv_in": conv_p(subpixel_channels, subpixel_channels, 3)}
    blocks = []
    cur_c = subpixel_channels
    cur_ds = downscale_factor
    for _ in range(num_up):
        out_ds = cur_ds // 2
        out_c = in_channels * out_ds ** 2
        blocks.append({
            "conv_in": conv_p(cur_c, cur_c, 3),
            "conv_up": conv_p(cur_c, out_c, 2),   # ConvTranspose2d weight (HWIO)
            "conv_out": conv_p(out_c, out_c, 3),
        })
        cur_c, cur_ds = out_c, out_ds
    params["blocks"] = blocks
    params["conv_out"] = conv_p(cur_c, 3, 3)
    params["res_blend"] = jnp.asarray(0.001, jnp.float32)
    return params


# -----------------------------------------------------------------------------
# Forward pass (mirrors CLIPImagePreProcessor.forward)
# -----------------------------------------------------------------------------
def clip_image_preprocessor_forward(x_nchw, params, *, input_size,
                                    clip_input_size, downscale_factor,
                                    act_dtype=jnp.float32):
    B, C, H_in, W_in = x_nchw.shape
    assert C == 3 and H_in == input_size and W_in == input_size
    # F.interpolate(x, (input_size, input_size), mode='bicubic') is the identity
    # here: the residual paths require the input to already be input_size², and
    # a same-size bicubic resample reproduces the input exactly.
    # TODO(synk): general bicubic resize for H != input_size not implemented.
    k = input_size // clip_input_size
    Ho = clip_input_size

    # self.res_down: AvgPool2d(k) of the NCHW input.  Plain XLA reshape-mean
    # (lane-dense, fully fused) instead of a low-occupancy Pallas kernel.
    res = x_nchw.reshape(B, 3, Ho, k, Ho, k).mean(axis=(3, 5))       # (B,3,Ho,Ho)
    res_cm = res.reshape(B, 3, Ho * Ho).astype(jnp.float32)

    x = jnp.transpose(x_nchw, (0, 2, 3, 1)).astype(act_dtype)        # NHWC
    inputs = x

    h = pixel_unshuffle_nhwc(x, downscale_factor)                    # self.unshuffle
    h = conv2d_3x3(h, params["conv_in"]["w"], params["conv_in"]["b"],
                   apply_gelu=True)                                  # self.conv_in

    cur_ds = downscale_factor
    for blk in params["blocks"]:
        cur_ds //= 2
        # TODO(synk): on 128MiB-VMEM parts, fuse this conv with the previous
        # stage (2-row halo) to remove one full HBM round trip of h.
        h = conv2d_3x3(h, blk["conv_in"]["w"], blk["conv_in"]["b"],
                       apply_gelu=True)
        h = conv_transpose2d_2x2(h, blk["conv_up"]["w"], blk["conv_up"]["b"],
                                 apply_gelu=True)
        block_res = pixel_unshuffle_nhwc(inputs, cur_ds).astype(act_dtype)
        # conv_out with the "x + block_res" residual fused into its epilogue
        h = conv2d_3x3(h, blk["conv_out"]["w"], blk["conv_out"]["b"],
                       apply_gelu=False, residual=block_res)

    # Final conv (Cout=3) in channel-major form: lane-dense stores, the
    # "x*res_blend + res" blend fused, output already NCHW.
    out = conv2d_3x3_to_nchw(h, params["conv_out"]["w"], params["conv_out"]["b"],
                             scale=params["res_blend"], residual_cm=res_cm)
    return out.reshape(B, 3, Ho, Ho)


# -----------------------------------------------------------------------------
# Pure-XLA reference (for the in-script correctness check)
# -----------------------------------------------------------------------------
def _reference_forward(x_nchw, params, *, input_size, clip_input_size,
                       downscale_factor):
    B = x_nchw.shape[0]
    k = input_size // clip_input_size
    Ho = clip_input_size
    res = x_nchw.reshape(B, 3, Ho, k, Ho, k).mean(axis=(3, 5))

    def conv3(h, p, gelu):
        y = lax.conv_general_dilated(
            h, p["w"], (1, 1), "SAME",
            dimension_numbers=("NHWC", "HWIO", "NHWC")) + p["b"]
        return jax.nn.gelu(y, approximate=False) if gelu else y

    def convt(h, p):
        Bh, Hh, Wh, _ = h.shape
        Co = p["w"].shape[-1]
        y = jnp.einsum("bhwi,klio->bhwklo", h, p["w"])
        y = y.transpose(0, 1, 3, 2, 4, 5).reshape(Bh, 2 * Hh, 2 * Wh, Co)
        return jax.nn.gelu(y + p["b"], approximate=False)

    x = jnp.transpose(x_nchw, (0, 2, 3, 1))
    inputs = x
    h = pixel_unshuffle_nhwc(x, downscale_factor)
    h = conv3(h, params["conv_in"], True)
    cur = downscale_factor
    for blk in params["blocks"]:
        cur //= 2
        h = conv3(h, blk["conv_in"], True)
        h = convt(h, blk["conv_up"])
        h = conv3(h, blk["conv_out"], False)
        h = h + pixel_unshuffle_nhwc(inputs, cur)
    h = conv3(h, params["conv_out"], False)
    return jnp.transpose(h, (0, 3, 1, 2)) * params["res_blend"] + res


# -----------------------------------------------------------------------------
if __name__ == "__main__":
    # Small config consistent with the module's constraints:
    # input_size % clip_input_size == 0, downscale/(input/clip) even.
    INPUT_SIZE, CLIP_SIZE, DF = 16, 8, 4   # -> 1 upsample block, 48 subpixel ch.
    B = 2

    key = jax.random.PRNGKey(0)
    kx, kp = jax.random.split(key)
    x = jax.random.normal(kx, (B, 3, INPUT_SIZE, INPUT_SIZE), jnp.float32)
    params = init_params(kp, INPUT_SIZE, CLIP_SIZE, DF)

    fwd = jax.jit(functools.partial(
        clip_image_preprocessor_forward,
        input_size=INPUT_SIZE, clip_input_size=CLIP_SIZE, downscale_factor=DF))
    ref = jax.jit(functools.partial(
        _reference_forward,
        input_size=INPUT_SIZE, clip_input_size=CLIP_SIZE, downscale_factor=DF))

    out = fwd(x, params)
    jax.block_until_ready(out)
    assert out.shape == (B, 3, CLIP_SIZE, CLIP_SIZE), out.shape
    assert out.dtype == jnp.float32

    # Correctness vs the pure-XLA reference (f32 activations).
    d0 = float(jnp.max(jnp.abs(out - ref(x, params))))
    assert d0 < 2e-4, ("output mismatch", d0)
    # Re-check with res_blend=1.0 so the conv path is not hidden behind the
    # 0.001 blend factor (default-precision matmul slack allowed).
    params_full = dict(params)
    params_full["res_blend"] = jnp.asarray(1.0, jnp.float32)
    d1 = float(jnp.max(jnp.abs(fwd(x, params_full) - ref(x, params_full))))
    assert d1 < 5e-2, ("conv-path mismatch", d1)

    # bf16 HBM activations (f32 accumulation in-kernel): exercise the path.
    fwd_bf16 = jax.jit(functools.partial(
        clip_image_preprocessor_forward,
        input_size=INPUT_SIZE, clip_input_size=CLIP_SIZE, downscale_factor=DF,
        act_dtype=jnp.bfloat16))
    out_bf16 = fwd_bf16(x, params)
    jax.block_until_ready(out_bf16)
    assert out_bf16.shape == (B, 3, CLIP_SIZE, CLIP_SIZE)

    print("KERNEL_OK")
</pallas_src>

<mosaic_0001>
module attributes {stable_mosaic.version = 11 : i64} {
  func.func @_conv3x3_kernel(%arg0: i32, %arg1: i32, %arg2: memref<1x1x26x48xf32, #tpu.memory_space<vmem>>, %arg3: memref<3x144x48xf32, #tpu.memory_space<vmem>>, %arg4: memref<1x48xf32, #tpu.memory_space<vmem>>, %arg5: memref<1x16x48xf32, #tpu.memory_space<vmem>>) attributes {dimension_semantics = [#tpu.dimension_semantics<parallel>, #tpu.dimension_semantics<parallel>], iteration_bounds = array<i64: 2, 1>, scalar_prefetch = 0 : i64, scratch_operands = 0 : i64, tpu.core_type = #tpu.core_type<tc>, window_params = [{transform_indices = @transform_0, window_bounds = array<i64: 1, 1, 26, 48>}, {pipeline_mode = #tpu.pipeline_mode<synchronous>, transform_indices = @transform_1, window_bounds = array<i64: 3, 144, 48>}, {pipeline_mode = #tpu.pipeline_mode<synchronous>, transform_indices = @transform_2, window_bounds = array<i64: 1, 48>}, {transform_indices = @transform_3, window_bounds = array<i64: 1, 16, 48>}]} {
    %0 = tpu.iota {dimensions = array<i32: 0>} : vector<24x1xi32>
    %c4_i32 = arith.constant 4 : i32
    %c0_i32 = arith.constant 0 : i32
    %1 = arith.cmpi eq, %c4_i32, %c0_i32 : i32
    %c1_i32 = arith.constant 1 : i32
    %2 = arith.select %1, %c1_i32, %c4_i32 : i32
    %3 = vector.broadcast %2 : i32 to vector<24x1xi32>
    %4 = arith.remsi %0, %3 : vector<24x1xi32>
    %c0_i32_0 = arith.constant 0 : i32
    %5 = vector.broadcast %c0_i32_0 : i32 to vector<24x1xi32>
    %6 = arith.cmpi ne, %4, %5 : vector<24x1xi32>
    %c0_i32_1 = arith.constant 0 : i32
    %7 = vector.broadcast %c0_i32_1 : i32 to vector<24x1xi32>
    %8 = arith.cmpi slt, %4, %7 : vector<24x1xi32>
    %c0_i32_2 = arith.constant 0 : i32
    %9 = arith.cmpi slt, %2, %c0_i32_2 : i32
    %10 = vector.broadcast %9 : i1 to vector<24x1xi1>
    %11 = vector.broadcast %10 : vector<24x1xi1> to vector<24x1xi1>
    %12 = arith.xori %8, %11 : vector<24x1xi1>
    %13 = arith.andi %12, %6 : vector<24x1xi1>
    %14 = vector.broadcast %2 : i32 to vector<24x1xi32>
    %15 = arith.addi %4, %14 : vector<24x1xi32>
    %16 = arith.select %13, %15, %4 : vector<24x1xi1>, vector<24x1xi32>
    %cst = arith.constant 0.000000e+00 : f32
    %17 = vector.broadcast %cst : f32 to vector<16x48xf32>
    %c0 = arith.constant 0 : index
    %c0_3 = arith.constant 0 : index
    %c0_4 = arith.constant 0 : index
    %c0_5 = arith.constant 0 : index
    %18 = vector.load %arg2[%c0, %c0_3, %c0_4, %c0_5] : memref<1x1x26x48xf32, #tpu.memory_space<vmem>>, vector<1x1x24x48xf32>
    %19 = vector.shape_cast %18 : vector<1x1x24x48xf32> to vector<24x48xf32>
    %c0_i32_6 = arith.constant 0 : i32
    %20 = vector.broadcast %c0_i32_6 : i32 to vector<24x1xi32>
    %21 = arith.cmpi sgt, %16, %20 : vector<24x1xi32>
    %22 = arith.extui %21 : vector<24x1xi1> to vector<24x1xi32>
    %23 = arith.sitofp %22 : vector<24x1xi32> to vector<24x1xf32>
    %24 = vector.broadcast %23 : vector<24x1xf32> to vector<24x48xf32>
    %25 = arith.mulf %19, %24 : vector<24x48xf32>
    %26 = vector.extract_strided_slice %25 {offsets = [0, 0], sizes = [16, 48], strides = [1, 1]} : vector<24x48xf32> to vector<16x48xf32>
    %27 = vector.extract_strided_slice %25 {offsets = [4, 0], sizes = [16, 48], strides = [1, 1]} : vector<24x48xf32> to vector<16x48xf32>
    %28 = vector.extract_strided_slice %25 {offsets = [8, 0], sizes = [16, 48], strides = [1, 1]} : vector<24x48xf32> to vector<16x48xf32>
    %29 = tpu.concatenate %26, %27, %28 in 1 : vector<16x48xf32>, vector<16x48xf32>, vector<16x48xf32> -> vector<16x144xf32>
    %c0_7 = arith.constant 0 : index
    %c0_8 = arith.constant 0 : index
    %c0_9 = arith.constant 0 : index
    %30 = vector.load %arg3[%c0_7, %c0_8, %c0_9] : memref<3x144x48xf32, #tpu.memory_space<vmem>>, vector<1x144x48xf32>
    %31 = vector.shape_cast %30 : vector<1x144x48xf32> to vector<144x48xf32>
    %cst_10 = arith.constant dense<0.000000e+00> : vector<16x48xf32>
    %32 = tpu.matmul %29, %31, %cst_10 {dimension_numbers = #tpu.dot_dimension_numbers<[1], [0], [0], [1], [0, 0, 1, 1], [], []>} : vector<16x144xf32>, vector<144x48xf32>, vector<16x48xf32> -> vector<16x48xf32>
    %33 = arith.addf %17, %32 : vector<16x48xf32>
    %c0_11 = arith.constant 0 : index
    %c0_12 = arith.constant 0 : index
    %c1 = arith.constant 1 : index
    %c0_13 = arith.constant 0 : index
    %34 = vector.load %arg2[%c0_11, %c0_12, %c1, %c0_13] : memref<1x1x26x48xf32, #tpu.memory_space<vmem>>, vector<1x1x24x48xf32>
    %35 = vector.shape_cast %34 : vector<1x1x24x48xf32> to vector<24x48xf32>
    %36 = vector.extract_strided_slice %35 {offsets = [0, 0], sizes = [16, 48], strides = [1, 1]} : vector<24x48xf32> to vector<16x48xf32>
    %37 = vector.extract_strided_slice %35 {offsets = [4, 0], sizes = [16, 48], strides = [1, 1]} : vector<24x48xf32> to vector<16x48xf32>
    %38 = vector.extract_strided_slice %35 {offsets = [8, 0], sizes = [16, 48], strides = [1, 1]} : vector<24x48xf32> to vector<16x48xf32>
    %39 = tpu.concatenate %36, %37, %38 in 1 : vector<16x48xf32>, vector<16x48xf32>, vector<16x48xf32> -> vector<16x144xf32>
    %c1_14 = arith.constant 1 : index
    %c0_15 = arith.constant 0 : index
    %c0_16 = arith.constant 0 : index
    %40 = vector.load %arg3[%c1_14, %c0_15, %c0_16] : memref<3x144x48xf32, #tpu.memory_space<vmem>>, vector<1x144x48xf32>
    %41 = vector.shape_cast %40 : vector<1x144x48xf32> to vector<144x48xf32>
    %cst_17 = arith.constant dense<0.000000e+00> : vector<16x48xf32>
    %42 = tpu.matmul %39, %41, %cst_17 {dimension_numbers = #tpu.dot_dimension_numbers<[1], [0], [0], [1], [0, 0, 1, 1], [], []>} : vector<16x144xf32>, vector<144x48xf32>, vector<16x48xf32> -> vector<16x48xf32>
    %43 = arith.addf %33, %42 : vector<16x48xf32>
    %c0_18 = arith.constant 0 : index
    %c0_19 = arith.constant 0 : index
    %c2 = arith.constant 2 : index
    %c0_20 = arith.constant 0 : index
    %44 = vector.load %arg2[%c0_18, %c0_19, %c2, %c0_20] : memref<1x1x26x48xf32, #tpu.memory_space<vmem>>, vector<1x1x24x48xf32>
    %45 = vector.shape_cast %44 : vector<1x1x24x48xf32> to vector<24x48xf32>
    %c3_i32 = arith.constant 3 : i32
    %46 = vector.broadcast %c3_i32 : i32 to vector<24x1xi32>
    %47 = arith.cmpi slt, %16, %46 : vector<24x1xi32>
    %48 = arith.extui %47 : vector<24x1xi1> to vector<24x1xi32>
    %49 = arith.sitofp %48 : vector<24x1xi32> to vector<24x1xf32>
    %50 = vector.broadcast %49 : vector<24x1xf32> to vector<24x48xf32>
    %51 = arith.mulf %45, %50 : vector<24x48xf32>
    %52 = vector.extract_strided_slice %51 {offsets = [0, 0], sizes = [16, 48], strides = [1, 1]} : vector<24x48xf32> to vector<16x48xf32>
    %53 = vector.extract_strided_slice %51 {offsets = [4, 0], sizes = [16, 48], strides = [1, 1]} : vector<24x48xf32> to vector<16x48xf32>
    %54 = vector.extract_strided_slice %51 {offsets = [8, 0], sizes = [16, 48], strides = [1, 1]} : vector<24x48xf32> to vector<16x48xf32>
    %55 = tpu.concatenate %52, %53, %54 in 1 : vector<16x48xf32>, vector<16x48xf32>, vector<16x48xf32> -> vector<16x144xf32>
    %c2_21 = arith.constant 2 : index
    %c0_22 = arith.constant 0 : index
    %c0_23 = arith.constant 0 : index
    %56 = vector.load %arg3[%c2_21, %c0_22, %c0_23] : memref<3x144x48xf32, #tpu.memory_space<vmem>>, vector<1x144x48xf32>
    %57 = vector.shape_cast %56 : vector<1x144x48xf32> to vector<144x48xf32>
    %cst_24 = arith.constant dense<0.000000e+00> : vector<16x48xf32>
    %58 = tpu.matmul %55, %57, %cst_24 {dimension_numbers = #tpu.dot_dimension_numbers<[1], [0], [0], [1], [0, 0, 1, 1], [], []>} : vector<16x144xf32>, vector<144x48xf32>, vector<16x48xf32> -> vector<16x48xf32>
    %59 = arith.addf %43, %58 : vector<16x48xf32>
    %c0_25 = arith.constant 0 : index
    %c0_26 = arith.constant 0 : index
    %60 = vector.load %arg4[%c0_25, %c0_26] : memref<1x48xf32, #tpu.memory_space<vmem>>, vector<1x48xf32>
    %61 = vector.broadcast %60 : vector<1x48xf32> to vector<16x48xf32>
    %62 = arith.addf %59, %61 : vector<16x48xf32>
    %cst_27 = arith.constant 5.000000e-01 : f32
    %63 = vector.broadcast %cst_27 : f32 to vector<16x48xf32>
    %64 = arith.mulf %63, %62 : vector<16x48xf32>
    %cst_28 = arith.constant 0.707106769 : f32
    %65 = vector.broadcast %cst_28 : f32 to vector<16x48xf32>
    %66 = arith.mulf %62, %65 : vector<16x48xf32>
    %cst_29 = arith.constant 0.000000e+00 : f32
    %67 = vector.broadcast %cst_29 : f32 to vector<16x48xf32>
    %68 = arith.cmpf oge, %66, %67 : vector<16x48xf32>
    %cst_30 = arith.constant 1.000000e+00 : f32
    %cst_31 = arith.constant -1.000000e+00 : f32
    %69 = vector.broadcast %cst_30 : f32 to vector<16x48xf32>
    %70 = vector.broadcast %cst_31 : f32 to vector<16x48xf32>
    %71 = arith.select %68, %69, %70 : vector<16x48xi1>, vector<16x48xf32>
    %72 = math.absf %66 : vector<16x48xf32>
    %cst_32 = arith.constant 0.327591091 : f32
    %73 = vector.broadcast %cst_32 : f32 to vector<16x48xf32>
    %74 = arith.mulf %73, %72 : vector<16x48xf32>
    %cst_33 = arith.constant 1.000000e+00 : f32
    %75 = vector.broadcast %cst_33 : f32 to vector<16x48xf32>
    %76 = arith.addf %75, %74 : vector<16x48xf32>
    %cst_34 = arith.constant 1.000000e+00 : f32
    %77 = vector.broadcast %cst_34 : f32 to vector<16x48xf32>
    %78 = arith.divf %77, %76 : vector<16x48xf32>
    %cst_35 = arith.constant 1.06140542 : f32
    %79 = vector.broadcast %cst_35 : f32 to vector<16x48xf32>
    %80 = arith.mulf %78, %79 : vector<16x48xf32>
    %cst_36 = arith.constant -1.45315206 : f32
    %81 = vector.broadcast %cst_36 : f32 to vector<16x48xf32>
    %82 = arith.addf %81, %80 : vector<16x48xf32>
    %83 = arith.mulf %78, %82 : vector<16x48xf32>
    %cst_37 = arith.constant 1.42141378 : f32
    %84 = vector.broadcast %cst_37 : f32 to vector<16x48xf32>
    %85 = arith.addf %84, %83 : vector<16x48xf32>
    %86 = arith.mulf %78, %85 : vector<16x48xf32>
    %cst_38 = arith.constant -0.284496725 : f32
    %87 = vector.broadcast %cst_38 : f32 to vector<16x48xf32>
    %88 = arith.addf %87, %86 : vector<16x48xf32>
    %89 = arith.mulf %78, %88 : vector<16x48xf32>
    %cst_39 = arith.constant 0.254829586 : f32
    %90 = vector.broadcast %cst_39 : f32 to vector<16x48xf32>
    %91 = arith.addf %90, %89 : vector<16x48xf32>
    %92 = arith.mulf %78, %91 : vector<16x48xf32>
    %cst_40 = arith.constant 0.000000e+00 : f32
    %93 = vector.broadcast %cst_40 : f32 to vector<16x48xf32>
    %94 = arith.subf %93, %72 : vector<16x48xf32>
    %95 = arith.mulf %94, %72 : vector<16x48xf32>
    %96 = math.exp %95 : vector<16x48xf32>
    %97 = arith.mulf %92, %96 : vector<16x48xf32>
    %cst_41 = arith.constant 1.000000e+00 : f32
    %98 = vector.broadcast %cst_41 : f32 to vector<16x48xf32>
    %99 = arith.subf %98, %97 : vector<16x48xf32>
    %100 = arith.mulf %71, %99 : vector<16x48xf32>
    %cst_42 = arith.constant 1.000000e+00 : f32
    %101 = vector.broadcast %cst_42 : f32 to vector<16x48xf32>
    %102 = arith.addf %101, %100 : vector<16x48xf32>
    %103 = arith.mulf %64, %102 : vector<16x48xf32>
    %c0_43 = arith.constant 0 : index
    %c0_44 = arith.constant 0 : index
    %c0_45 = arith.constant 0 : index
    %104 = vector.load %arg5[%c0_43, %c0_44, %c0_45] : memref<1x16x48xf32, #tpu.memory_space<vmem>>, vector<1x16x48xf32>
    %105 = vector.shape_cast %104 : vector<1x16x48xf32> to vector<16x48xf32>
    %106 = vector.shape_cast %103 : vector<16x48xf32> to vector<1x16x48xf32>
    tpu.vector_store %arg5[%c0_43, %c0_44, %c0_45], %106 {strides = array<i32>} : memref<1x16x48xf32, #tpu.memory_space<vmem>>, vector<1x16x48xf32>,
    return
  }
  func.func @transform_0(%arg0: i32, %arg1: i32) -> (i32, i32, i32, i32) {
    %c0_i32 = arith.constant 0 : i32
    %c0_i32_0 = arith.constant 0 : i32
    %c0_i32_1 = arith.constant 0 : i32
    return %arg0, %arg1, %c0_i32, %c0_i32_0 : i32, i32, i32, i32
  }
  func.func @transform_1(%arg0: i32, %arg1: i32) -> (i32, i32, i32) {
    %c0_i32 = arith.constant 0 : i32
    %c0_i32_0 = arith.constant 0 : i32
    %c0_i32_1 = arith.constant 0 : i32
    %c0_i32_2 = arith.constant 0 : i32
    return %c0_i32, %c0_i32_0, %c0_i32_1 : i32, i32, i32
  }
  func.func @transform_2(%arg0: i32, %arg1: i32) -> (i32, i32) {
    %c0_i32 = arith.constant 0 : i32
    %c0_i32_0 = arith.constant 0 : i32
    %c0_i32_1 = arith.constant 0 : i32
    return %c0_i32, %c0_i32_0 : i32, i32
  }
  func.func @transform_3(%arg0: i32, %arg1: i32) -> (i32, i32, i32) {
    %c0_i32 = arith.constant 0 : i32
    %c0_i32_0 = arith.constant 0 : i32
    return %arg0, %arg1, %c0_i32 : i32, i32, i32
  }
}

module attributes {stable_mosaic.version = 11 : i64} {
  func.func @_convt_kernel(%arg0: i32, %arg1: i32, %arg2: memref<1x16x48xf32, #tpu.memory_space<vmem>>, %arg3: memref<48x48xf32, #tpu.memory_space<vmem>>, %arg4: memref<1x48xf32, #tpu.memory_space<vmem>>, %arg5: memref<1x16x48xf32, #tpu.memory_space<vmem>>) attributes {dimension_semantics = [#tpu.dimension_semantics<parallel>, #tpu.dimension_semantics<parallel>], iteration_bounds = array<i64: 2, 1>, scalar_prefetch = 0 : i64, scratch_operands = 0 : i64, tpu.core_type = #tpu.core_type<tc>, window_params = [{transform_indices = @transform_0, window_bounds = array<i64: 1, 16, 48>}, {pipeline_mode = #tpu.pipeline_mode<synchronous>, transform_indices = @transform_1, window_bounds = array<i64: 48, 48>}, {pipeline_mode = #tpu.pipeline_mode<synchronous>, transform_indices = @transform_2, window_bounds = array<i64: 1, 48>}, {transform_indices = @transform_3, window_bounds = array<i64: 1, 16, 48>}]} {
    %c0 = arith.constant 0 : index
    %c0_0 = arith.constant 0 : index
    %c0_1 = arith.constant 0 : index
    %0 = vector.load %arg2[%c0, %c0_0, %c0_1] : memref<1x16x48xf32, #tpu.memory_space<vmem>>, vector<1x16x48xf32>
    %1 = vector.shape_cast %0 : vector<1x16x48xf32> to vector<16x48xf32>
    %c0_2 = arith.constant 0 : index
    %c0_3 = arith.constant 0 : index
    %2 = vector.load %arg3[%c0_2, %c0_3] : memref<48x48xf32, #tpu.memory_space<vmem>>, vector<48x48xf32>
    %cst = arith.constant dense<0.000000e+00> : vector<16x48xf32>
    %3 = tpu.matmul %1, %2, %cst {dimension_numbers = #tpu.dot_dimension_numbers<[1], [0], [0], [1], [0, 0, 1, 1], [], []>} : vector<16x48xf32>, vector<48x48xf32>, vector<16x48xf32> -> vector<16x48xf32>
    %c0_4 = arith.constant 0 : index
    %c0_5 = arith.constant 0 : index
    %4 = vector.load %arg4[%c0_4, %c0_5] : memref<1x48xf32, #tpu.memory_space<vmem>>, vector<1x48xf32>
    %5 = vector.broadcast %4 : vector<1x48xf32> to vector<16x48xf32>
    %6 = arith.addf %3, %5 : vector<16x48xf32>
    %cst_6 = arith.constant 5.000000e-01 : f32
    %7 = vector.broadcast %cst_6 : f32 to vector<16x48xf32>
    %8 = arith.mulf %7, %6 : vector<16x48xf32>
    %cst_7 = arith.constant 0.707106769 : f32
    %9 = vector.broadcast %cst_7 : f32 to vector<16x48xf32>
    %10 = arith.mulf %6, %9 : vector<16x48xf32>
    %cst_8 = arith.constant 0.000000e+00 : f32
    %11 = vector.broadcast %cst_8 : f32 to vector<16x48xf32>
    %12 = arith.cmpf oge, %10, %11 : vector<16x48xf32>
    %cst_9 = arith.constant 1.000000e+00 : f32
    %cst_10 = arith.constant -1.000000e+00 : f32
    %13 = vector.broadcast %cst_9 : f32 to vector<16x48xf32>
    %14 = vector.broadcast %cst_10 : f32 to vector<16x48xf32>
    %15 = arith.select %12, %13, %14 : vector<16x48xi1>, vector<16x48xf32>
    %16 = math.absf %10 : vector<16x48xf32>
    %cst_11 = arith.constant 0.327591091 : f32
    %17 = vector.broadcast %cst_11 : f32 to vector<16x48xf32>
    %18 = arith.mulf %17, %16 : vector<16x48xf32>
    %cst_12 = arith.constant 1.000000e+00 : f32
    %19 = vector.broadcast %cst_12 : f32 to vector<16x48xf32>
    %20 = arith.addf %19, %18 : vector<16x48xf32>
    %cst_13 = arith.constant 1.000000e+00 : f32
    %21 = vector.broadcast %cst_13 : f32 to vector<16x48xf32>
    %22 = arith.divf %21, %20 : vector<16x48xf32>
    %cst_14 = arith.constant 1.06140542 : f32
    %23 = vector.broadcast %cst_14 : f32 to vector<16x48xf32>
    %24 = arith.mulf %22, %23 : vector<16x48xf32>
    %cst_15 = arith.constant -1.45315206 : f32
    %25 = vector.broadcast %cst_15 : f32 to vector<16x48xf32>
    %26 = arith.addf %25, %24 : vector<16x48xf32>
    %27 = arith.mulf %22, %26 : vector<16x48xf32>
    %cst_16 = arith.constant 1.42141378 : f32
    %28 = vector.broadcast %cst_16 : f32 to vector<16x48xf32>
    %29 = arith.addf %28, %27 : vector<16x48xf32>
    %30 = arith.mulf %22, %29 : vector<16x48xf32>
    %cst_17 = arith.constant -0.284496725 : f32
    %31 = vector.broadcast %cst_17 : f32 to vector<16x48xf32>
    %32 = arith.addf %31, %30 : vector<16x48xf32>
    %33 = arith.mulf %22, %32 : vector<16x48xf32>
    %cst_18 = arith.constant 0.254829586 : f32
    %34 = vector.broadcast %cst_18 : f32 to vector<16x48xf32>
    %35 = arith.addf %34, %33 : vector<16x48xf32>
    %36 = arith.mulf %22, %35 : vector<16x48xf32>
    %cst_19 = arith.constant 0.000000e+00 : f32
    %37 = vector.broadcast %cst_19 : f32 to vector<16x48xf32>
    %38 = arith.subf %37, %16 : vector<16x48xf32>
    %39 = arith.mulf %38, %16 : vector<16x48xf32>
    %40 = math.exp %39 : vector<16x48xf32>
    %41 = arith.mulf %36, %40 : vector<16x48xf32>
    %cst_20 = arith.constant 1.000000e+00 : f32
    %42 = vector.broadcast %cst_20 : f32 to vector<16x48xf32>
    %43 = arith.subf %42, %41 : vector<16x48xf32>
    %44 = arith.mulf %15, %43 : vector<16x48xf32>
    %cst_21 = arith.constant 1.000000e+00 : f32
    %45 = vector.broadcast %cst_21 : f32 to vector<16x48xf32>
    %46 = arith.addf %45, %44 : vector<16x48xf32>
    %47 = arith.mulf %8, %46 : vector<16x48xf32>
    %c0_22 = arith.constant 0 : index
    %c0_23 = arith.constant 0 : index
    %c0_24 = arith.constant 0 : index
    %48 = vector.load %arg5[%c0_22, %c0_23, %c0_24] : memref<1x16x48xf32, #tpu.memory_space<vmem>>, vector<1x16x48xf32>
    %49 = vector.shape_cast %48 : vector<1x16x48xf32> to vector<16x48xf32>
    %50 = vector.shape_cast %47 : vector<16x48xf32> to vector<1x16x48xf32>
    tpu.vector_store %arg5[%c0_22, %c0_23, %c0_24], %50 {strides = array<i32>} : memref<1x16x48xf32, #tpu.memory_space<vmem>>, vector<1x16x48xf32>,
    return
  }
  func.func @transform_0(%arg0: i32, %arg1: i32) -> (i32, i32, i32) {
    %c0_i32 = arith.constant 0 : i32
    %c0_i32_0 = arith.constant 0 : i32
    return %arg0, %arg1, %c0_i32 : i32, i32, i32
  }
  func.func @transform_1(%arg0: i32, %arg1: i32) -> (i32, i32) {
    %c0_i32 = arith.constant 0 : i32
    %c0_i32_0 = arith.constant 0 : i32
    %c0_i32_1 = arith.constant 0 : i32
    return %c0_i32, %c0_i32_0 : i32, i32
  }
  func.func @transform_2(%arg0: i32, %arg1: i32) -> (i32, i32) {
    %c0_i32 = arith.constant 0 : i32
    %c0_i32_0 = arith.constant 0 : i32
    %c0_i32_1 = arith.constant 0 : i32
    return %c0_i32, %c0_i32_0 : i32, i32
  }
  func.func @transform_3(%arg0: i32, %arg1: i32) -> (i32, i32, i32) {
    %c0_i32 = arith.constant 0 : i32
    %c0_i32_0 = arith.constant 0 : i32
    return %arg0, %arg1, %c0_i32 : i32, i32, i32
  }
}

module attributes {stable_mosaic.version = 11 : i64} {
  func.func @_conv3x3_kernel(%arg0: i32, %arg1: i32, %arg2: memref<1x1x82x12xf32, #tpu.memory_space<vmem>>, %arg3: memref<3x36x12xf32, #tpu.memory_space<vmem>>, %arg4: memref<1x12xf32, #tpu.memory_space<vmem>>, %arg5: memref<1x64x12xf32, #tpu.memory_space<vmem>>, %arg6: memref<1x64x12xf32, #tpu.memory_space<vmem>>) attributes {dimension_semantics = [#tpu.dimension_semantics<parallel>, #tpu.dimension_semantics<parallel>], iteration_bounds = array<i64: 2, 1>, scalar_prefetch = 0 : i64, scratch_operands = 0 : i64, tpu.core_type = #tpu.core_type<tc>, window_params = [{transform_indices = @transform_0, window_bounds = array<i64: 1, 1, 82, 12>}, {pipeline_mode = #tpu.pipeline_mode<synchronous>, transform_indices = @transform_1, window_bounds = array<i64: 3, 36, 12>}, {pipeline_mode = #tpu.pipeline_mode<synchronous>, transform_indices = @transform_2, window_bounds = array<i64: 1, 12>}, {transform_indices = @transform_3, window_bounds = array<i64: 1, 64, 12>}, {transform_indices = @transform_4, window_bounds = array<i64: 1, 64, 12>}]} {
    %0 = tpu.iota {dimensions = array<i32: 0>} : vector<80x1xi32>
    %c8_i32 = arith.constant 8 : i32
    %c0_i32 = arith.constant 0 : i32
    %1 = arith.cmpi eq, %c8_i32, %c0_i32 : i32
    %c1_i32 = arith.constant 1 : i32
    %2 = arith.select %1, %c1_i32, %c8_i32 : i32
    %3 = vector.broadcast %2 : i32 to vector<80x1xi32>
    %4 = arith.remsi %0, %3 : vector<80x1xi32>
    %c0_i32_0 = arith.constant 0 : i32
    %5 = vector.broadcast %c0_i32_0 : i32 to vector<80x1xi32>
    %6 = arith.cmpi ne, %4, %5 : vector<80x1xi32>
    %c0_i32_1 = arith.constant 0 : i32
    %7 = vector.broadcast %c0_i32_1 : i32 to vector<80x1xi32>
    %8 = arith.cmpi slt, %4, %7 : vector<80x1xi32>
    %c0_i32_2 = arith.constant 0 : i32
    %9 = arith.cmpi slt, %2, %c0_i32_2 : i32
    %10 = vector.broadcast %9 : i1 to vector<80x1xi1>
    %11 = vector.broadcast %10 : vector<80x1xi1> to vector<80x1xi1>
    %12 = arith.xori %8, %11 : vector<80x1xi1>
    %13 = arith.andi %12, %6 : vector<80x1xi1>
    %14 = vector.broadcast %2 : i32 to vector<80x1xi32>
    %15 = arith.addi %4, %14 : vector<80x1xi32>
    %16 = arith.select %13, %15, %4 : vector<80x1xi1>, vector<80x1xi32>
    %cst = arith.constant 0.000000e+00 : f32
    %17 = vector.broadcast %cst : f32 to vector<64x12xf32>
    %c0 = arith.constant 0 : index
    %c0_3 = arith.constant 0 : index
    %c0_4 = arith.constant 0 : index
    %c0_5 = arith.constant 0 : index
    %18 = vector.load %arg2[%c0, %c0_3, %c0_4, %c0_5] : memref<1x1x82x12xf32, #tpu.memory_space<vmem>>, vector<1x1x80x12xf32>
    %19 = vector.shape_cast %18 : vector<1x1x80x12xf32> to vector<80x12xf32>
    %c0_i32_6 = arith.constant 0 : i32
    %20 = vector.broadcast %c0_i32_6 : i32 to vector<80x1xi32>
    %21 = arith.cmpi sgt, %16, %20 : vector<80x1xi32>
    %22 = arith.extui %21 : vector<80x1xi1> to vector<80x1xi32>
    %23 = arith.sitofp %22 : vector<80x1xi32> to vector<80x1xf32>
    %24 = vector.broadcast %23 : vector<80x1xf32> to vector<80x12xf32>
    %25 = arith.mulf %19, %24 : vector<80x12xf32>
    %26 = vector.extract_strided_slice %25 {offsets = [0, 0], sizes = [64, 12], strides = [1, 1]} : vector<80x12xf32> to vector<64x12xf32>
    %27 = vector.extract_strided_slice %25 {offsets = [8, 0], sizes = [64, 12], strides = [1, 1]} : vector<80x12xf32> to vector<64x12xf32>
    %28 = vector.extract_strided_slice %25 {offsets = [16, 0], sizes = [64, 12], strides = [1, 1]} : vector<80x12xf32> to vector<64x12xf32>
    %29 = tpu.concatenate %26, %27, %28 in 1 : vector<64x12xf32>, vector<64x12xf32>, vector<64x12xf32> -> vector<64x36xf32>
    %c0_7 = arith.constant 0 : index
    %c0_8 = arith.constant 0 : index
    %c0_9 = arith.constant 0 : index
    %30 = vector.load %arg3[%c0_7, %c0_8, %c0_9] : memref<3x36x12xf32, #tpu.memory_space<vmem>>, vector<1x36x12xf32>
    %31 = vector.shape_cast %30 : vector<1x36x12xf32> to vector<36x12xf32>
    %cst_10 = arith.constant dense<0.000000e+00> : vector<64x12xf32>
    %32 = tpu.matmul %29, %31, %cst_10 {dimension_numbers = #tpu.dot_dimension_numbers<[1], [0], [0], [1], [0, 0, 1, 1], [], []>} : vector<64x36xf32>, vector<36x12xf32>, vector<64x12xf32> -> vector<64x12xf32>
    %33 = arith.addf %17, %32 : vector<64x12xf32>
    %c0_11 = arith.constant 0 : index
    %c0_12 = arith.constant 0 : index
    %c1 = arith.constant 1 : index
    %c0_13 = arith.constant 0 : index
    %34 = vector.load %arg2[%c0_11, %c0_12, %c1, %c0_13] : memref<1x1x82x12xf32, #tpu.memory_space<vmem>>, vector<1x1x80x12xf32>
    %35 = vector.shape_cast %34 : vector<1x1x80x12xf32> to vector<80x12xf32>
    %36 = vector.extract_strided_slice %35 {offsets = [0, 0], sizes = [64, 12], strides = [1, 1]} : vector<80x12xf32> to vector<64x12xf32>
    %37 = vector.extract_strided_slice %35 {offsets = [8, 0], sizes = [64, 12], strides = [1, 1]} : vector<80x12xf32> to vector<64x12xf32>
    %38 = vector.extract_strided_slice %35 {offsets = [16, 0], sizes = [64, 12], strides = [1, 1]} : vector<80x12xf32> to vector<64x12xf32>
    %39 = tpu.concatenate %36, %37, %38 in 1 : vector<64x12xf32>, vector<64x12xf32>, vector<64x12xf32> -> vector<64x36xf32>
    %c1_14 = arith.constant 1 : index
    %c0_15 = arith.constant 0 : index
    %c0_16 = arith.constant 0 : index
    %40 = vector.load %arg3[%c1_14, %c0_15, %c0_16] : memref<3x36x12xf32, #tpu.memory_space<vmem>>, vector<1x36x12xf32>
    %41 = vector.shape_cast %40 : vector<1x36x12xf32> to vector<36x12xf32>
    %cst_17 = arith.constant dense<0.000000e+00> : vector<64x12xf32>
    %42 = tpu.matmul %39, %41, %cst_17 {dimension_numbers = #tpu.dot_dimension_numbers<[1], [0], [0], [1], [0, 0, 1, 1], [], []>} : vector<64x36xf32>, vector<36x12xf32>, vector<64x12xf32> -> vector<64x12xf32>
    %43 = arith.addf %33, %42 : vector<64x12xf32>
    %c0_18 = arith.constant 0 : index
    %c0_19 = arith.constant 0 : index
    %c2 = arith.constant 2 : index
    %c0_20 = arith.constant 0 : index
    %44 = vector.load %arg2[%c0_18, %c0_19, %c2, %c0_20] : memref<1x1x82x12xf32, #tpu.memory_space<vmem>>, vector<1x1x80x12xf32>
    %45 = vector.shape_cast %44 : vector<1x1x80x12xf32> to vector<80x12xf32>
    %c7_i32 = arith.constant 7 : i32
    %46 = vector.broadcast %c7_i32 : i32 to vector<80x1xi32>
    %47 = arith.cmpi slt, %16, %46 : vector<80x1xi32>
    %48 = arith.extui %47 : vector<80x1xi1> to vector<80x1xi32>
    %49 = arith.sitofp %48 : vector<80x1xi32> to vector<80x1xf32>
    %50 = vector.broadcast %49 : vector<80x1xf32> to vector<80x12xf32>
    %51 = arith.mulf %45, %50 : vector<80x12xf32>
    %52 = vector.extract_strided_slice %51 {offsets = [0, 0], sizes = [64, 12], strides = [1, 1]} : vector<80x12xf32> to vector<64x12xf32>
    %53 = vector.extract_strided_slice %51 {offsets = [8, 0], sizes = [64, 12], strides = [1, 1]} : vector<80x12xf32> to vector<64x12xf32>
    %54 = vector.extract_strided_slice %51 {offsets = [16, 0], sizes = [64, 12], strides = [1, 1]} : vector<80x12xf32> to vector<64x12xf32>
    %55 = tpu.concatenate %52, %53, %54 in 1 : vector<64x12xf32>, vector<64x12xf32>, vector<64x12xf32> -> vector<64x36xf32>
    %c2_21 = arith.constant 2 : index
    %c0_22 = arith.constant 0 : index
    %c0_23 = arith.constant 0 : index
    %56 = vector.load %arg3[%c2_21, %c0_22, %c0_23] : memref<3x36x12xf32, #tpu.memory_space<vmem>>, vector<1x36x12xf32>
    %57 = vector.shape_cast %56 : vector<1x36x12xf32> to vector<36x12xf32>
    %cst_24 = arith.constant dense<0.000000e+00> : vector<64x12xf32>
    %58 = tpu.matmul %55, %57, %cst_24 {dimension_numbers = #tpu.dot_dimension_numbers<[1], [0], [0], [1], [0, 0, 1, 1], [], []>} : vector<64x36xf32>, vector<36x12xf32>, vector<64x12xf32> -> vector<64x12xf32>
    %59 = arith.addf %43, %58 : vector<64x12xf32>
    %c0_25 = arith.constant 0 : index
    %c0_26 = arith.constant 0 : index
    %60 = vector.load %arg4[%c0_25, %c0_26] : memref<1x12xf32, #tpu.memory_space<vmem>>, vector<1x12xf32>
    %61 = vector.broadcast %60 : vector<1x12xf32> to vector<64x12xf32>
    %62 = arith.addf %59, %61 : vector<64x12xf32>
    %c0_27 = arith.constant 0 : index
    %c0_28 = arith.constant 0 : index
    %c0_29 = arith.constant 0 : index
    %63 = vector.load %arg5[%c0_27, %c0_28, %c0_29] : memref<1x64x12xf32, #tpu.memory_space<vmem>>, vector<1x64x12xf32>
    %64 = vector.shape_cast %63 : vector<1x64x12xf32> to vector<64x12xf32>
    %65 = arith.addf %62, %64 : vector<64x12xf32>
    %c0_30 = arith.constant 0 : index
    %c0_31 = arith.constant 0 : index
    %c0_32 = arith.constant 0 : index
    %66 = vector.load %arg6[%c0_30, %c0_31, %c0_32] : memref<1x64x12xf32, #tpu.memory_space<vmem>>, vector<1x64x12xf32>
    %67 = vector.shape_cast %66 : vector<1x64x12xf32> to vector<64x12xf32>
    %68 = vector.shape_cast %65 : vector<64x12xf32> to vector<1x64x12xf32>
    tpu.vector_store %arg6[%c0_30, %c0_31, %c0_32], %68 {strides = array<i32>} : memref<1x64x12xf32, #tpu.memory_space<vmem>>, vector<1x64x12xf32>,
    return
  }
  func.func @transform_0(%arg0: i32, %arg1: i32) -> (i32, i32, i32, i32) {
    %c0_i32 = arith.constant 0 : i32
    %c0_i32_0 = arith.constant 0 : i32
    %c0_i32_1 = arith.constant 0 : i32
    return %arg0, %arg1, %c0_i32, %c0_i32_0 : i32, i32, i32, i32
  }
  func.func @transform_1(%arg0: i32, %arg1: i32) -> (i32, i32, i32) {
    %c0_i32 = arith.constant 0 : i32
    %c0_i32_0 = arith.constant 0 : i32
    %c0_i32_1 = arith.constant 0 : i32
    %c0_i32_2 = arith.constant 0 : i32
    return %c0_i32, %c0_i32_0, %c0_i32_1 : i32, i32, i32
  }
  func.func @transform_2(%arg0: i32, %arg1: i32) -> (i32, i32) {
    %c0_i32 = arith.constant 0 : i32
    %c0_i32_0 = arith.constant 0 : i32
    %c0_i32_1 = arith.constant 0 : i32
    return %c0_i32, %c0_i32_0 : i32, i32
  }
  func.func @transform_3(%arg0: i32, %arg1: i32) -> (i32, i32, i32) {
    %c0_i32 = arith.constant 0 : i32
    %c0_i32_0 = arith.constant 0 : i32
    return %arg0, %arg1, %c0_i32 : i32, i32, i32
  }
  func.func @transform_4(%arg0: i32, %arg1: i32) -> (i32, i32, i32) {
    %c0_i32 = arith.constant 0 : i32
    %c0_i32_0 = arith.constant 0 : i32
    return %arg0, %arg1, %c0_i32 : i32, i32, i32
  }
}

module attributes {stable_mosaic.version = 11 : i64} {
  func.func @_conv3x3_cmajor_kernel(%arg0: i32, %arg1: memref<1xf32, #tpu.memory_space<smem>>, %arg2: memref<1x12x82xf32, #tpu.memory_space<vmem>>, %arg3: memref<9x3x12xf32, #tpu.memory_space<vmem>>, %arg4: memref<3x1xf32, #tpu.memory_space<vmem>>, %arg5: memref<1x3x64xf32, #tpu.memory_space<vmem>>, %arg6: memref<1x3x64xf32, #tpu.memory_space<vmem>>) attributes {dimension_semantics = [#tpu.dimension_semantics<parallel>], iteration_bounds = array<i64: 2>, scalar_prefetch = 0 : i64, scratch_operands = 0 : i64, tpu.core_type = #tpu.core_type<tc>, window_params = [{transform_indices = @transform_0, window_bounds = array<i64: 1>}, {transform_indices = @transform_1, window_bounds = array<i64: 1, 12, 82>}, {pipeline_mode = #tpu.pipeline_mode<synchronous>, transform_indices = @transform_2, window_bounds = array<i64: 9, 3, 12>}, {pipeline_mode = #tpu.pipeline_mode<synchronous>, transform_indices = @transform_3, window_bounds = array<i64: 3, 1>}, {transform_indices = @transform_4, window_bounds = array<i64: 1, 3, 64>}, {transform_indices = @transform_5, window_bounds = array<i64: 1, 3, 64>}]} {
    %cst = arith.constant 0.000000e+00 : f32
    %0 = vector.broadcast %cst : f32 to vector<3x64xf32>
    %cst_0 = arith.constant 0.000000e+00 : f32
    %1 = vector.broadcast %cst_0 : f32 to vector<3x64xf32>
    %cst_1 = arith.constant 0.000000e+00 : f32
    %2 = vector.broadcast %cst_1 : f32 to vector<3x64xf32>
    %c0 = arith.constant 0 : index
    %c0_2 = arith.constant 0 : index
    %c0_3 = arith.constant 0 : index
    %3 = vector.load %arg2[%c0, %c0_2, %c0_3] : memref<1x12x82xf32, #tpu.memory_space<vmem>>, vector<1x12x64xf32>
    %4 = vector.shape_cast %3 : vector<1x12x64xf32> to vector<12x64xf32>
    %c0_4 = arith.constant 0 : index
    %c0_5 = arith.constant 0 : index
    %c0_6 = arith.constant 0 : index
    %5 = vector.load %arg3[%c0_4, %c0_5, %c0_6] : memref<9x3x12xf32, #tpu.memory_space<vmem>>, vector<1x3x12xf32>
    %6 = vector.shape_cast %5 : vector<1x3x12xf32> to vector<3x12xf32>
    %cst_7 = arith.constant dense<0.000000e+00> : vector<3x64xf32>
    %7 = tpu.matmul %6, %4, %cst_7 {dimension_numbers = #tpu.dot_dimension_numbers<[1], [0], [0], [1], [0, 0, 1, 1], [], []>} : vector<3x12xf32>, vector<12x64xf32>, vector<3x64xf32> -> vector<3x64xf32>
    %8 = arith.addf %1, %7 : vector<3x64xf32>
    %c0_8 = arith.constant 0 : index
    %c0_9 = arith.constant 0 : index
    %c1 = arith.constant 1 : index
    %9 = vector.load %arg2[%c0_8, %c0_9, %c1] : memref<1x12x82xf32, #tpu.memory_space<vmem>>, vector<1x12x64xf32>
    %10 = vector.shape_cast %9 : vector<1x12x64xf32> to vector<12x64xf32>
    %c1_10 = arith.constant 1 : index
    %c0_11 = arith.constant 0 : index
    %c0_12 = arith.constant 0 : index
    %11 = vector.load %arg3[%c1_10, %c0_11, %c0_12] : memref<9x3x12xf32, #tpu.memory_space<vmem>>, vector<1x3x12xf32>
    %12 = vector.shape_cast %11 : vector<1x3x12xf32> to vector<3x12xf32>
    %cst_13 = arith.constant dense<0.000000e+00> : vector<3x64xf32>
    %13 = tpu.matmul %12, %10, %cst_13 {dimension_numbers = #tpu.dot_dimension_numbers<[1], [0], [0], [1], [0, 0, 1, 1], [], []>} : vector<3x12xf32>, vector<12x64xf32>, vector<3x64xf32> -> vector<3x64xf32>
    %14 = arith.addf %0, %13 : vector<3x64xf32>
    %c0_14 = arith.constant 0 : index
    %c0_15 = arith.constant 0 : index
    %c2 = arith.constant 2 : index
    %15 = vector.load %arg2[%c0_14, %c0_15, %c2] : memref<1x12x82xf32, #tpu.memory_space<vmem>>, vector<1x12x64xf32>
    %16 = vector.shape_cast %15 : vector<1x12x64xf32> to vector<12x64xf32>
    %c2_16 = arith.constant 2 : index
    %c0_17 = arith.constant 0 : index
    %c0_18 = arith.constant 0 : index
    %17 = vector.load %arg3[%c2_16, %c0_17, %c0_18] : memref<9x3x12xf32, #tpu.memory_space<vmem>>, vector<1x3x12xf32>
    %18 = vector.shape_cast %17 : vector<1x3x12xf32> to vector<3x12xf32>
    %cst_19 = arith.constant dense<0.000000e+00> : vector<3x64xf32>
    %19 = tpu.matmul %18, %16, %cst_19 {dimension_numbers = #tpu.dot_dimension_numbers<[1], [0], [0], [1], [0, 0, 1, 1], [], []>} : vector<3x12xf32>, vector<12x64xf32>, vector<3x64xf32> -> vector<3x64xf32>
    %20 = arith.addf %2, %19 : vector<3x64xf32>
    %c0_20 = arith.constant 0 : index
    %c0_21 = arith.constant 0 : index
    %c8 = arith.constant 8 : index
    %21 = vector.load %arg2[%c0_20, %c0_21, %c8] : memref<1x12x82xf32, #tpu.memory_space<vmem>>, vector<1x12x64xf32>
    %22 = vector.shape_cast %21 : vector<1x12x64xf32> to vector<12x64xf32>
    %c3 = arith.constant 3 : index
    %c0_22 = arith.constant 0 : index
    %c0_23 = arith.constant 0 : index
    %23 = vector.load %arg3[%c3, %c0_22, %c0_23] : memref<9x3x12xf32, #tpu.memory_space<vmem>>, vector<1x3x12xf32>
    %24 = vector.shape_cast %23 : vector<1x3x12xf32> to vector<3x12xf32>
    %cst_24 = arith.constant dense<0.000000e+00> : vector<3x64xf32>
    %25 = tpu.matmul %24, %22, %cst_24 {dimension_numbers = #tpu.dot_dimension_numbers<[1], [0], [0], [1], [0, 0, 1, 1], [], []>} : vector<3x12xf32>, vector<12x64xf32>, vector<3x64xf32> -> vector<3x64xf32>
    %26 = arith.addf %8, %25 : vector<3x64xf32>
    %c0_25 = arith.constant 0 : index
    %c0_26 = arith.constant 0 : index
    %c9 = arith.constant 9 : index
    %27 = vector.load %arg2[%c0_25, %c0_26, %c9] : memref<1x12x82xf32, #tpu.memory_space<vmem>>, vector<1x12x64xf32>
    %28 = vector.shape_cast %27 : vector<1x12x64xf32> to vector<12x64xf32>
    %c4 = arith.constant 4 : index
    %c0_27 = arith.constant 0 : index
    %c0_28 = arith.constant 0 : index
    %29 = vector.load %arg3[%c4, %c0_27, %c0_28] : memref<9x3x12xf32, #tpu.memory_space<vmem>>, vector<1x3x12xf32>
    %30 = vector.shape_cast %29 : vector<1x3x12xf32> to vector<3x12xf32>
    %cst_29 = arith.constant dense<0.000000e+00> : vector<3x64xf32>
    %31 = tpu.matmul %30, %28, %cst_29 {dimension_numbers = #tpu.dot_dimension_numbers<[1], [0], [0], [1], [0, 0, 1, 1], [], []>} : vector<3x12xf32>, vector<12x64xf32>, vector<3x64xf32> -> vector<3x64xf32>
    %32 = arith.addf %14, %31 : vector<3x64xf32>
    %c0_30 = arith.constant 0 : index
    %c0_31 = arith.constant 0 : index
    %c10 = arith.constant 10 : index
    %33 = vector.load %arg2[%c0_30, %c0_31, %c10] : memref<1x12x82xf32, #tpu.memory_space<vmem>>, vector<1x12x64xf32>
    %34 = vector.shape_cast %33 : vector<1x12x64xf32> to vector<12x64xf32>
    %c5 = arith.constant 5 : index
    %c0_32 = arith.constant 0 : index
    %c0_33 = arith.constant 0 : index
    %35 = vector.load %arg3[%c5, %c0_32, %c0_33] : memref<9x3x12xf32, #tpu.memory_space<vmem>>, vector<1x3x12xf32>
    %36 = vector.shape_cast %35 : vector<1x3x12xf32> to vector<3x12xf32>
    %cst_34 = arith.constant dense<0.000000e+00> : vector<3x64xf32>
    %37 = tpu.matmul %36, %34, %cst_34 {dimension_numbers = #tpu.dot_dimension_numbers<[1], [0], [0], [1], [0, 0, 1, 1], [], []>} : vector<3x12xf32>, vector<12x64xf32>, vector<3x64xf32> -> vector<3x64xf32>
    %38 = arith.addf %20, %37 : vector<3x64xf32>
    %c0_35 = arith.constant 0 : index
    %c0_36 = arith.constant 0 : index
    %c16 = arith.constant 16 : index
    %39 = vector.load %arg2[%c0_35, %c0_36, %c16] : memref<1x12x82xf32, #tpu.memory_space<vmem>>, vector<1x12x64xf32>
    %40 = vector.shape_cast %39 : vector<1x12x64xf32> to vector<12x64xf32>
    %c6 = arith.constant 6 : index
    %c0_37 = arith.constant 0 : index
    %c0_38 = arith.constant 0 : index
    %41 = vector.load %arg3[%c6, %c0_37, %c0_38] : memref<9x3x12xf32, #tpu.memory_space<vmem>>, vector<1x3x12xf32>
    %42 = vector.shape_cast %41 : vector<1x3x12xf32> to vector<3x12xf32>
    %cst_39 = arith.constant dense<0.000000e+00> : vector<3x64xf32>
    %43 = tpu.matmul %42, %40, %cst_39 {dimension_numbers = #tpu.dot_dimension_numbers<[1], [0], [0], [1], [0, 0, 1, 1], [], []>} : vector<3x12xf32>, vector<12x64xf32>, vector<3x64xf32> -> vector<3x64xf32>
    %44 = arith.addf %26, %43 : vector<3x64xf32>
    %c0_40 = arith.constant 0 : index
    %c0_41 = arith.constant 0 : index
    %c17 = arith.constant 17 : index
    %45 = vector.load %arg2[%c0_40, %c0_41, %c17] : memref<1x12x82xf32, #tpu.memory_space<vmem>>, vector<1x12x64xf32>
    %46 = vector.shape_cast %45 : vector<1x12x64xf32> to vector<12x64xf32>
    %c7 = arith.constant 7 : index
    %c0_42 = arith.constant 0 : index
    %c0_43 = arith.constant 0 : index
    %47 = vector.load %arg3[%c7, %c0_42, %c0_43] : memref<9x3x12xf32, #tpu.memory_space<vmem>>, vector<1x3x12xf32>
    %48 = vector.shape_cast %47 : vector<1x3x12xf32> to vector<3x12xf32>
    %cst_44 = arith.constant dense<0.000000e+00> : vector<3x64xf32>
    %49 = tpu.matmul %48, %46, %cst_44 {dimension_numbers = #tpu.dot_dimension_numbers<[1], [0], [0], [1], [0, 0, 1, 1], [], []>} : vector<3x12xf32>, vector<12x64xf32>, vector<3x64xf32> -> vector<3x64xf32>
    %50 = arith.addf %32, %49 : vector<3x64xf32>
    %c0_45 = arith.constant 0 : index
    %c0_46 = arith.constant 0 : index
    %c18 = arith.constant 18 : index
    %51 = vector.load %arg2[%c0_45, %c0_46, %c18] : memref<1x12x82xf32, #tpu.memory_space<vmem>>, vector<1x12x64xf32>
    %52 = vector.shape_cast %51 : vector<1x12x64xf32> to vector<12x64xf32>
    %c8_47 = arith.constant 8 : index
    %c0_48 = arith.constant 0 : index
    %c0_49 = arith.constant 0 : index
    %53 = vector.load %arg3[%c8_47, %c0_48, %c0_49] : memref<9x3x12xf32, #tpu.memory_space<vmem>>, vector<1x3x12xf32>
    %54 = vector.shape_cast %53 : vector<1x3x12xf32> to vector<3x12xf32>
    %cst_50 = arith.constant dense<0.000000e+00> : vector<3x64xf32>
    %55 = tpu.matmul %54, %52, %cst_50 {dimension_numbers = #tpu.dot_dimension_numbers<[1], [0], [0], [1], [0, 0, 1, 1], [], []>} : vector<3x12xf32>, vector<12x64xf32>, vector<3x64xf32> -> vector<3x64xf32>
    %56 = arith.addf %38, %55 : vector<3x64xf32>
    %57 = tpu.iota {dimensions = array<i32: 1>} : vector<1x64xi32>
    %c8_i32 = arith.constant 8 : i32
    %c0_i32 = arith.constant 0 : i32
    %58 = arith.cmpi eq, %c8_i32, %c0_i32 : i32
    %c1_i32 = arith.constant 1 : i32
    %59 = arith.select %58, %c1_i32, %c8_i32 : i32
    %60 = vector.broadcast %59 : i32 to vector<1x64xi32>
    %61 = arith.remsi %57, %60 : vector<1x64xi32>
    %c0_i32_51 = arith.constant 0 : i32
    %62 = vector.broadcast %c0_i32_51 : i32 to vector<1x64xi32>
    %63 = arith.cmpi ne, %61, %62 : vector<1x64xi32>
    %c0_i32_52 = arith.constant 0 : i32
    %64 = vector.broadcast %c0_i32_52 : i32 to vector<1x64xi32>
    %65 = arith.cmpi slt, %61, %64 : vector<1x64xi32>
    %c0_i32_53 = arith.constant 0 : i32
    %66 = arith.cmpi slt, %59, %c0_i32_53 : i32
    %67 = vector.broadcast %66 : i1 to vector<1x64xi1>
    %68 = vector.broadcast %67 : vector<1x64xi1> to vector<1x64xi1>
    %69 = arith.xori %65, %68 : vector<1x64xi1>
    %70 = arith.andi %69, %63 : vector<1x64xi1>
    %71 = vector.broadcast %59 : i32 to vector<1x64xi32>
    %72 = arith.addi %61, %71 : vector<1x64xi32>
    %73 = arith.select %70, %72, %61 : vector<1x64xi1>, vector<1x64xi32>
    %c0_i32_54 = arith.constant 0 : i32
    %74 = vector.broadcast %c0_i32_54 : i32 to vector<1x64xi32>
    %75 = arith.cmpi sgt, %73, %74 : vector<1x64xi32>
    %76 = arith.extui %75 : vector<1x64xi1> to vector<1x64xi32>
    %77 = arith.sitofp %76 : vector<1x64xi32> to vector<1x64xf32>
    %c7_i32 = arith.constant 7 : i32
    %78 = vector.broadcast %c7_i32 : i32 to vector<1x64xi32>
    %79 = arith.cmpi slt, %73, %78 : vector<1x64xi32>
    %80 = arith.extui %79 : vector<1x64xi1> to vector<1x64xi32>
    %81 = arith.sitofp %80 : vector<1x64xi32> to vector<1x64xf32>
    %82 = vector.broadcast %77 : vector<1x64xf32> to vector<3x64xf32>
    %83 = arith.mulf %44, %82 : vector<3x64xf32>
    %84 = arith.addf %50, %83 : vector<3x64xf32>
    %85 = vector.broadcast %81 : vector<1x64xf32> to vector<3x64xf32>
    %86 = arith.mulf %56, %85 : vector<3x64xf32>
    %87 = arith.addf %84, %86 : vector<3x64xf32>
    %c0_55 = arith.constant 0 : index
    %c0_56 = arith.constant 0 : index
    %88 = vector.load %arg4[%c0_55, %c0_56] : memref<3x1xf32, #tpu.memory_space<vmem>>, vector<3x1xf32>
    %89 = vector.broadcast %88 : vector<3x1xf32> to vector<3x64xf32>
    %90 = arith.addf %87, %89 : vector<3x64xf32>
    %c0_57 = arith.constant 0 : index
    %91 = memref.load %arg1[%c0_57] : memref<1xf32, #tpu.memory_space<smem>>
    %92 = vector.broadcast %91 : f32 to vector<3x64xf32>
    %93 = arith.mulf %90, %92 : vector<3x64xf32>
    %c0_58 = arith.constant 0 : index
    %c0_59 = arith.constant 0 : index
    %c0_60 = arith.constant 0 : index
    %94 = vector.load %arg5[%c0_58, %c0_59, %c0_60] : memref<1x3x64xf32, #tpu.memory_space<vmem>>, vector<1x3x64xf32>
    %95 = vector.shape_cast %94 : vector<1x3x64xf32> to vector<3x64xf32>
    %96 = arith.addf %93, %95 : vector<3x64xf32>
    %c0_61 = arith.constant 0 : index
    %c0_62 = arith.constant 0 : index
    %c0_63 = arith.constant 0 : index
    %97 = vector.load %arg6[%c0_61, %c0_62, %c0_63] : memref<1x3x64xf32, #tpu.memory_space<vmem>>, vector<1x3x64xf32>
    %98 = vector.shape_cast %97 : vector<1x3x64xf32> to vector<3x64xf32>
    %99 = vector.shape_cast %96 : vector<3x64xf32> to vector<1x3x64xf32>
    tpu.vector_store %arg6[%c0_61, %c0_62, %c0_63], %99 {strides = array<i32>} : memref<1x3x64xf32, #tpu.memory_space<vmem>>, vector<1x3x64xf32>,
    return
  }
  func.func @transform_0(%arg0: i32) -> i32 {
    %c0_i32 = arith.constant 0 : i32
    %c0_i32_0 = arith.constant 0 : i32
    return %c0_i32 : i32
  }
  func.func @transform_1(%arg0: i32) -> (i32, i32, i32) {
    %c0_i32 = arith.constant 0 : i32
    %c0_i32_0 = arith.constant 0 : i32
    %c0_i32_1 = arith.constant 0 : i32
    return %arg0, %c0_i32, %c0_i32_0 : i32, i32, i32
  }
  func.func @transform_2(%arg0: i32) -> (i32, i32, i32) {
    %c0_i32 = arith.constant 0 : i32
    %c0_i32_0 = arith.constant 0 : i32
    %c0_i32_1 = arith.constant 0 : i32
    %c0_i32_2 = arith.constant 0 : i32
    return %c0_i32, %c0_i32_0, %c0_i32_1 : i32, i32, i32
  }
  func.func @transform_3(%arg0: i32) -> (i32, i32) {
    %c0_i32 = arith.constant 0 : i32
    %c0_i32_0 = arith.constant 0 : i32
    %c0_i32_1 = arith.constant 0 : i32
    return %c0_i32, %c0_i32_0 : i32, i32
  }
  func.func @transform_4(%arg0: i32) -> (i32, i32, i32) {
    %c0_i32 = arith.constant 0 : i32
    %c0_i32_0 = arith.constant 0 : i32
    %c0_i32_1 = arith.constant 0 : i32
    return %arg0, %c0_i32, %c0_i32_0 : i32, i32, i32
  }
  func.func @transform_5(%arg0: i32) -> (i32, i32, i32) {
    %c0_i32 = arith.constant 0 : i32
    %c0_i32_0 = arith.constant 0 : i32
    %c0_i32_1 = arith.constant 0 : i32
    return %arg0, %c0_i32, %c0_i32_0 : i32, i32, i32
  }
}

</mosaic_0001>

<llo_original>
// kernel: tile.8
$region0: #{tile.8}
  #allocation0 [shape = 's32[1]{0}', space=sflag, size = 0x4, scoped, tag = 'scoped memory for tile.8']
  %s0 = inlined_call_operand.vmem [shape: f32[12], index: 0, kind: input, shape index: {}]
  %s1 = inlined_call_operand.vmem [shape: f32[4,12], index: 1, kind: output, shape index: {}]
  // Predicated region
  $region2: #{tile.8} parent=0 // pred_check
    _
  $region3: #{tile.8} parent=0 // pred_check_branch
    %3 = sbr.rel (0) target = $region5
  $region4: #{tile.8} parent=0 // pred_region
    _
  $region5: #{tile.8} parent=0 // pred_fallthru
    _
  %v4 = vld [vmem:[%s0] ss:$0 sm:$0xff]
  %5 = vst [vmem:[%s1] sm:$0xf] %v4

// kernel: tile.9
$region0: #{tile.9}
  %s0 = inlined_call_operand.vmem [shape: f32[4,12], index: 0, kind: input, shape index: {}]
  %s1 = inlined_call_operand.vmem [shape: f32[1,48], index: 1, kind: output, shape index: {}]
  $region1: #{tile.9} parent=0
    #allocation0 [shape = 'u8[4096]{0}', space=vmem, size = 0x1000, scoped, tag = 'scoped mem for output reshape']
    #allocation1 [shape = 'u8[4096]{0}', space=vmem, size = 0x1000, scoped, tag = 'scoped mem for input reshape']
    %s3 = ssub.s32 16, 1
    %v4 = vld [vmem:[%s0] sm:%s3]
    %5 = vst [vmem:[#allocation1] sm:%s3] %v4
    %v6 = vld [vmem:[#allocation1] sm:$0x1]
    %vm7 = vcmask 97280
    %8 = vst.msk [vmem:[#allocation0] sm:$0x1] %vm7, %v6
    %s9 = scalar_lea.vmem [#allocation1], 3
    %v10 = vld [vmem:[%s9] sm:$0x1]
    %11 = vrot.lane.b32.xlu0 %v10, 36
    %v12 = vpop.permute.xlu0 %11
    %vm13 = vcmask 392480
    %14 = vst.msk [vmem:[#allocation0] sm:$0x1] %vm13, %v12
    %s15 = scalar_lea.vmem [#allocation1], 2
    %v16 = vld [vmem:[%s15] sm:$0x1]
    %17 = vrot.lane.b32.xlu0 %v16, 24
    %v18 = vpop.permute.xlu0 %17
    %vm19 = vcmask 294080
    %20 = vst.msk [vmem:[#allocation0] sm:$0x1] %vm19, %v18
    %s21 = scalar_lea.vmem [#allocation1], 1
    %v22 = vld [vmem:[%s21] sm:$0x1]
    %23 = vrot.lane.b32.xlu0 %v22, 12
    %v24 = vpop.permute.xlu0 %23
    %vm25 = vcmask 195680
    %26 = vst.msk [vmem:[#allocation0] sm:$0x1] %vm25, %v24
    %s28 = ssub.s32 2, 1
    %v29 = vld [vmem:[#allocation0] sm:%s28]
    %s31 = ssub.s32 2, 1
    %32 = vst [vmem:[%s1] sm:%s31] %v29

// kernel: clip_image_preprocessor_forward.7
$region0: #{clip_image_preprocessor_forward.7}
  #allocation0 [shape = 'u32[]', space=smem, size = 0x4, offset = 0x4, fixed_abs, tag = 'smem constant byte address 0x4 - core index']
  #allocation1 [shape = 'u32[72,128]{1,0:T(1,128)}', space=vmem, size = 0x9000, scoped, tag = 'internal scratch']
  %s0 = inlined_call_operand.vmem [shape: f32[2,16,48], index: 0, kind: input, shape index: {}]
  %s1 = inlined_call_operand.vmem [shape: f32[48,48], index: 1, kind: input, shape index: {}]
  %s2 = inlined_call_operand.vmem [shape: f32[1,48], index: 2, kind: input, shape index: {}]
  %s3 = inlined_call_operand.vmem [shape: f32[2,16,48], index: 3, kind: output, shape index: {}]
  %s4 = sld [smem:[#allocation0]]
  $region45: #{clip_image_preprocessor_forward.7} parent=0
    _
  %s6 = ssub.s32 1, %s4
  %s7 = scalar_select 0, %s6, %s4
  loop: start=0, step=1, limit=4
  $region2: #{clip_image_preprocessor_forward.7} parent=0 // loop_pre_header
    _
  $region3: #{clip_image_preprocessor_forward.7} parent=0 // loop_header
    %s9 = sphi 0, %s13
    %p10 = scmp.ge.s32.totalorder %s9, 4
    %s16 = sphi 0, %s28
    %s17 = sphi 0, %s24
    %s18 = sphi 0, %s16
    %s19 = sphi 0, %s17
    %s20 = sphi 0, %s18
    %s21 = sphi 0, %s19
    %s33 = sphi 0, %s35
    %s36 = sphi 0, %s33
    %s37 = sphi 0, %s36
    %s53 = sphi 0, %s37
    %s57 = sphi 0, %s57
    %s59 = sphi 0, %s57
    %s60 = sphi 0, %s59
    %s74 = sphi 0, %s60
    %s78 = sphi 0, %s78
    %s80 = sphi 0, %s78
    %s81 = sphi 0, %s80
    %s95 = sphi 0, %s81
    %s103 = sphi 0, %s105
    %s106 = sphi 0, %s103
    %s107 = sphi 0, %s106
    %s123 = sphi 0, %s107
  $region4: #{clip_image_preprocessor_forward.7} parent=0 // loop_header_branch
    %12 = sbr.rel (%p10) target = $region8
  $region5: #{clip_image_preprocessor_forward.7} parent=0 // loop_body
    %s14 = ssub.s32 %s9, 1
    %s15 = ssub.s32 %s9, 2
    %s22 = sadd.s32 1, %s17
    %p23 = scmp.ge.s32.totalorder %s22, 1
    %s24 = scalar_select %p23, 0, %s22
    %s25 = sadd.s32 1, %s16
    %s26 = scalar_select %p23, %s25, %s16
    %p27 = scmp.ge.s32.totalorder %s26, 2
    %s28 = scalar_select %p27, 0, %s26
    %s29 = ssub.s32 %s16, %s28
    %s30 = ssub.s32 %s17, %s24
    %s31 = sor.u32 %s29, %s30
    %p32 = scmp.eq.s32.totalorder %s31, 0
    %s34 = sadd.s32 %s33, 1
    %s35 = scalar_select %p32, %s33, %s34
    %p38 = pneg %p32
    %p39 = scmp.eq.s32.totalorder %s9, 1
    %p40 = por %p38, %p39
    %p41 = scmp.ne.s32.totalorder %s33, %s36
    %p42 = scmp.eq.s32.totalorder %s9, 0
    %p43 = por %p41, %p42
    %p44 = scmp.ne.s32.totalorder %s33, %s36
    %p45 = scmp.eq.s32.totalorder %s14, 1
    %p46 = por %p44, %p45
    %p47 = scmp.ne.s32.totalorder %s36, %s37
    %p48 = scmp.eq.s32.totalorder %s14, 0
    %p49 = por %p47, %p48
    %p50 = scmp.ne.s32.totalorder %s36, %s37
    %p51 = scmp.eq.s32.totalorder %s15, 1
    %p52 = por %p50, %p51
    %p54 = scmp.ne.s32.totalorder %s37, %s53
    %p55 = scmp.eq.s32.totalorder %s15, 0
    %p56 = por %p54, %p55
    %s58 = sadd.s32 %s57, 1
    %p61 = scmp.eq.s32.totalorder %s9, 1
    %p62 = scmp.ne.s32.totalorder %s57, %s59
    %p63 = scmp.eq.s32.totalorder %s9, 0
    %p64 = por %p62, %p63
    %p65 = scmp.ne.s32.totalorder %s57, %s59
    %p66 = scmp.eq.s32.totalorder %s14, 1
    %p67 = por %p65, %p66
    %p68 = scmp.ne.s32.totalorder %s59, %s60
    %p69 = scmp.eq.s32.totalorder %s14, 0
    %p70 = por %p68, %p69
    %p71 = scmp.ne.s32.totalorder %s59, %s60
    %p72 = scmp.eq.s32.totalorder %s15, 1
    %p73 = por %p71, %p72
    %p75 = scmp.ne.s32.totalorder %s60, %s74
    %p76 = scmp.eq.s32.totalorder %s15, 0
    %p77 = por %p75, %p76
    %s79 = sadd.s32 %s78, 1
    %p82 = scmp.eq.s32.totalorder %s9, 1
    %p83 = scmp.ne.s32.totalorder %s78, %s80
    %p84 = scmp.eq.s32.totalorder %s9, 0
    %p85 = por %p83, %p84
    %p86 = scmp.ne.s32.totalorder %s78, %s80
    %p87 = scmp.eq.s32.totalorder %s14, 1
    %p88 = por %p86, %p87
    %p89 = scmp.ne.s32.totalorder %s80, %s81
    %p90 = scmp.eq.s32.totalorder %s14, 0
    %p91 = por %p89, %p90
    %p92 = scmp.ne.s32.totalorder %s80, %s81
    %p93 = scmp.eq.s32.totalorder %s15, 1
    %p94 = por %p92, %p93
    %p96 = scmp.ne.s32.totalorder %s81, %s95
    %p97 = scmp.eq.s32.totalorder %s15, 0
    %p98 = por %p96, %p97
    %s99 = ssub.s32 %s16, %s28
    %s100 = ssub.s32 %s17, %s24
    %s101 = sor.u32 %s99, %s100
    %p102 = scmp.eq.s32.totalorder %s101, 0
    %s104 = sadd.s32 %s103, 1
    %s105 = scalar_select %p102, %s103, %s104
    %p108 = pneg %p102
    %p109 = scmp.eq.s32.totalorder %s9, 1
    %p110 = por %p108, %p109
    %p111 = scmp.ne.s32.totalorder %s103, %s106
    %p112 = scmp.eq.s32.totalorder %s9, 0
    %p113 = por %p111, %p112
    %p114 = scmp.ne.s32.totalorder %s103, %s106
    %p115 = scmp.eq.s32.totalorder %s14, 1
    %p116 = por %p114, %p115
    %p117 = scmp.ne.s32.totalorder %s106, %s107
    %p118 = scmp.eq.s32.totalorder %s14, 0
    %p119 = por %p117, %p118
    %p120 = scmp.ne.s32.totalorder %s106, %s107
    %p121 = scmp.eq.s32.totalorder %s15, 1
    %p122 = por %p120, %p121
    %p124 = scmp.ne.s32.totalorder %s107, %s123
    %p125 = scmp.eq.s32.totalorder %s15, 0
    %p126 = por %p124, %p125
    %p127 = scmp.le.s32.totalorder 1, %s9
    %p128 = scmp.lt.s32.totalorder %s9, 3
    %p129 = pnand %p127, %p128
    %p130 = pneg %p129
    // Predicated region
    $region9: #{clip_image_preprocessor_forward.7} parent=5 // pred_check
      _
    $region10: #{clip_image_preprocessor_forward.7} parent=5 // pred_check_branch
      %132 = sbr.rel (%p129) target = $region12
    $region11: #{clip_image_preprocessor_forward.7} parent=5 // pred_region
      %s133 = ssub.s32 %s9, 1
      // Predicated region
      $region13: #{clip_image_preprocessor_forward.7} parent=11 // pred_check
        %p134 = pneg %p70
      $region14: #{clip_image_preprocessor_forward.7} parent=11 // pred_check_branch
        %136 = sbr.rel (%p134) target = $region16
      $region15: #{clip_image_preprocessor_forward.7} parent=11 // pred_region
        _
      $region16: #{clip_image_preprocessor_forward.7} parent=11 // pred_fallthru
        _
      // Predicated region
      $region17: #{clip_image_preprocessor_forward.7} parent=11 // pred_check
        %p137 = pneg %p91
      $region18: #{clip_image_preprocessor_forward.7} parent=11 // pred_check_branch
        %139 = sbr.rel (%p137) target = $region20
      $region19: #{clip_image_preprocessor_forward.7} parent=11 // pred_region
        _
      $region20: #{clip_image_preprocessor_forward.7} parent=11 // pred_fallthru
        _
    $region12: #{clip_image_preprocessor_forward.7} parent=5 // pred_fallthru
      _
    %p140 = scmp.lt.s32.totalorder %s9, 2
    // Predicated region
    $region21: #{clip_image_preprocessor_forward.7} parent=5 // pred_check
      %p141 = pneg %p140
    $region22: #{clip_image_preprocessor_forward.7} parent=5 // pred_check_branch
      %143 = sbr.rel (%p141) target = $region24
    $region23: #{clip_image_preprocessor_forward.7} parent=5 // pred_region
      // Predicated region
      $region25: #{clip_image_preprocessor_forward.7} parent=23 // pred_check
        %p144 = pneg %p43
      $region26: #{clip_image_preprocessor_forward.7} parent=23 // pred_check_branch
        %146 = sbr.rel (%p144) target = $region28
      $region27: #{clip_image_preprocessor_forward.7} parent=23 // pred_region
        %s147 = smul.u32 2, %s17
        %p148 = scmp.lt.s32.totalorder %s16, 1
        %s149 = scalar_select %p148, %s16, 1
        %p150 = scmp.lt.s32.totalorder %s147, 1
        %s151 = scalar_select %p150, %s147, 1
        %s152 = smul.addr %s149, 2
        %s153 = sadd.s32 %s151, %s152
        %s154 = smul.addr %s153, 8
        %s155 = scalar_lea.vmem %s0, %s154
        %s156 = smul.u32 2, %s17
      $region28: #{clip_image_preprocessor_forward.7} parent=23 // pred_fallthru
        _
    $region24: #{clip_image_preprocessor_forward.7} parent=5 // pred_fallthru
      _
    %p157 = scmp.le.s32.totalorder 1, %s9
    %p158 = scmp.lt.s32.totalorder %s9, 3
    %p159 = pnand %p157, %p158
    %p160 = pneg %p159
    // Predicated region
    $region29: #{clip_image_preprocessor_forward.7} parent=5 // pred_check
      _
    $region30: #{clip_image_preprocessor_forward.7} parent=5 // pred_check_branch
      %162 = sbr.rel (%p159) target = $region32
    $region31: #{clip_image_preprocessor_forward.7} parent=5 // pred_region
      %s163 = ssub.s32 %s9, 1
      %s164 = smul.u32 2, %s19
      %p165 = scmp.lt.s32.totalorder %s18, 1
      %s166 = scalar_select %p165, %s18, 1
      %p167 = scmp.lt.s32.totalorder %s164, 1
      %s168 = scalar_select %p167, %s164, 1
      %s169 = smul.addr %s166, 2
      %s170 = sadd.s32 %s168, %s169
      %s171 = smul.addr %s170, 8
      %s172 = scalar_lea.vmem %s0, %s171
      %p173 = pneg %p49
      %p174 = pneg %p46
      %p175 = pneg %p70
      %p176 = pneg %p67
      %p177 = pneg %p91
      %p178 = pneg %p88
      %p179 = pneg %p119
      %p180 = pneg %p116
      %s181 = smul.u32 2, %s19
      %p182 = scmp.lt.s32.totalorder %s18, 1
      %s183 = scalar_select %p182, %s18, 1
      %p184 = scmp.lt.s32.totalorder %s181, 1
      %s185 = scalar_select %p184, %s181, 1
      %s186 = smul.addr %s183, 2
      %s187 = sadd.s32 %s185, %s186
      %s188 = smul.addr %s187, 8
      %s189 = scalar_lea.vmem %s3, %s188
      %s190 = smul.u32 2, %s19
      %p191 = scmp.lt.s32.totalorder %s18, 1
      %s192 = scalar_select %p191, %s18, 1
      %p193 = scmp.lt.s32.totalorder %s190, 1
      %s194 = scalar_select %p193, %s190, 1
      %s195 = smul.addr %s192, 2
      %s196 = sadd.s32 %s194, %s195
      %s197 = smul.addr %s196, 8
      %s198 = scalar_lea.vmem %s0, %s197
      %s199 = smul.u32 2, %s19
      %s200 = smul.u32 2, %s19
      %p201 = scmp.lt.s32.totalorder %s18, 1
      %s202 = scalar_select %p201, %s18, 1
      %p203 = scmp.lt.s32.totalorder %s200, 1
      %s204 = scalar_select %p203, %s200, 1
      %s205 = smul.addr %s202, 2
      %s206 = sadd.s32 %s204, %s205
      %s207 = smul.addr %s206, 8
      %s208 = scalar_lea.vmem %s3, %s207
      %s209 = smul.u32 2, %s19
      %v210 = vld [vmem:[%s198] sm:$0xff]
      %v211 = vld [vmem:[%s198 + $0x8] sm:$0xff]
      %v212 = vld [vmem:[%s1] sm:$0xff]
      %v213 = vld [vmem:[%s1 + $0x8] sm:$0xff]
      %v214 = vld [vmem:[%s1 + $0x10] sm:$0xff]
      %v215 = vld [vmem:[%s1 + $0x18] sm:$0xff]
      %v216 = vld [vmem:[%s1 + $0x20] sm:$0xff]
      %v217 = vld [vmem:[%s1 + $0x28] sm:$0xff]
      %v218 = vld [vmem:[%s2] sm:$0x1]
      %v220 = vperm.slane %v218, 0
      %vm222 = vcmask 392192
      %v224 = vsel %vm222, %v210, 0
      %v227 = vsel %vm222, %v211, 0
      %229 = vmatpush.msra.mxu0 0.0
      %230 = vmatpush.msra.mxu0 0.0
      %231 = vmatpush.msra.mxu0 0.0
      %232 = vmatpush.msra.mxu0 0.0
      %233 = vmatpush.msra.mxu0 0.0
      %234 = vmatpush.msra.mxu0 0.0
      %235 = vmatpush.msra.mxu0 0.0
      %236 = vmatpush.msra.mxu0 0.0
      %237 = vmatpush.msra.mxu0 0.0
      %238 = vmatpush.msra.mxu0 0.0
      %239 = vmatpush.msra.mxu0 %v217
      %240 = vmatpush.msra.mxu0 %v216
      %241 = vmatpush.msra.mxu0 %v215
      %242 = vmatpush.msra.mxu0 %v214
      %243 = vmatpush.msra.mxu0 %v213
      %244 = vmatpush.msra.mxu0 %v212
      %245 = vmatmul.f32.gmra.mxu0 %v224
      %v246 = vpop.f32.mrf.mxu0
      %v247 = vadd.f32 %v220, %v246
      %248 = vmatmul.f32.gmra.mxu0 %v227
      %v249 = vpop.f32.mrf.mxu0
      %v250 = vadd.f32 %v220, %v249
      %251 = vdwg.mxu0
      %v252 = vmul.f32 %v247, 0.5
      %v253 = vmul.f32 %v250, 0.5
      %v254 = vmul.f32 %v247, 0.70710677
      %v255 = vmul.f32 %v250, 0.70710677
      %vm256 = vcmp.ge.f32.partialorder %v254, 0.0
      %vm257 = vcmp.ge.f32.partialorder %v255, 0.0
      %v258 = vsel %vm256, 1.0, -1.0
      %v259 = vsel %vm257, 1.0, -1.0
      %v260 = vand.u32 2147483647, %v254
      %v261 = vand.u32 2147483647, %v255
      %v262 = vmul.f32 %v260, 0.3275911
      %v263 = vmul.f32 %v261, 0.3275911
      %v264 = vadd.f32 %v262, 1.0
      %v265 = vadd.f32 %v263, 1.0
      %v266 = vrcp.pop %v264
      %v267 = vmul.f32 %v264, %v266
      %v268 = vsub.f32 1.0, %v267
      %v269 = vmul.f32 %v266, %v268
      %v270 = vadd.f32 %v266, %v269
      %vm271 = vweird.f32 %v264
      %vm272 = vweird.f32 %v266
      %vm273 = vmor %vm271, %vm272
      %v274 = vsel %vm273, %v266, %v270
      %v275 = vand.u32 2147483647, %v264
      %vm276 = vcmp.eq.f32.partialorder %v275, 8.507059e+37
      %v277 = vand.u32 %v264, 2147483648
      %v278 = vor.u32 1.1754944e-38, %v277
      %v279 = vsel %vm276, %v278, %v274
      %v280 = vmul.f32 1.0, %v279
      %v281 = vrcp.pop %v265
      %v282 = vmul.f32 %v265, %v281
      %v283 = vsub.f32 1.0, %v282
      %v284 = vmul.f32 %v281, %v283
      %v285 = vadd.f32 %v281, %v284
      %vm286 = vweird.f32 %v265
      %vm287 = vweird.f32 %v281
      %vm288 = vmor %vm286, %vm287
      %v289 = vsel %vm288, %v281, %v285
      %v290 = vand.u32 2147483647, %v265
      %vm291 = vcmp.eq.f32.partialorder %v290, 8.507059e+37
      %v292 = vand.u32 %v265, 2147483648
      %v293 = vor.u32 1.1754944e-38, %v292
      %v294 = vsel %vm291, %v293, %v289
      %v295 = vmul.f32 1.0, %v294
      %v296 = vmul.f32 %v280, 1.0614054
      %v297 = vmul.f32 %v295, 1.0614054
      %v298 = vadd.f32 %v296, -1.4531521
      %v299 = vadd.f32 %v297, -1.4531521
      %v300 = vmul.f32 %v280, %v298
      %v301 = vmul.f32 %v295, %v299
      %v302 = vadd.f32 %v300, 1.4214138
      %v303 = vadd.f32 %v301, 1.4214138
      %v304 = vmul.f32 %v280, %v302
      %v305 = vmul.f32 %v295, %v303
      %v306 = vadd.f32 %v304, -0.28449672
      %v307 = vadd.f32 %v305, -0.28449672
      %v308 = vmul.f32 %v280, %v306
      %v309 = vmul.f32 %v295, %v307
      %v310 = vadd.f32 %v308, 0.2548296
      %v311 = vadd.f32 %v309, 0.2548296
      %v312 = vmul.f32 %v280, %v310
      %v313 = vmul.f32 %v295, %v311
      %v314 = vsub.f32 0.0, %v260
      %v315 = vsub.f32 0.0, %v261
      %v316 = vmul.f32 %v314, %v260
      %v317 = vmul.f32 %v315, %v261
      %v318 = vmul.f32 %v316, 1.442695
      %v319 = vpow.pop %v318
      %v320 = vmul.f32 %v317, 1.442695
      %v321 = vpow.pop %v320
      %v322 = vmul.f32 %v312, %v319
      %v323 = vmul.f32 %v313, %v321
      %v324 = vsub.f32 1.0, %v322
      %v325 = vsub.f32 1.0, %v323
      %v326 = vmul.f32 %v258, %v324
      %v327 = vmul.f32 %v259, %v325
      %v328 = vadd.f32 %v326, 1.0
      %v329 = vadd.f32 %v327, 1.0
      %v330 = vmul.f32 %v252, %v328
      %v331 = vmul.f32 %v253, %v329
      %332 = vst.msk [vmem:[%s208] sm:$0xff] %vm222, %v330
      %333 = vst.msk [vmem:[%s208 + $0x8] sm:$0xff] %vm222, %v331
      %s334 = smul.u32 2, %s19
      %p335 = scmp.lt.s32.totalorder %s18, 1
      %s336 = scalar_select %p335, %s18, 1
      %p337 = scmp.lt.s32.totalorder %s334, 1
      %s338 = scalar_select %p337, %s334, 1
      %s339 = smul.addr %s336, 2
      %s340 = sadd.s32 %s338, %s339
      %s341 = smul.addr %s340, 8
      %s342 = scalar_lea.vmem %s3, %s341
      // Predicated region
      $region33: #{clip_image_preprocessor_forward.7} parent=31 // pred_check
        %p343 = pneg %p116
      $region34: #{clip_image_preprocessor_forward.7} parent=31 // pred_check_branch
        %345 = sbr.rel (%p343) target = $region36
      $region35: #{clip_image_preprocessor_forward.7} parent=31 // pred_region
        %s346 = smul.u32 2, %s19
      $region36: #{clip_image_preprocessor_forward.7} parent=31 // pred_fallthru
        _
    $region32: #{clip_image_preprocessor_forward.7} parent=5 // pred_fallthru
      _
    %p347 = scmp.le.s32.totalorder 2, %s9
    // Predicated region
    $region37: #{clip_image_preprocessor_forward.7} parent=5 // pred_check
      %p348 = pneg %p347
    $region38: #{clip_image_preprocessor_forward.7} parent=5 // pred_check_branch
      %350 = sbr.rel (%p348) target = $region40
    $region39: #{clip_image_preprocessor_forward.7} parent=5 // pred_region
      %s351 = ssub.s32 %s9, 2
      // Predicated region
      $region41: #{clip_image_preprocessor_forward.7} parent=39 // pred_check
        %p352 = pneg %p122
      $region42: #{clip_image_preprocessor_forward.7} parent=39 // pred_check_branch
        %354 = sbr.rel (%p352) target = $region44
      $region43: #{clip_image_preprocessor_forward.7} parent=39 // pred_region
        %s355 = smul.u32 2, %s21
        %p356 = scmp.lt.s32.totalorder %s20, 1
        %s357 = scalar_select %p356, %s20, 1
        %p358 = scmp.lt.s32.totalorder %s355, 1
        %s359 = scalar_select %p358, %s355, 1
        %s360 = smul.addr %s357, 2
        %s361 = sadd.s32 %s359, %s360
        %s362 = smul.addr %s361, 8
        %s363 = scalar_lea.vmem %s3, %s362
      $region44: #{clip_image_preprocessor_forward.7} parent=39 // pred_fallthru
        _
    $region40: #{clip_image_preprocessor_forward.7} parent=5 // pred_fallthru
      _
  $region6: #{clip_image_preprocessor_forward.7} parent=0 // loop_footer
    %s13 = sadd.s32 1, %s9
  $region7: #{clip_image_preprocessor_forward.7} parent=0 // loop_footer_branch
    %8 = sbr.rel target = $region3
  $region8: #{clip_image_preprocessor_forward.7} parent=0 // loop_exit
    _

// kernel: clip_image_preprocessor_forward.5
$region0: #{clip_image_preprocessor_forward.5}
  #allocation0 [shape = 'u32[]', space=smem, size = 0x4, offset = 0x4, fixed_abs, tag = 'smem constant byte address 0x4 - core index']
  #allocation1 [shape = 'u32[72,128]{1,0:T(1,128)}', space=vmem, size = 0x9000, scoped, tag = 'internal scratch']
  %s0 = inlined_call_operand.vmem [shape: f32[2,1,26,48], index: 0, kind: input, shape index: {}]
  %s1 = inlined_call_operand.vmem [shape: f32[3,144,48], index: 1, kind: input, shape index: {}]
  %s2 = inlined_call_operand.vmem [shape: f32[1,48], index: 2, kind: input, shape index: {}]
  %s3 = inlined_call_operand.vmem [shape: f32[2,16,48], index: 3, kind: output, shape index: {}]
  %s4 = sld [smem:[#allocation0]]
  $region45: #{clip_image_preprocessor_forward.5} parent=0
    _
  %s6 = ssub.s32 1, %s4
  %s7 = scalar_select 0, %s6, %s4
  loop: start=0, step=1, limit=4
  $region2: #{clip_image_preprocessor_forward.5} parent=0 // loop_pre_header
    _
  $region3: #{clip_image_preprocessor_forward.5} parent=0 // loop_header
    %s9 = sphi 0, %s13
    %p10 = scmp.ge.s32.totalorder %s9, 4
    %s16 = sphi 0, %s28
    %s17 = sphi 0, %s24
    %s18 = sphi 0, %s16
    %s19 = sphi 0, %s17
    %s20 = sphi 0, %s18
    %s21 = sphi 0, %s19
    %s33 = sphi 0, %s35
    %s36 = sphi 0, %s33
    %s37 = sphi 0, %s36
    %s53 = sphi 0, %s37
    %s57 = sphi 0, %s57
    %s59 = sphi 0, %s57
    %s60 = sphi 0, %s59
    %s74 = sphi 0, %s60
    %s78 = sphi 0, %s78
    %s80 = sphi 0, %s78
    %s81 = sphi 0, %s80
    %s95 = sphi 0, %s81
    %s103 = sphi 0, %s105
    %s106 = sphi 0, %s103
    %s107 = sphi 0, %s106
    %s123 = sphi 0, %s107
  $region4: #{clip_image_preprocessor_forward.5} parent=0 // loop_header_branch
    %12 = sbr.rel (%p10) target = $region8
  $region5: #{clip_image_preprocessor_forward.5} parent=0 // loop_body
    %s14 = ssub.s32 %s9, 1
    %s15 = ssub.s32 %s9, 2
    %s22 = sadd.s32 1, %s17
    %p23 = scmp.ge.s32.totalorder %s22, 1
    %s24 = scalar_select %p23, 0, %s22
    %s25 = sadd.s32 1, %s16
    %s26 = scalar_select %p23, %s25, %s16
    %p27 = scmp.ge.s32.totalorder %s26, 2
    %s28 = scalar_select %p27, 0, %s26
    %s29 = ssub.s32 %s16, %s28
    %s30 = ssub.s32 %s17, %s24
    %s31 = sor.u32 %s29, %s30
    %p32 = scmp.eq.s32.totalorder %s31, 0
    %s34 = sadd.s32 %s33, 1
    %s35 = scalar_select %p32, %s33, %s34
    %p38 = pneg %p32
    %p39 = scmp.eq.s32.totalorder %s9, 1
    %p40 = por %p38, %p39
    %p41 = scmp.ne.s32.totalorder %s33, %s36
    %p42 = scmp.eq.s32.totalorder %s9, 0
    %p43 = por %p41, %p42
    %p44 = scmp.ne.s32.totalorder %s33, %s36
    %p45 = scmp.eq.s32.totalorder %s14, 1
    %p46 = por %p44, %p45
    %p47 = scmp.ne.s32.totalorder %s36, %s37
    %p48 = scmp.eq.s32.totalorder %s14, 0
    %p49 = por %p47, %p48
    %p50 = scmp.ne.s32.totalorder %s36, %s37
    %p51 = scmp.eq.s32.totalorder %s15, 1
    %p52 = por %p50, %p51
    %p54 = scmp.ne.s32.totalorder %s37, %s53
    %p55 = scmp.eq.s32.totalorder %s15, 0
    %p56 = por %p54, %p55
    %s58 = sadd.s32 %s57, 1
    %p61 = scmp.eq.s32.totalorder %s9, 1
    %p62 = scmp.ne.s32.totalorder %s57, %s59
    %p63 = scmp.eq.s32.totalorder %s9, 0
    %p64 = por %p62, %p63
    %p65 = scmp.ne.s32.totalorder %s57, %s59
    %p66 = scmp.eq.s32.totalorder %s14, 1
    %p67 = por %p65, %p66
    %p68 = scmp.ne.s32.totalorder %s59, %s60
    %p69 = scmp.eq.s32.totalorder %s14, 0
    %p70 = por %p68, %p69
    %p71 = scmp.ne.s32.totalorder %s59, %s60
    %p72 = scmp.eq.s32.totalorder %s15, 1
    %p73 = por %p71, %p72
    %p75 = scmp.ne.s32.totalorder %s60, %s74
    %p76 = scmp.eq.s32.totalorder %s15, 0
    %p77 = por %p75, %p76
    %s79 = sadd.s32 %s78, 1
    %p82 = scmp.eq.s32.totalorder %s9, 1
    %p83 = scmp.ne.s32.totalorder %s78, %s80
    %p84 = scmp.eq.s32.totalorder %s9, 0
    %p85 = por %p83, %p84
    %p86 = scmp.ne.s32.totalorder %s78, %s80
    %p87 = scmp.eq.s32.totalorder %s14, 1
    %p88 = por %p86, %p87
    %p89 = scmp.ne.s32.totalorder %s80, %s81
    %p90 = scmp.eq.s32.totalorder %s14, 0
    %p91 = por %p89, %p90
    %p92 = scmp.ne.s32.totalorder %s80, %s81
    %p93 = scmp.eq.s32.totalorder %s15, 1
    %p94 = por %p92, %p93
    %p96 = scmp.ne.s32.totalorder %s81, %s95
    %p97 = scmp.eq.s32.totalorder %s15, 0
    %p98 = por %p96, %p97
    %s99 = ssub.s32 %s16, %s28
    %s100 = ssub.s32 %s17, %s24
    %s101 = sor.u32 %s99, %s100
    %p102 = scmp.eq.s32.totalorder %s101, 0
    %s104 = sadd.s32 %s103, 1
    %s105 = scalar_select %p102, %s103, %s104
    %p108 = pneg %p102
    %p109 = scmp.eq.s32.totalorder %s9, 1
    %p110 = por %p108, %p109
    %p111 = scmp.ne.s32.totalorder %s103, %s106
    %p112 = scmp.eq.s32.totalorder %s9, 0
    %p113 = por %p111, %p112
    %p114 = scmp.ne.s32.totalorder %s103, %s106
    %p115 = scmp.eq.s32.totalorder %s14, 1
    %p116 = por %p114, %p115
    %p117 = scmp.ne.s32.totalorder %s106, %s107
    %p118 = scmp.eq.s32.totalorder %s14, 0
    %p119 = por %p117, %p118
    %p120 = scmp.ne.s32.totalorder %s106, %s107
    %p121 = scmp.eq.s32.totalorder %s15, 1
    %p122 = por %p120, %p121
    %p124 = scmp.ne.s32.totalorder %s107, %s123
    %p125 = scmp.eq.s32.totalorder %s15, 0
    %p126 = por %p124, %p125
    %p127 = scmp.le.s32.totalorder 1, %s9
    %p128 = scmp.lt.s32.totalorder %s9, 3
    %p129 = pnand %p127, %p128
    %p130 = pneg %p129
    // Predicated region
    $region9: #{clip_image_preprocessor_forward.5} parent=5 // pred_check
      _
    $region10: #{clip_image_preprocessor_forward.5} parent=5 // pred_check_branch
      %132 = sbr.rel (%p129) target = $region12
    $region11: #{clip_image_preprocessor_forward.5} parent=5 // pred_region
      %s133 = ssub.s32 %s9, 1
      // Predicated region
      $region13: #{clip_image_preprocessor_forward.5} parent=11 // pred_check
        %p134 = pneg %p70
      $region14: #{clip_image_preprocessor_forward.5} parent=11 // pred_check_branch
        %136 = sbr.rel (%p134) target = $region16
      $region15: #{clip_image_preprocessor_forward.5} parent=11 // pred_region
        _
      $region16: #{clip_image_preprocessor_forward.5} parent=11 // pred_fallthru
        _
      // Predicated region
      $region17: #{clip_image_preprocessor_forward.5} parent=11 // pred_check
        %p137 = pneg %p91
      $region18: #{clip_image_preprocessor_forward.5} parent=11 // pred_check_branch
        %139 = sbr.rel (%p137) target = $region20
      $region19: #{clip_image_preprocessor_forward.5} parent=11 // pred_region
        _
      $region20: #{clip_image_preprocessor_forward.5} parent=11 // pred_fallthru
        _
    $region12: #{clip_image_preprocessor_forward.5} parent=5 // pred_fallthru
      _
    %p140 = scmp.lt.s32.totalorder %s9, 2
    // Predicated region
    $region21: #{clip_image_preprocessor_forward.5} parent=5 // pred_check
      %p141 = pneg %p140
    $region22: #{clip_image_preprocessor_forward.5} parent=5 // pred_check_branch
      %143 = sbr.rel (%p141) target = $region24
    $region23: #{clip_image_preprocessor_forward.5} parent=5 // pred_region
      // Predicated region
      $region25: #{clip_image_preprocessor_forward.5} parent=23 // pred_check
        %p144 = pneg %p43
      $region26: #{clip_image_preprocessor_forward.5} parent=23 // pred_check_branch
        %146 = sbr.rel (%p144) target = $region28
      $region27: #{clip_image_preprocessor_forward.5} parent=23 // pred_region
        %p147 = scmp.lt.s32.totalorder %s16, 1
        %s148 = scalar_select %p147, %s16, 1
        %p149 = scmp.lt.s32.totalorder %s17, 0
        %s150 = scalar_select %p149, %s17, 0
        %s151 = smul.addr %s150, 4
        %s152 = smul.addr %s148, 4
        %s153 = sadd.s32 %s151, %s152
        %s154 = smul.addr %s153, 8
        %s155 = scalar_lea.vmem %s0, %s154
      $region28: #{clip_image_preprocessor_forward.5} parent=23 // pred_fallthru
        _
    $region24: #{clip_image_preprocessor_forward.5} parent=5 // pred_fallthru
      _
    %p156 = scmp.le.s32.totalorder 1, %s9
    %p157 = scmp.lt.s32.totalorder %s9, 3
    %p158 = pnand %p156, %p157
    %p159 = pneg %p158
    // Predicated region
    $region29: #{clip_image_preprocessor_forward.5} parent=5 // pred_check
      _
    $region30: #{clip_image_preprocessor_forward.5} parent=5 // pred_check_branch
      %161 = sbr.rel (%p158) target = $region32
    $region31: #{clip_image_preprocessor_forward.5} parent=5 // pred_region
      %s162 = ssub.s32 %s9, 1
      %p163 = scmp.lt.s32.totalorder %s18, 1
      %s164 = scalar_select %p163, %s18, 1
      %p165 = scmp.lt.s32.totalorder %s19, 0
      %s166 = scalar_select %p165, %s19, 0
      %s167 = smul.addr %s166, 4
      %s168 = smul.addr %s164, 4
      %s169 = sadd.s32 %s167, %s168
      %s170 = smul.addr %s169, 8
      %s171 = scalar_lea.vmem %s0, %s170
      %p172 = pneg %p49
      %p173 = pneg %p46
      %p174 = pneg %p70
      %p175 = pneg %p67
      %p176 = pneg %p91
      %p177 = pneg %p88
      %p178 = pneg %p119
      %p179 = pneg %p116
      %s180 = smul.u32 2, %s19
      %p181 = scmp.lt.s32.totalorder %s18, 1
      %s182 = scalar_select %p181, %s18, 1
      %p183 = scmp.lt.s32.totalorder %s180, 1
      %s184 = scalar_select %p183, %s180, 1
      %s185 = smul.addr %s182, 2
      %s186 = sadd.s32 %s184, %s185
      %s187 = smul.addr %s186, 8
      %s188 = scalar_lea.vmem %s3, %s187
      %p189 = scmp.lt.s32.totalorder %s18, 1
      %s190 = scalar_select %p189, %s18, 1
      %p191 = scmp.lt.s32.totalorder %s19, 0
      %s192 = scalar_select %p191, %s19, 0
      %s193 = smul.addr %s192, 4
      %s194 = smul.addr %s190, 4
      %s195 = sadd.s32 %s193, %s194
      %s196 = smul.addr %s195, 8
      %s197 = scalar_lea.vmem %s0, %s196
      %s198 = smul.u32 2, %s19
      %p199 = scmp.lt.s32.totalorder %s18, 1
      %s200 = scalar_select %p199, %s18, 1
      %p201 = scmp.lt.s32.totalorder %s198, 1
      %s202 = scalar_select %p201, %s198, 1
      %s203 = smul.addr %s200, 2
      %s204 = sadd.s32 %s202, %s203
      %s205 = smul.addr %s204, 8
      %s206 = scalar_lea.vmem %s3, %s205
      %s207 = smul.u32 2, %s19
      %v208 = vlaneseq
      %v209 = vshrl.u32 %v208, 7
      %v210 = vadd.s32 %v209, 8
      %v211 = vadd.s32 %v209, 16
      %vm212 = vcmp.lt.s32.totalorder %v209, 0
      %v213 = vsub.s32 0, %v209
      %v214 = vsel %vm212, %v213, %v209
      %v215 = vshrl.u32 %v214, 2
      %v216 = vand.u32 %v214, 3
      %v217 = vsub.s32 0, %v216
      %v218 = vsel %vm212, %v217, %v216
      %vm219 = vcmp.lt.s32.totalorder %v210, 0
      %v220 = vsub.s32 0, %v210
      %v221 = vsel %vm219, %v220, %v210
      %v222 = vshrl.u32 %v221, 2
      %v223 = vand.u32 %v221, 3
      %v224 = vsub.s32 0, %v223
      %v225 = vsel %vm219, %v224, %v223
      %vm226 = vcmp.lt.s32.totalorder %v211, 0
      %v227 = vsub.s32 0, %v211
      %v228 = vsel %vm226, %v227, %v211
      %v229 = vshrl.u32 %v228, 2
      %v230 = vand.u32 %v228, 3
      %v231 = vsub.s32 0, %v230
      %v232 = vsel %vm226, %v231, %v230
      %vm233 = vcmp.ne.s32.totalorder %v218, 0
      %vm234 = vcmp.ne.s32.totalorder %v225, 0
      %vm235 = vcmp.ne.s32.totalorder %v232, 0
      %vm236 = vcmp.lt.s32.totalorder %v218, 0
      %vm237 = vcmp.lt.s32.totalorder %v225, 0
      %vm238 = vcmp.lt.s32.totalorder %v232, 0
      %vm239 = vmand %vm236, %vm233
      %vm240 = vmand %vm237, %vm234
      %vm241 = vmand %vm238, %vm235
      %v242 = vadd.s32 %v218, 4
      %v243 = vadd.s32 %v225, 4
      %v244 = vadd.s32 %v232, 4
      %v245 = vsel %vm239, %v242, %v218
      %v246 = vsel %vm240, %v243, %v225
      %v247 = vsel %vm241, %v244, %v232
      %v248 = vld [vmem:[%s197] sm:$0xff]
      %v249 = vld [vmem:[%s197 + $0x8] sm:$0xff]
      %v250 = vld [vmem:[%s197 + $0x10] sm:$0xff]
      %vm251 = vcmp.gt.s32.totalorder %v245, 0
      %vm252 = vcmp.gt.s32.totalorder %v246, 0
      %vm253 = vcmp.gt.s32.totalorder %v247, 0
      %v254 = vsel %vm251, 1, 0
      %v255 = vsel %vm252, 1, 0
      %v256 = vsel %vm253, 1, 0
      %v257 = vcvt.s32.f32 %v254
      %v258 = vcvt.s32.f32 %v255
      %v259 = vcvt.s32.f32 %v256
      %v260 = vmul.f32 %v248, %v257
      %v261 = vmul.f32 %v249, %v258
      %v262 = vmul.f32 %v250, %v259
      %vm266 = vcmask 1043456
      %v267 = vrot.slane %v260, 4
      %v268 = vrot.slane %v261, 4
      %v269 = vsel %vm266, %v267, %v268
      %v270 = vrot.slane %v262, 4
      %v271 = vsel %vm266, %v268, %v270
      %272 = vrot.lane.b32.xlu0 %v269, 48
      %v273 = vpop.permute.xlu0 %272
      %274 = vrot.lane.b32.xlu0 %v271, 48
      %v275 = vpop.permute.xlu0 %274
      %278 = vrot.lane.b32.xlu0 %v261, 96
      %v279 = vpop.permute.xlu0 %278
      %280 = vrot.lane.b32.xlu0 %v262, 96
      %v281 = vpop.permute.xlu0 %280
      %vm284 = vcmask 392192
      %v285 = vsel %vm284, %v260, %v273
      %v286 = vsel %vm284, %v261, %v275
      %vm287 = vcmask 785408
      %v288 = vsel %vm287, %v285, %v279
      %v289 = vsel %vm287, %v286, %v281
      %v290 = vld [vmem:[%s1] sm:$0xff]
      %v291 = vld [vmem:[%s1 + $0x8] sm:$0xff]
      %v292 = vld [vmem:[%s1 + $0x10] sm:$0xff]
      %v293 = vld [vmem:[%s1 + $0x18] sm:$0xff]
      %v294 = vld [vmem:[%s1 + $0x20] sm:$0xff]
      %v295 = vld [vmem:[%s1 + $0x28] sm:$0xff]
      %v296 = vld [vmem:[%s1 + $0x30] sm:$0xff]
      %v297 = vld [vmem:[%s1 + $0x38] sm:$0xff]
      %v298 = vld [vmem:[%s1 + $0x40] sm:$0xff]
      %v299 = vld [vmem:[%s1 + $0x48] sm:$0xff]
      %v300 = vld [vmem:[%s1 + $0x50] sm:$0xff]
      %v301 = vld [vmem:[%s1 + $0x58] sm:$0xff]
      %v302 = vld [vmem:[%s1 + $0x60] sm:$0xff]
      %v303 = vld [vmem:[%s1 + $0x68] sm:$0xff]
      %v304 = vld [vmem:[%s1 + $0x70] sm:$0xff]
      %v305 = vld [vmem:[%s1 + $0x78] sm:$0xff]
      %v306 = vld [vmem:[%s1 + $0x80] sm:$0xff]
      %v307 = vld [vmem:[%s1 + $0x88] sm:$0xff]
      %v308 = vld [vmem:[%s197 + $0x1] sm:$0xff]
      %v309 = vld [vmem:[%s197 + $0x9] sm:$0xff]
      %v310 = vld [vmem:[%s197 + $0x11] sm:$0xff]
      %v314 = vrot.slane %v308, 4
      %v315 = vrot.slane %v309, 4
      %v316 = vsel %vm266, %v314, %v315
      %v317 = vrot.slane %v310, 4
      %v318 = vsel %vm266, %v315, %v317
      %319 = vrot.lane.b32.xlu0 %v316, 48
      %v320 = vpop.permute.xlu0 %319
      %321 = vrot.lane.b32.xlu0 %v318, 48
      %v322 = vpop.permute.xlu0 %321
      %325 = vrot.lane.b32.xlu0 %v309, 96
      %v326 = vpop.permute.xlu0 %325
      %327 = vrot.lane.b32.xlu0 %v310, 96
      %v328 = vpop.permute.xlu0 %327
      %v331 = vsel %vm284, %v308, %v320
      %v332 = vsel %vm284, %v309, %v322
      %v333 = vsel %vm287, %v331, %v326
      %v334 = vsel %vm287, %v332, %v328
      %s335 = scalar_lea.vmem %s1, 144
      %v336 = vld [vmem:[%s335] sm:$0xff]
      %v337 = vld [vmem:[%s335 + $0x8] sm:$0xff]
      %v338 = vld [vmem:[%s335 + $0x10] sm:$0xff]
      %v339 = vld [vmem:[%s335 + $0x18] sm:$0xff]
      %v340 = vld [vmem:[%s335 + $0x20] sm:$0xff]
      %v341 = vld [vmem:[%s335 + $0x28] sm:$0xff]
      %v342 = vld [vmem:[%s335 + $0x30] sm:$0xff]
      %v343 = vld [vmem:[%s335 + $0x38] sm:$0xff]
      %v344 = vld [vmem:[%s335 + $0x40] sm:$0xff]
      %v345 = vld [vmem:[%s335 + $0x48] sm:$0xff]
      %v346 = vld [vmem:[%s335 + $0x50] sm:$0xff]
      %v347 = vld [vmem:[%s335 + $0x58] sm:$0xff]
      %v348 = vld [vmem:[%s335 + $0x60] sm:$0xff]
      %v349 = vld [vmem:[%s335 + $0x68] sm:$0xff]
      %v350 = vld [vmem:[%s335 + $0x70] sm:$0xff]
      %v351 = vld [vmem:[%s335 + $0x78] sm:$0xff]
      %v352 = vld [vmem:[%s335 + $0x80] sm:$0xff]
      %v353 = vld [vmem:[%s335 + $0x88] sm:$0xff]
      %vm354 = vcmask 130048
      %v355 = vsel %vm354, %v326, 0
      %v357 = vsel %vm354, %v328, 0
      %359 = vmatpush.msra.mxu0 %v351
      %360 = vmatpush.msra.mxu0 %v350
      %361 = vmatpush.msra.mxu0 %v349
      %362 = vmatpush.msra.mxu0 %v348
      %363 = vmatpush.msra.mxu0 %v347
      %364 = vmatpush.msra.mxu0 %v346
      %365 = vmatpush.msra.mxu0 %v345
      %366 = vmatpush.msra.mxu0 %v344
      %367 = vmatpush.msra.mxu0 %v343
      %368 = vmatpush.msra.mxu0 %v342
      %369 = vmatpush.msra.mxu0 %v341
      %370 = vmatpush.msra.mxu0 %v340
      %371 = vmatpush.msra.mxu0 %v339
      %372 = vmatpush.msra.mxu0 %v338
      %373 = vmatpush.msra.mxu0 %v337
      %374 = vmatpush.msra.mxu0 %v336
      %375 = vmatmul.f32.gmra.mxu0 %v333
      %v376 = vpop.f32.mrf.mxu0
      %v377 = vadd.f32 0.0, %v376
      %378 = vmatmul.f32.gmra.mxu0 %v334
      %v379 = vpop.f32.mrf.mxu0
      %v380 = vadd.f32 0.0, %v379
      %381 = vdwg.mxu0
      %382 = vmatpush.msra.mxu0 0.0
      %383 = vmatpush.msra.mxu0 0.0
      %384 = vmatpush.msra.mxu0 0.0
      %385 = vmatpush.msra.mxu0 0.0
      %386 = vmatpush.msra.mxu0 0.0
      %387 = vmatpush.msra.mxu0 0.0
      %388 = vmatpush.msra.mxu0 0.0
      %389 = vmatpush.msra.mxu0 0.0
      %390 = vmatpush.msra.mxu0 0.0
      %391 = vmatpush.msra.mxu0 0.0
      %392 = vmatpush.msra.mxu0 0.0
      %393 = vmatpush.msra.mxu0 0.0
      %394 = vmatpush.msra.mxu0 0.0
      %395 = vmatpush.msra.mxu0 0.0
      %396 = vmatpush.msra.mxu0 %v353
      %397 = vmatpush.msra.mxu0 %v352
      %398 = vmatmul.f32.gmra.mxu0 %v355
      %v399 = vpop.f32.mrf.mxu0
      %v400 = vadd.f32 %v377, %v399
      %401 = vmatmul.f32.gmra.mxu0 %v357
      %v402 = vpop.f32.mrf.mxu0
      %v403 = vadd.f32 %v380, %v402
      %404 = vdwg.mxu0
      %v405 = vsel %vm354, %v279, 0
      %v407 = vsel %vm354, %v281, 0
      %409 = vmatpush.msra.mxu0 %v305
      %410 = vmatpush.msra.mxu0 %v304
      %411 = vmatpush.msra.mxu0 %v303
      %412 = vmatpush.msra.mxu0 %v302
      %413 = vmatpush.msra.mxu0 %v301
      %414 = vmatpush.msra.mxu0 %v300
      %415 = vmatpush.msra.mxu0 %v299
      %416 = vmatpush.msra.mxu0 %v298
      %417 = vmatpush.msra.mxu0 %v297
      %418 = vmatpush.msra.mxu0 %v296
      %419 = vmatpush.msra.mxu0 %v295
      %420 = vmatpush.msra.mxu0 %v294
      %421 = vmatpush.msra.mxu0 %v293
      %422 = vmatpush.msra.mxu0 %v292
      %423 = vmatpush.msra.mxu0 %v291
      %424 = vmatpush.msra.mxu0 %v290
      %425 = vmatmul.f32.gmra.mxu0 %v288
      %v426 = vpop.f32.mrf.mxu0
      %v427 = vadd.f32 %v400, %v426
      %428 = vmatmul.f32.gmra.mxu0 %v289
      %v429 = vpop.f32.mrf.mxu0
      %v430 = vadd.f32 %v403, %v429
      %431 = vdwg.mxu0
      %432 = vmatpush.msra.mxu0 0.0
      %433 = vmatpush.msra.mxu0 0.0
      %434 = vmatpush.msra.mxu0 0.0
      %435 = vmatpush.msra.mxu0 0.0
      %436 = vmatpush.msra.mxu0 0.0
      %437 = vmatpush.msra.mxu0 0.0
      %438 = vmatpush.msra.mxu0 0.0
      %439 = vmatpush.msra.mxu0 0.0
      %440 = vmatpush.msra.mxu0 0.0
      %441 = vmatpush.msra.mxu0 0.0
      %442 = vmatpush.msra.mxu0 0.0
      %443 = vmatpush.msra.mxu0 0.0
      %444 = vmatpush.msra.mxu0 0.0
      %445 = vmatpush.msra.mxu0 0.0
      %446 = vmatpush.msra.mxu0 %v307
      %447 = vmatpush.msra.mxu0 %v306
      %448 = vmatmul.f32.gmra.mxu0 %v405
      %v449 = vpop.f32.mrf.mxu0
      %v450 = vadd.f32 %v427, %v449
      %451 = vmatmul.f32.gmra.mxu0 %v407
      %v452 = vpop.f32.mrf.mxu0
      %v453 = vadd.f32 %v430, %v452
      %454 = vdwg.mxu0
      %v455 = vld [vmem:[%s197 + $0x2] sm:$0xff]
      %v456 = vld [vmem:[%s197 + $0xa] sm:$0xff]
      %v457 = vld [vmem:[%s197 + $0x12] sm:$0xff]
      %vm458 = vcmp.lt.s32.totalorder %v245, 3
      %vm459 = vcmp.lt.s32.totalorder %v246, 3
      %vm460 = vcmp.lt.s32.totalorder %v247, 3
      %v461 = vsel %vm458, 1, 0
      %v462 = vsel %vm459, 1, 0
      %v463 = vsel %vm460, 1, 0
      %v464 = vcvt.s32.f32 %v461
      %v465 = vcvt.s32.f32 %v462
      %v466 = vcvt.s32.f32 %v463
      %v467 = vmul.f32 %v455, %v464
      %v468 = vmul.f32 %v456, %v465
      %v469 = vmul.f32 %v457, %v466
      %v473 = vrot.slane %v467, 4
      %v474 = vrot.slane %v468, 4
      %v475 = vsel %vm266, %v473, %v474
      %v476 = vrot.slane %v469, 4
      %v477 = vsel %vm266, %v474, %v476
      %478 = vrot.lane.b32.xlu0 %v475, 48
      %v479 = vpop.permute.xlu0 %478
      %480 = vrot.lane.b32.xlu0 %v477, 48
      %v481 = vpop.permute.xlu0 %480
      %484 = vrot.lane.b32.xlu0 %v468, 96
      %v485 = vpop.permute.xlu0 %484
      %486 = vrot.lane.b32.xlu0 %v469, 96
      %v487 = vpop.permute.xlu0 %486
      %v490 = vsel %vm284, %v467, %v479
      %v491 = vsel %vm284, %v468, %v481
      %v492 = vsel %vm287, %v490, %v485
      %v493 = vsel %vm287, %v491, %v487
      %s494 = scalar_lea.vmem %s1, 288
      %v495 = vld [vmem:[%s494] sm:$0xff]
      %v496 = vld [vmem:[%s494 + $0x8] sm:$0xff]
      %v497 = vld [vmem:[%s494 + $0x10] sm:$0xff]
      %v498 = vld [vmem:[%s494 + $0x18] sm:$0xff]
      %v499 = vld [vmem:[%s494 + $0x20] sm:$0xff]
      %v500 = vld [vmem:[%s494 + $0x28] sm:$0xff]
      %v501 = vld [vmem:[%s494 + $0x30] sm:$0xff]
      %v502 = vld [vmem:[%s494 + $0x38] sm:$0xff]
      %v503 = vld [vmem:[%s494 + $0x40] sm:$0xff]
      %v504 = vld [vmem:[%s494 + $0x48] sm:$0xff]
      %v505 = vld [vmem:[%s494 + $0x50] sm:$0xff]
      %v506 = vld [vmem:[%s494 + $0x58] sm:$0xff]
      %v507 = vld [vmem:[%s494 + $0x60] sm:$0xff]
      %v508 = vld [vmem:[%s494 + $0x68] sm:$0xff]
      %v509 = vld [vmem:[%s494 + $0x70] sm:$0xff]
      %v510 = vld [vmem:[%s494 + $0x78] sm:$0xff]
      %v511 = vld [vmem:[%s494 + $0x80] sm:$0xff]
      %v512 = vld [vmem:[%s494 + $0x88] sm:$0xff]
      %v513 = vsel %vm354, %v485, 0
      %v515 = vsel %vm354, %v487, 0
      %517 = vmatpush.msra.mxu0 %v510
      %518 = vmatpush.msra.mxu0 %v509
      %519 = vmatpush.msra.mxu0 %v508
      %520 = vmatpush.msra.mxu0 %v507
      %521 = vmatpush.msra.mxu0 %v506
      %522 = vmatpush.msra.mxu0 %v505
      %523 = vmatpush.msra.mxu0 %v504
      %524 = vmatpush.msra.mxu0 %v503
      %525 = vmatpush.msra.mxu0 %v502
      %526 = vmatpush.msra.mxu0 %v501
      %527 = vmatpush.msra.mxu0 %v500
      %528 = vmatpush.msra.mxu0 %v499
      %529 = vmatpush.msra.mxu0 %v498
      %530 = vmatpush.msra.mxu0 %v497
      %531 = vmatpush.msra.mxu0 %v496
      %532 = vmatpush.msra.mxu0 %v495
      %533 = vmatmul.f32.gmra.mxu0 %v492
      %v534 = vpop.f32.mrf.mxu0
      %v535 = vadd.f32 0.0, %v534
      %536 = vmatmul.f32.gmra.mxu0 %v493
      %v537 = vpop.f32.mrf.mxu0
      %v538 = vadd.f32 0.0, %v537
      %539 = vdwg.mxu0
      %540 = vmatpush.msra.mxu0 0.0
      %541 = vmatpush.msra.mxu0 0.0
      %542 = vmatpush.msra.mxu0 0.0
      %543 = vmatpush.msra.mxu0 0.0
      %544 = vmatpush.msra.mxu0 0.0
      %545 = vmatpush.msra.mxu0 0.0
      %546 = vmatpush.msra.mxu0 0.0
      %547 = vmatpush.msra.mxu0 0.0
      %548 = vmatpush.msra.mxu0 0.0
      %549 = vmatpush.msra.mxu0 0.0
      %550 = vmatpush.msra.mxu0 0.0
      %551 = vmatpush.msra.mxu0 0.0
      %552 = vmatpush.msra.mxu0 0.0
      %553 = vmatpush.msra.mxu0 0.0
      %554 = vmatpush.msra.mxu0 %v512
      %555 = vmatpush.msra.mxu0 %v511
      %556 = vmatmul.f32.gmra.mxu0 %v513
      %v557 = vpop.f32.mrf.mxu0
      %v558 = vadd.f32 %v535, %v557
      %559 = vmatmul.f32.gmra.mxu0 %v515
      %v560 = vpop.f32.mrf.mxu0
      %v561 = vadd.f32 %v538, %v560
      %562 = vdwg.mxu0
      %v563 = vadd.f32 %v450, %v558
      %v564 = vadd.f32 %v453, %v561
      %v565 = vld [vmem:[%s2] sm:$0x1]
      %v567 = vperm.slane %v565, 0
      %v569 = vadd.f32 %v563, %v567
      %v570 = vadd.f32 %v564, %v567
      %v571 = vmul.f32 %v569, 0.5
      %v572 = vmul.f32 %v570, 0.5
      %v573 = vmul.f32 %v569, 0.70710677
      %v574 = vmul.f32 %v570, 0.70710677
      %vm575 = vcmp.ge.f32.partialorder %v573, 0.0
      %vm576 = vcmp.ge.f32.partialorder %v574, 0.0
      %v577 = vsel %vm575, 1.0, -1.0
      %v578 = vsel %vm576, 1.0, -1.0
      %v579 = vand.u32 2147483647, %v573
      %v580 = vand.u32 2147483647, %v574
      %v581 = vmul.f32 %v579, 0.3275911
      %v582 = vmul.f32 %v580, 0.3275911
      %v583 = vadd.f32 %v581, 1.0
      %v584 = vadd.f32 %v582, 1.0
      %v585 = vrcp.pop %v583
      %v586 = vmul.f32 %v583, %v585
      %v587 = vsub.f32 1.0, %v586
      %v588 = vmul.f32 %v585, %v587
      %v589 = vadd.f32 %v585, %v588
      %vm590 = vweird.f32 %v583
      %vm591 = vweird.f32 %v585
      %vm592 = vmor %vm590, %vm591
      %v593 = vsel %vm592, %v585, %v589
      %v594 = vand.u32 2147483647, %v583
      %vm595 = vcmp.eq.f32.partialorder %v594, 8.507059e+37
      %v596 = vand.u32 %v583, 2147483648
      %v597 = vor.u32 1.1754944e-38, %v596
      %v598 = vsel %vm595, %v597, %v593
      %v599 = vmul.f32 1.0, %v598
      %v600 = vrcp.pop %v584
      %v601 = vmul.f32 %v584, %v600
      %v602 = vsub.f32 1.0, %v601
      %v603 = vmul.f32 %v600, %v602
      %v604 = vadd.f32 %v600, %v603
      %vm605 = vweird.f32 %v584
      %vm606 = vweird.f32 %v600
      %vm607 = vmor %vm605, %vm606
      %v608 = vsel %vm607, %v600, %v604
      %v609 = vand.u32 2147483647, %v584
      %vm610 = vcmp.eq.f32.partialorder %v609, 8.507059e+37
      %v611 = vand.u32 %v584, 2147483648
      %v612 = vor.u32 1.1754944e-38, %v611
      %v613 = vsel %vm610, %v612, %v608
      %v614 = vmul.f32 1.0, %v613
      %v615 = vmul.f32 %v599, 1.0614054
      %v616 = vmul.f32 %v614, 1.0614054
      %v617 = vadd.f32 %v615, -1.4531521
      %v618 = vadd.f32 %v616, -1.4531521
      %v619 = vmul.f32 %v599, %v617
      %v620 = vmul.f32 %v614, %v618
      %v621 = vadd.f32 %v619, 1.4214138
      %v622 = vadd.f32 %v620, 1.4214138
      %v623 = vmul.f32 %v599, %v621
      %v624 = vmul.f32 %v614, %v622
      %v625 = vadd.f32 %v623, -0.28449672
      %v626 = vadd.f32 %v624, -0.28449672
      %v627 = vmul.f32 %v599, %v625
      %v628 = vmul.f32 %v614, %v626
      %v629 = vadd.f32 %v627, 0.2548296
      %v630 = vadd.f32 %v628, 0.2548296
      %v631 = vmul.f32 %v599, %v629
      %v632 = vmul.f32 %v614, %v630
      %v633 = vsub.f32 0.0, %v579
      %v634 = vsub.f32 0.0, %v580
      %v635 = vmul.f32 %v633, %v579
      %v636 = vmul.f32 %v634, %v580
      %v637 = vmul.f32 %v635, 1.442695
      %v638 = vpow.pop %v637
      %v639 = vmul.f32 %v636, 1.442695
      %v640 = vpow.pop %v639
      %v641 = vmul.f32 %v631, %v638
      %v642 = vmul.f32 %v632, %v640
      %v643 = vsub.f32 1.0, %v641
      %v644 = vsub.f32 1.0, %v642
      %v645 = vmul.f32 %v577, %v643
      %v646 = vmul.f32 %v578, %v644
      %v647 = vadd.f32 %v645, 1.0
      %v648 = vadd.f32 %v646, 1.0
      %v649 = vmul.f32 %v571, %v647
      %v650 = vmul.f32 %v572, %v648
      %651 = vst.msk [vmem:[%s206] sm:$0xff] %vm284, %v649
      %652 = vst.msk [vmem:[%s206 + $0x8] sm:$0xff] %vm284, %v650
      %s653 = smul.u32 2, %s19
      %p654 = scmp.lt.s32.totalorder %s18, 1
      %s655 = scalar_select %p654, %s18, 1
      %p656 = scmp.lt.s32.totalorder %s653, 1
      %s657 = scalar_select %p656, %s653, 1
      %s658 = smul.addr %s655, 2
      %s659 = sadd.s32 %s657, %s658
      %s660 = smul.addr %s659, 8
      %s661 = scalar_lea.vmem %s3, %s660
      // Predicated region
      $region33: #{clip_image_preprocessor_forward.5} parent=31 // pred_check
        %p662 = pneg %p116
      $region34: #{clip_image_preprocessor_forward.5} parent=31 // pred_check_branch
        %664 = sbr.rel (%p662) target = $region36
      $region35: #{clip_image_preprocessor_forward.5} parent=31 // pred_region
        %s665 = smul.u32 2, %s19
      $region36: #{clip_image_preprocessor_forward.5} parent=31 // pred_fallthru
        _
    $region32: #{clip_image_preprocessor_forward.5} parent=5 // pred_fallthru
      _
    %p666 = scmp.le.s32.totalorder 2, %s9
    // Predicated region
    $region37: #{clip_image_preprocessor_forward.5} parent=5 // pred_check
      %p667 = pneg %p666
    $region38: #{clip_image_preprocessor_forward.5} parent=5 // pred_check_branch
      %669 = sbr.rel (%p667) target = $region40
    $region39: #{clip_image_preprocessor_forward.5} parent=5 // pred_region
      %s670 = ssub.s32 %s9, 2
      // Predicated region
      $region41: #{clip_image_preprocessor_forward.5} parent=39 // pred_check
        %p671 = pneg %p122
      $region42: #{clip_image_preprocessor_forward.5} parent=39 // pred_check_branch
        %673 = sbr.rel (%p671) target = $region44
      $region43: #{clip_image_preprocessor_forward.5} parent=39 // pred_region
        %s674 = smul.u32 2, %s21
        %p675 = scmp.lt.s32.totalorder %s20, 1
        %s676 = scalar_select %p675, %s20, 1
        %p677 = scmp.lt.s32.totalorder %s674, 1
        %s678 = scalar_select %p677, %s674, 1
        %s679 = smul.addr %s676, 2
        %s680 = sadd.s32 %s678, %s679
        %s681 = smul.addr %s680, 8
        %s682 = scalar_lea.vmem %s3, %s681
      $region44: #{clip_image_preprocessor_forward.5} parent=39 // pred_fallthru
        _
    $region40: #{clip_image_preprocessor_forward.5} parent=5 // pred_fallthru
      _
  $region6: #{clip_image_preprocessor_forward.5} parent=0 // loop_footer
    %s13 = sadd.s32 1, %s9
  $region7: #{clip_image_preprocessor_forward.5} parent=0 // loop_footer_branch
    %8 = sbr.rel target = $region3
  $region8: #{clip_image_preprocessor_forward.5} parent=0 // loop_exit
    _

// kernel: clip_image_preprocessor_forward.8
$region0: #{clip_image_preprocessor_forward.8}
  #allocation0 [shape = 'u32[]', space=smem, size = 0x4, offset = 0x4, fixed_abs, tag = 'smem constant byte address 0x4 - core index']
  #allocation1 [shape = 'u32[72,128]{1,0:T(1,128)}', space=vmem, size = 0x9000, scoped, tag = 'internal scratch']
  %s0 = inlined_call_operand.vmem [shape: f32[2,1,82,12], index: 0, kind: input, shape index: {}]
  %s1 = inlined_call_operand.vmem [shape: f32[3,36,12], index: 1, kind: input, shape index: {}]
  %s2 = inlined_call_operand.vmem [shape: f32[1,12], index: 2, kind: input, shape index: {}]
  %s3 = inlined_call_operand.vmem [shape: f32[2,64,12], index: 3, kind: input, shape index: {}]
  %s4 = inlined_call_operand.vmem [shape: f32[2,64,12], index: 4, kind: output, shape index: {}]
  %s5 = sld [smem:[#allocation0]]
  $region49: #{clip_image_preprocessor_forward.8} parent=0
    _
  %s7 = ssub.s32 1, %s5
  %s8 = scalar_select 0, %s7, %s5
  loop: start=0, step=1, limit=4
  $region2: #{clip_image_preprocessor_forward.8} parent=0 // loop_pre_header
    _
  $region3: #{clip_image_preprocessor_forward.8} parent=0 // loop_header
    %s10 = sphi 0, %s14
    %p11 = scmp.ge.s32.totalorder %s10, 4
    %s17 = sphi 0, %s29
    %s18 = sphi 0, %s25
    %s19 = sphi 0, %s17
    %s20 = sphi 0, %s18
    %s21 = sphi 0, %s19
    %s22 = sphi 0, %s20
    %s34 = sphi 0, %s36
    %s37 = sphi 0, %s34
    %s38 = sphi 0, %s37
    %s54 = sphi 0, %s38
    %s58 = sphi 0, %s58
    %s60 = sphi 0, %s58
    %s61 = sphi 0, %s60
    %s75 = sphi 0, %s61
    %s79 = sphi 0, %s79
    %s81 = sphi 0, %s79
    %s82 = sphi 0, %s81
    %s96 = sphi 0, %s82
    %s104 = sphi 0, %s106
    %s107 = sphi 0, %s104
    %s108 = sphi 0, %s107
    %s124 = sphi 0, %s108
    %s132 = sphi 0, %s134
    %s135 = sphi 0, %s132
    %s136 = sphi 0, %s135
    %s152 = sphi 0, %s136
  $region4: #{clip_image_preprocessor_forward.8} parent=0 // loop_header_branch
    %13 = sbr.rel (%p11) target = $region8
  $region5: #{clip_image_preprocessor_forward.8} parent=0 // loop_body
    %s15 = ssub.s32 %s10, 1
    %s16 = ssub.s32 %s10, 2
    %s23 = sadd.s32 1, %s18
    %p24 = scmp.ge.s32.totalorder %s23, 1
    %s25 = scalar_select %p24, 0, %s23
    %s26 = sadd.s32 1, %s17
    %s27 = scalar_select %p24, %s26, %s17
    %p28 = scmp.ge.s32.totalorder %s27, 2
    %s29 = scalar_select %p28, 0, %s27
    %s30 = ssub.s32 %s17, %s29
    %s31 = ssub.s32 %s18, %s25
    %s32 = sor.u32 %s30, %s31
    %p33 = scmp.eq.s32.totalorder %s32, 0
    %s35 = sadd.s32 %s34, 1
    %s36 = scalar_select %p33, %s34, %s35
    %p39 = pneg %p33
    %p40 = scmp.eq.s32.totalorder %s10, 1
    %p41 = por %p39, %p40
    %p42 = scmp.ne.s32.totalorder %s34, %s37
    %p43 = scmp.eq.s32.totalorder %s10, 0
    %p44 = por %p42, %p43
    %p45 = scmp.ne.s32.totalorder %s34, %s37
    %p46 = scmp.eq.s32.totalorder %s15, 1
    %p47 = por %p45, %p46
    %p48 = scmp.ne.s32.totalorder %s37, %s38
    %p49 = scmp.eq.s32.totalorder %s15, 0
    %p50 = por %p48, %p49
    %p51 = scmp.ne.s32.totalorder %s37, %s38
    %p52 = scmp.eq.s32.totalorder %s16, 1
    %p53 = por %p51, %p52
    %p55 = scmp.ne.s32.totalorder %s38, %s54
    %p56 = scmp.eq.s32.totalorder %s16, 0
    %p57 = por %p55, %p56
    %s59 = sadd.s32 %s58, 1
    %p62 = scmp.eq.s32.totalorder %s10, 1
    %p63 = scmp.ne.s32.totalorder %s58, %s60
    %p64 = scmp.eq.s32.totalorder %s10, 0
    %p65 = por %p63, %p64
    %p66 = scmp.ne.s32.totalorder %s58, %s60
    %p67 = scmp.eq.s32.totalorder %s15, 1
    %p68 = por %p66, %p67
    %p69 = scmp.ne.s32.totalorder %s60, %s61
    %p70 = scmp.eq.s32.totalorder %s15, 0
    %p71 = por %p69, %p70
    %p72 = scmp.ne.s32.totalorder %s60, %s61
    %p73 = scmp.eq.s32.totalorder %s16, 1
    %p74 = por %p72, %p73
    %p76 = scmp.ne.s32.totalorder %s61, %s75
    %p77 = scmp.eq.s32.totalorder %s16, 0
    %p78 = por %p76, %p77
    %s80 = sadd.s32 %s79, 1
    %p83 = scmp.eq.s32.totalorder %s10, 1
    %p84 = scmp.ne.s32.totalorder %s79, %s81
    %p85 = scmp.eq.s32.totalorder %s10, 0
    %p86 = por %p84, %p85
    %p87 = scmp.ne.s32.totalorder %s79, %s81
    %p88 = scmp.eq.s32.totalorder %s15, 1
    %p89 = por %p87, %p88
    %p90 = scmp.ne.s32.totalorder %s81, %s82
    %p91 = scmp.eq.s32.totalorder %s15, 0
    %p92 = por %p90, %p91
    %p93 = scmp.ne.s32.totalorder %s81, %s82
    %p94 = scmp.eq.s32.totalorder %s16, 1
    %p95 = por %p93, %p94
    %p97 = scmp.ne.s32.totalorder %s82, %s96
    %p98 = scmp.eq.s32.totalorder %s16, 0
    %p99 = por %p97, %p98
    %s100 = ssub.s32 %s17, %s29
    %s101 = ssub.s32 %s18, %s25
    %s102 = sor.u32 %s100, %s101
    %p103 = scmp.eq.s32.totalorder %s102, 0
    %s105 = sadd.s32 %s104, 1
    %s106 = scalar_select %p103, %s104, %s105
    %p109 = pneg %p103
    %p110 = scmp.eq.s32.totalorder %s10, 1
    %p111 = por %p109, %p110
    %p112 = scmp.ne.s32.totalorder %s104, %s107
    %p113 = scmp.eq.s32.totalorder %s10, 0
    %p114 = por %p112, %p113
    %p115 = scmp.ne.s32.totalorder %s104, %s107
    %p116 = scmp.eq.s32.totalorder %s15, 1
    %p117 = por %p115, %p116
    %p118 = scmp.ne.s32.totalorder %s107, %s108
    %p119 = scmp.eq.s32.totalorder %s15, 0
    %p120 = por %p118, %p119
    %p121 = scmp.ne.s32.totalorder %s107, %s108
    %p122 = scmp.eq.s32.totalorder %s16, 1
    %p123 = por %p121, %p122
    %p125 = scmp.ne.s32.totalorder %s108, %s124
    %p126 = scmp.eq.s32.totalorder %s16, 0
    %p127 = por %p125, %p126
    %s128 = ssub.s32 %s17, %s29
    %s129 = ssub.s32 %s18, %s25
    %s130 = sor.u32 %s128, %s129
    %p131 = scmp.eq.s32.totalorder %s130, 0
    %s133 = sadd.s32 %s132, 1
    %s134 = scalar_select %p131, %s132, %s133
    %p137 = pneg %p131
    %p138 = scmp.eq.s32.totalorder %s10, 1
    %p139 = por %p137, %p138
    %p140 = scmp.ne.s32.totalorder %s132, %s135
    %p141 = scmp.eq.s32.totalorder %s10, 0
    %p142 = por %p140, %p141
    %p143 = scmp.ne.s32.totalorder %s132, %s135
    %p144 = scmp.eq.s32.totalorder %s15, 1
    %p145 = por %p143, %p144
    %p146 = scmp.ne.s32.totalorder %s135, %s136
    %p147 = scmp.eq.s32.totalorder %s15, 0
    %p148 = por %p146, %p147
    %p149 = scmp.ne.s32.totalorder %s135, %s136
    %p150 = scmp.eq.s32.totalorder %s16, 1
    %p151 = por %p149, %p150
    %p153 = scmp.ne.s32.totalorder %s136, %s152
    %p154 = scmp.eq.s32.totalorder %s16, 0
    %p155 = por %p153, %p154
    %p156 = scmp.le.s32.totalorder 1, %s10
    %p157 = scmp.lt.s32.totalorder %s10, 3
    %p158 = pnand %p156, %p157
    %p159 = pneg %p158
    // Predicated region
    $region9: #{clip_image_preprocessor_forward.8} parent=5 // pred_check
      _
    $region10: #{clip_image_preprocessor_forward.8} parent=5 // pred_check_branch
      %161 = sbr.rel (%p158) target = $region12
    $region11: #{clip_image_preprocessor_forward.8} parent=5 // pred_region
      %s162 = ssub.s32 %s10, 1
      // Predicated region
      $region13: #{clip_image_preprocessor_forward.8} parent=11 // pred_check
        %p163 = pneg %p71
      $region14: #{clip_image_preprocessor_forward.8} parent=11 // pred_check_branch
        %165 = sbr.rel (%p163) target = $region16
      $region15: #{clip_image_preprocessor_forward.8} parent=11 // pred_region
        _
      $region16: #{clip_image_preprocessor_forward.8} parent=11 // pred_fallthru
        _
      // Predicated region
      $region17: #{clip_image_preprocessor_forward.8} parent=11 // pred_check
        %p166 = pneg %p92
      $region18: #{clip_image_preprocessor_forward.8} parent=11 // pred_check_branch
        %168 = sbr.rel (%p166) target = $region20
      $region19: #{clip_image_preprocessor_forward.8} parent=11 // pred_region
        _
      $region20: #{clip_image_preprocessor_forward.8} parent=11 // pred_fallthru
        _
    $region12: #{clip_image_preprocessor_forward.8} parent=5 // pred_fallthru
      _
    %p169 = scmp.lt.s32.totalorder %s10, 2
    // Predicated region
    $region21: #{clip_image_preprocessor_forward.8} parent=5 // pred_check
      %p170 = pneg %p169
    $region22: #{clip_image_preprocessor_forward.8} parent=5 // pred_check_branch
      %172 = sbr.rel (%p170) target = $region24
    $region23: #{clip_image_preprocessor_forward.8} parent=5 // pred_region
      // Predicated region
      $region25: #{clip_image_preprocessor_forward.8} parent=23 // pred_check
        %p173 = pneg %p44
      $region26: #{clip_image_preprocessor_forward.8} parent=23 // pred_check_branch
        %175 = sbr.rel (%p173) target = $region28
      $region27: #{clip_image_preprocessor_forward.8} parent=23 // pred_region
        %p176 = scmp.lt.s32.totalorder %s17, 1
        %s177 = scalar_select %p176, %s17, 1
        %p178 = scmp.lt.s32.totalorder %s18, 0
        %s179 = scalar_select %p178, %s18, 0
        %s180 = smul.addr %s179, 11
        %s181 = smul.addr %s177, 11
        %s182 = sadd.s32 %s180, %s181
        %s183 = smul.addr %s182, 8
        %s184 = scalar_lea.vmem %s0, %s183
      $region28: #{clip_image_preprocessor_forward.8} parent=23 // pred_fallthru
        _
      // Predicated region
      $region29: #{clip_image_preprocessor_forward.8} parent=23 // pred_check
        %p185 = pneg %p114
      $region30: #{clip_image_preprocessor_forward.8} parent=23 // pred_check_branch
        %187 = sbr.rel (%p185) target = $region32
      $region31: #{clip_image_preprocessor_forward.8} parent=23 // pred_region
        %s188 = smul.u32 8, %s18
        %p189 = scmp.lt.s32.totalorder %s17, 1
        %s190 = scalar_select %p189, %s17, 1
        %p191 = scmp.lt.s32.totalorder %s188, 7
        %s192 = scalar_select %p191, %s188, 7
        %s193 = smul.addr %s190, 8
        %s194 = sadd.s32 %s192, %s193
        %s195 = smul.addr %s194, 8
        %s196 = scalar_lea.vmem %s3, %s195
        %s197 = smul.u32 8, %s18
      $region32: #{clip_image_preprocessor_forward.8} parent=23 // pred_fallthru
        _
    $region24: #{clip_image_preprocessor_forward.8} parent=5 // pred_fallthru
      _
    %p198 = scmp.le.s32.totalorder 1, %s10
    %p199 = scmp.lt.s32.totalorder %s10, 3
    %p200 = pnand %p198, %p199
    %p201 = pneg %p200
    // Predicated region
    $region33: #{clip_image_preprocessor_forward.8} parent=5 // pred_check
      _
    $region34: #{clip_image_preprocessor_forward.8} parent=5 // pred_check_branch
      %203 = sbr.rel (%p200) target = $region36
    $region35: #{clip_image_preprocessor_forward.8} parent=5 // pred_region
      %s204 = ssub.s32 %s10, 1
      %p205 = scmp.lt.s32.totalorder %s19, 1
      %s206 = scalar_select %p205, %s19, 1
      %p207 = scmp.lt.s32.totalorder %s20, 0
      %s208 = scalar_select %p207, %s20, 0
      %s209 = smul.addr %s208, 11
      %s210 = smul.addr %s206, 11
      %s211 = sadd.s32 %s209, %s210
      %s212 = smul.addr %s211, 8
      %s213 = scalar_lea.vmem %s0, %s212
      %p214 = pneg %p50
      %p215 = pneg %p47
      %p216 = pneg %p71
      %p217 = pneg %p68
      %p218 = pneg %p92
      %p219 = pneg %p89
      %s220 = smul.u32 8, %s20
      %p221 = scmp.lt.s32.totalorder %s19, 1
      %s222 = scalar_select %p221, %s19, 1
      %p223 = scmp.lt.s32.totalorder %s220, 7
      %s224 = scalar_select %p223, %s220, 7
      %s225 = smul.addr %s222, 8
      %s226 = sadd.s32 %s224, %s225
      %s227 = smul.addr %s226, 8
      %s228 = scalar_lea.vmem %s3, %s227
      %p229 = pneg %p120
      %p230 = pneg %p117
      %p231 = pneg %p148
      %p232 = pneg %p145
      %s233 = smul.u32 8, %s20
      %p234 = scmp.lt.s32.totalorder %s19, 1
      %s235 = scalar_select %p234, %s19, 1
      %p236 = scmp.lt.s32.totalorder %s233, 7
      %s237 = scalar_select %p236, %s233, 7
      %s238 = smul.addr %s235, 8
      %s239 = sadd.s32 %s237, %s238
      %s240 = smul.addr %s239, 8
      %s241 = scalar_lea.vmem %s4, %s240
      %p242 = scmp.lt.s32.totalorder %s19, 1
      %s243 = scalar_select %p242, %s19, 1
      %p244 = scmp.lt.s32.totalorder %s20, 0
      %s245 = scalar_select %p244, %s20, 0
      %s246 = smul.addr %s245, 11
      %s247 = smul.addr %s243, 11
      %s248 = sadd.s32 %s246, %s247
      %s249 = smul.addr %s248, 8
      %s250 = scalar_lea.vmem %s0, %s249
      %s251 = smul.u32 8, %s20
      %p252 = scmp.lt.s32.totalorder %s19, 1
      %s253 = scalar_select %p252, %s19, 1
      %p254 = scmp.lt.s32.totalorder %s251, 7
      %s255 = scalar_select %p254, %s251, 7
      %s256 = smul.addr %s253, 8
      %s257 = sadd.s32 %s255, %s256
      %s258 = smul.addr %s257, 8
      %s259 = scalar_lea.vmem %s3, %s258
      %s260 = smul.u32 8, %s20
      %s261 = smul.u32 8, %s20
      %p262 = scmp.lt.s32.totalorder %s19, 1
      %s263 = scalar_select %p262, %s19, 1
      %p264 = scmp.lt.s32.totalorder %s261, 7
      %s265 = scalar_select %p264, %s261, 7
      %s266 = smul.addr %s263, 8
      %s267 = sadd.s32 %s265, %s266
      %s268 = smul.addr %s267, 8
      %s269 = scalar_lea.vmem %s4, %s268
      %s270 = smul.u32 8, %s20
      %v271 = vlaneseq
      %v272 = vshrl.u32 %v271, 7
      %v273 = vadd.s32 %v272, 8
      %v274 = vadd.s32 %v272, 16
      %v275 = vadd.s32 %v272, 24
      %v276 = vadd.s32 %v272, 32
      %v277 = vadd.s32 %v272, 40
      %v278 = vadd.s32 %v272, 48
      %v279 = vadd.s32 %v272, 56
      %v280 = vadd.s32 %v272, 64
      %v281 = vadd.s32 %v272, 72
      %vm282 = vcmp.lt.s32.totalorder %v272, 0
      %v283 = vsub.s32 0, %v272
      %v284 = vsel %vm282, %v283, %v272
      %v285 = vshrl.u32 %v284, 3
      %v286 = vand.u32 %v284, 7
      %v287 = vsub.s32 0, %v286
      %v288 = vsel %vm282, %v287, %v286
      %vm289 = vcmp.lt.s32.totalorder %v273, 0
      %v290 = vsub.s32 0, %v273
      %v291 = vsel %vm289, %v290, %v273
      %v292 = vshrl.u32 %v291, 3
      %v293 = vand.u32 %v291, 7
      %v294 = vsub.s32 0, %v293
      %v295 = vsel %vm289, %v294, %v293
      %vm296 = vcmp.lt.s32.totalorder %v274, 0
      %v297 = vsub.s32 0, %v274
      %v298 = vsel %vm296, %v297, %v274
      %v299 = vshrl.u32 %v298, 3
      %v300 = vand.u32 %v298, 7
      %v301 = vsub.s32 0, %v300
      %v302 = vsel %vm296, %v301, %v300
      %vm303 = vcmp.lt.s32.totalorder %v275, 0
      %v304 = vsub.s32 0, %v275
      %v305 = vsel %vm303, %v304, %v275
      %v306 = vshrl.u32 %v305, 3
      %v307 = vand.u32 %v305, 7
      %v308 = vsub.s32 0, %v307
      %v309 = vsel %vm303, %v308, %v307
      %vm310 = vcmp.lt.s32.totalorder %v276, 0
      %v311 = vsub.s32 0, %v276
      %v312 = vsel %vm310, %v311, %v276
      %v313 = vshrl.u32 %v312, 3
      %v314 = vand.u32 %v312, 7
      %v315 = vsub.s32 0, %v314
      %v316 = vsel %vm310, %v315, %v314
      %vm317 = vcmp.lt.s32.totalorder %v277, 0
      %v318 = vsub.s32 0, %v277
      %v319 = vsel %vm317, %v318, %v277
      %v320 = vshrl.u32 %v319, 3
      %v321 = vand.u32 %v319, 7
      %v322 = vsub.s32 0, %v321
      %v323 = vsel %vm317, %v322, %v321
      %vm324 = vcmp.lt.s32.totalorder %v278, 0
      %v325 = vsub.s32 0, %v278
      %v326 = vsel %vm324, %v325, %v278
      %v327 = vshrl.u32 %v326, 3
      %v328 = vand.u32 %v326, 7
      %v329 = vsub.s32 0, %v328
      %v330 = vsel %vm324, %v329, %v328
      %vm331 = vcmp.lt.s32.totalorder %v279, 0
      %v332 = vsub.s32 0, %v279
      %v333 = vsel %vm331, %v332, %v279
      %v334 = vshrl.u32 %v333, 3
      %v335 = vand.u32 %v333, 7
      %v336 = vsub.s32 0, %v335
      %v337 = vsel %vm331, %v336, %v335
      %vm338 = vcmp.lt.s32.totalorder %v280, 0
      %v339 = vsub.s32 0, %v280
      %v340 = vsel %vm338, %v339, %v280
      %v341 = vshrl.u32 %v340, 3
      %v342 = vand.u32 %v340, 7
      %v343 = vsub.s32 0, %v342
      %v344 = vsel %vm338, %v343, %v342
      %vm345 = vcmp.lt.s32.totalorder %v281, 0
      %v346 = vsub.s32 0, %v281
      %v347 = vsel %vm345, %v346, %v281
      %v348 = vshrl.u32 %v347, 3
      %v349 = vand.u32 %v347, 7
      %v350 = vsub.s32 0, %v349
      %v351 = vsel %vm345, %v350, %v349
      %vm352 = vcmp.ne.s32.totalorder %v288, 0
      %vm353 = vcmp.ne.s32.totalorder %v295, 0
      %vm354 = vcmp.ne.s32.totalorder %v302, 0
      %vm355 = vcmp.ne.s32.totalorder %v309, 0
      %vm356 = vcmp.ne.s32.totalorder %v316, 0
      %vm357 = vcmp.ne.s32.totalorder %v323, 0
      %vm358 = vcmp.ne.s32.totalorder %v330, 0
      %vm359 = vcmp.ne.s32.totalorder %v337, 0
      %vm360 = vcmp.ne.s32.totalorder %v344, 0
      %vm361 = vcmp.ne.s32.totalorder %v351, 0
      %vm362 = vcmp.lt.s32.totalorder %v288, 0
      %vm363 = vcmp.lt.s32.totalorder %v295, 0
      %vm364 = vcmp.lt.s32.totalorder %v302, 0
      %vm365 = vcmp.lt.s32.totalorder %v309, 0
      %vm366 = vcmp.lt.s32.totalorder %v316, 0
      %vm367 = vcmp.lt.s32.totalorder %v323, 0
      %vm368 = vcmp.lt.s32.totalorder %v330, 0
      %vm369 = vcmp.lt.s32.totalorder %v337, 0
      %vm370 = vcmp.lt.s32.totalorder %v344, 0
      %vm371 = vcmp.lt.s32.totalorder %v351, 0
      %vm372 = vmand %vm362, %vm352
      %vm373 = vmand %vm363, %vm353
      %vm374 = vmand %vm364, %vm354
      %vm375 = vmand %vm365, %vm355
      %vm376 = vmand %vm366, %vm356
      %vm377 = vmand %vm367, %vm357
      %vm378 = vmand %vm368, %vm358
      %vm379 = vmand %vm369, %vm359
      %vm380 = vmand %vm370, %vm360
      %vm381 = vmand %vm371, %vm361
      %v382 = vadd.s32 %v288, 8
      %v383 = vadd.s32 %v295, 8
      %v384 = vadd.s32 %v302, 8
      %v385 = vadd.s32 %v309, 8
      %v386 = vadd.s32 %v316, 8
      %v387 = vadd.s32 %v323, 8
      %v388 = vadd.s32 %v330, 8
      %v389 = vadd.s32 %v337, 8
      %v390 = vadd.s32 %v344, 8
      %v391 = vadd.s32 %v351, 8
      %v392 = vsel %vm372, %v382, %v288
      %v393 = vsel %vm373, %v383, %v295
      %v394 = vsel %vm374, %v384, %v302
      %v395 = vsel %vm375, %v385, %v309
      %v396 = vsel %vm376, %v386, %v316
      %v397 = vsel %vm377, %v387, %v323
      %v398 = vsel %vm378, %v388, %v330
      %v399 = vsel %vm379, %v389, %v337
      %v400 = vsel %vm380, %v390, %v344
      %v401 = vsel %vm381, %v391, %v351
      %v402 = vld [vmem:[%s250] sm:$0xff]
      %v403 = vld [vmem:[%s250 + $0x8] sm:$0xff]
      %v404 = vld [vmem:[%s250 + $0x10] sm:$0xff]
      %v405 = vld [vmem:[%s250 + $0x18] sm:$0xff]
      %v406 = vld [vmem:[%s250 + $0x20] sm:$0xff]
      %v407 = vld [vmem:[%s250 + $0x28] sm:$0xff]
      %v408 = vld [vmem:[%s250 + $0x30] sm:$0xff]
      %v409 = vld [vmem:[%s250 + $0x38] sm:$0xff]
      %v410 = vld [vmem:[%s250 + $0x40] sm:$0xff]
      %v411 = vld [vmem:[%s250 + $0x48] sm:$0xff]
      %vm412 = vcmp.gt.s32.totalorder %v392, 0
      %vm413 = vcmp.gt.s32.totalorder %v393, 0
      %vm414 = vcmp.gt.s32.totalorder %v394, 0
      %vm415 = vcmp.gt.s32.totalorder %v395, 0
      %vm416 = vcmp.gt.s32.totalorder %v396, 0
      %vm417 = vcmp.gt.s32.totalorder %v397, 0
      %vm418 = vcmp.gt.s32.totalorder %v398, 0
      %vm419 = vcmp.gt.s32.totalorder %v399, 0
      %vm420 = vcmp.gt.s32.totalorder %v400, 0
      %vm421 = vcmp.gt.s32.totalorder %v401, 0
      %v422 = vsel %vm412, 1, 0
      %v423 = vsel %vm413, 1, 0
      %v424 = vsel %vm414, 1, 0
      %v425 = vsel %vm415, 1, 0
      %v426 = vsel %vm416, 1, 0
      %v427 = vsel %vm417, 1, 0
      %v428 = vsel %vm418, 1, 0
      %v429 = vsel %vm419, 1, 0
      %v430 = vsel %vm420, 1, 0
      %v431 = vsel %vm421, 1, 0
      %v432 = vcvt.s32.f32 %v422
      %v433 = vcvt.s32.f32 %v423
      %v434 = vcvt.s32.f32 %v424
      %v435 = vcvt.s32.f32 %v425
      %v436 = vcvt.s32.f32 %v426
      %v437 = vcvt.s32.f32 %v427
      %v438 = vcvt.s32.f32 %v428
      %v439 = vcvt.s32.f32 %v429
      %v440 = vcvt.s32.f32 %v430
      %v441 = vcvt.s32.f32 %v431
      %v442 = vmul.f32 %v402, %v432
      %v443 = vmul.f32 %v403, %v433
      %v444 = vmul.f32 %v404, %v434
      %v445 = vmul.f32 %v405, %v435
      %v446 = vmul.f32 %v406, %v436
      %v447 = vmul.f32 %v407, %v437
      %v448 = vmul.f32 %v408, %v438
      %v449 = vmul.f32 %v409, %v439
      %v450 = vmul.f32 %v410, %v440
      %v451 = vmul.f32 %v411, %v441
      %460 = vrot.lane.b32.xlu0 %v443, 12
      %v461 = vpop.permute.xlu0 %460
      %462 = vrot.lane.b32.xlu0 %v444, 12
      %v463 = vpop.permute.xlu0 %462
      %464 = vrot.lane.b32.xlu0 %v445, 12
      %v465 = vpop.permute.xlu0 %464
      %466 = vrot.lane.b32.xlu0 %v446, 12
      %v467 = vpop.permute.xlu0 %466
      %468 = vrot.lane.b32.xlu0 %v447, 12
      %v469 = vpop.permute.xlu0 %468
      %470 = vrot.lane.b32.xlu0 %v448, 12
      %v471 = vpop.permute.xlu0 %470
      %472 = vrot.lane.b32.xlu0 %v449, 12
      %v473 = vpop.permute.xlu0 %472
      %474 = vrot.lane.b32.xlu0 %v450, 12
      %v475 = vpop.permute.xlu0 %474
      %485 = vrot.lane.b32.xlu0 %v444, 24
      %v486 = vpop.permute.xlu0 %485
      %487 = vrot.lane.b32.xlu0 %v445, 24
      %v488 = vpop.permute.xlu0 %487
      %489 = vrot.lane.b32.xlu0 %v446, 24
      %v490 = vpop.permute.xlu0 %489
      %491 = vrot.lane.b32.xlu0 %v447, 24
      %v492 = vpop.permute.xlu0 %491
      %493 = vrot.lane.b32.xlu0 %v448, 24
      %v494 = vpop.permute.xlu0 %493
      %495 = vrot.lane.b32.xlu0 %v449, 24
      %v496 = vpop.permute.xlu0 %495
      %497 = vrot.lane.b32.xlu0 %v450, 24
      %v498 = vpop.permute.xlu0 %497
      %499 = vrot.lane.b32.xlu0 %v451, 24
      %v500 = vpop.permute.xlu0 %499
      %vm509 = vcmask 97280
      %v510 = vsel %vm509, %v442, %v461
      %v511 = vsel %vm509, %v443, %v463
      %v512 = vsel %vm509, %v444, %v465
      %v513 = vsel %vm509, %v445, %v467
      %v514 = vsel %vm509, %v446, %v469
      %v515 = vsel %vm509, %v447, %v471
      %v516 = vsel %vm509, %v448, %v473
      %v517 = vsel %vm509, %v449, %v475
      %vm518 = vcmask 195584
      %v519 = vsel %vm518, %v510, %v486
      %v520 = vsel %vm518, %v511, %v488
      %v521 = vsel %vm518, %v512, %v490
      %v522 = vsel %vm518, %v513, %v492
      %v523 = vsel %vm518, %v514, %v494
      %v524 = vsel %vm518, %v515, %v496
      %v525 = vsel %vm518, %v516, %v498
      %v526 = vsel %vm518, %v517, %v500
      %v527 = vld [vmem:[%s1] sm:$0xff]
      %v528 = vld [vmem:[%s1 + $0x8] sm:$0xff]
      %v529 = vld [vmem:[%s1 + $0x10] sm:$0xff]
      %v530 = vld [vmem:[%s1 + $0x18] sm:$0xff]
      %v531 = vld [vmem:[%s1 + $0x20] sm:$0xf]
      %v532 = vld [vmem:[%s250 + $0x1] sm:$0xff]
      %v533 = vld [vmem:[%s250 + $0x9] sm:$0xff]
      %v534 = vld [vmem:[%s250 + $0x11] sm:$0xff]
      %v535 = vld [vmem:[%s250 + $0x19] sm:$0xff]
      %v536 = vld [vmem:[%s250 + $0x21] sm:$0xff]
      %v537 = vld [vmem:[%s250 + $0x29] sm:$0xff]
      %v538 = vld [vmem:[%s250 + $0x31] sm:$0xff]
      %v539 = vld [vmem:[%s250 + $0x39] sm:$0xff]
      %v540 = vld [vmem:[%s250 + $0x41] sm:$0xff]
      %v541 = vld [vmem:[%s250 + $0x49] sm:$0xff]
      %550 = vrot.lane.b32.xlu0 %v533, 12
      %v551 = vpop.permute.xlu0 %550
      %552 = vrot.lane.b32.xlu0 %v534, 12
      %v553 = vpop.permute.xlu0 %552
      %554 = vrot.lane.b32.xlu0 %v535, 12
      %v555 = vpop.permute.xlu0 %554
      %556 = vrot.lane.b32.xlu0 %v536, 12
      %v557 = vpop.permute.xlu0 %556
      %558 = vrot.lane.b32.xlu0 %v537, 12
      %v559 = vpop.permute.xlu0 %558
      %560 = vrot.lane.b32.xlu0 %v538, 12
      %v561 = vpop.permute.xlu0 %560
      %562 = vrot.lane.b32.xlu0 %v539, 12
      %v563 = vpop.permute.xlu0 %562
      %564 = vrot.lane.b32.xlu0 %v540, 12
      %v565 = vpop.permute.xlu0 %564
      %575 = vrot.lane.b32.xlu0 %v534, 24
      %v576 = vpop.permute.xlu0 %575
      %577 = vrot.lane.b32.xlu0 %v535, 24
      %v578 = vpop.permute.xlu0 %577
      %579 = vrot.lane.b32.xlu0 %v536, 24
      %v580 = vpop.permute.xlu0 %579
      %581 = vrot.lane.b32.xlu0 %v537, 24
      %v582 = vpop.permute.xlu0 %581
      %583 = vrot.lane.b32.xlu0 %v538, 24
      %v584 = vpop.permute.xlu0 %583
      %585 = vrot.lane.b32.xlu0 %v539, 24
      %v586 = vpop.permute.xlu0 %585
      %587 = vrot.lane.b32.xlu0 %v540, 24
      %v588 = vpop.permute.xlu0 %587
      %589 = vrot.lane.b32.xlu0 %v541, 24
      %v590 = vpop.permute.xlu0 %589
      %v599 = vsel %vm509, %v532, %v551
      %v600 = vsel %vm509, %v533, %v553
      %v601 = vsel %vm509, %v534, %v555
      %v602 = vsel %vm509, %v535, %v557
      %v603 = vsel %vm509, %v536, %v559
      %v604 = vsel %vm509, %v537, %v561
      %v605 = vsel %vm509, %v538, %v563
      %v606 = vsel %vm509, %v539, %v565
      %v607 = vsel %vm518, %v599, %v576
      %v608 = vsel %vm518, %v600, %v578
      %v609 = vsel %vm518, %v601, %v580
      %v610 = vsel %vm518, %v602, %v582
      %v611 = vsel %vm518, %v603, %v584
      %v612 = vsel %vm518, %v604, %v586
      %v613 = vsel %vm518, %v605, %v588
      %v614 = vsel %vm518, %v606, %v590
      %s615 = scalar_lea.vmem %s1, 40
      %v616 = vld [vmem:[%s615] sm:$0xff]
      %v617 = vld [vmem:[%s615 + $0x8] sm:$0xff]
      %v618 = vld [vmem:[%s615 + $0x10] sm:$0xff]
      %v619 = vld [vmem:[%s615 + $0x18] sm:$0xff]
      %v620 = vld [vmem:[%s615 + $0x20] sm:$0xf]
      %vm621 = vcmask 293888
      %v623 = vsel %vm621, %v607, 0
      %v626 = vsel %vm621, %v608, 0
      %v629 = vsel %vm621, %v609, 0
      %v632 = vsel %vm621, %v610, 0
      %v635 = vsel %vm621, %v611, 0
      %v638 = vsel %vm621, %v612, 0
      %v641 = vsel %vm621, %v613, 0
      %v644 = vsel %vm621, %v614, 0
      %vm646 = vcmask 1043456
      %v648 = vsel %vm646, %v620, 0
      %650 = vmatpush.msra.mxu0 0.0
      %651 = vmatpush.msra.mxu0 0.0
      %652 = vmatpush.msra.mxu0 0.0
      %653 = vmatpush.msra.mxu0 0.0
      %654 = vmatpush.msra.mxu0 0.0
      %655 = vmatpush.msra.mxu0 0.0
      %656 = vmatpush.msra.mxu0 0.0
      %657 = vmatpush.msra.mxu0 0.0
      %658 = vmatpush.msra.mxu0 0.0
      %659 = vmatpush.msra.mxu0 0.0
      %660 = vmatpush.msra.mxu0 0.0
      %661 = vmatpush.msra.mxu0 %v648
      %662 = vmatpush.msra.mxu0 %v619
      %663 = vmatpush.msra.mxu0 %v618
      %664 = vmatpush.msra.mxu0 %v617
      %665 = vmatpush.msra.mxu0 %v616
      %666 = vmatmul.f32.gmra.mxu0 %v623
      %v667 = vpop.f32.mrf.mxu0
      %v668 = vadd.f32 0.0, %v667
      %669 = vmatmul.f32.gmra.mxu0 %v626
      %v670 = vpop.f32.mrf.mxu0
      %v671 = vadd.f32 0.0, %v670
      %672 = vmatmul.f32.gmra.mxu0 %v629
      %v673 = vpop.f32.mrf.mxu0
      %v674 = vadd.f32 0.0, %v673
      %675 = vmatmul.f32.gmra.mxu0 %v632
      %v676 = vpop.f32.mrf.mxu0
      %v677 = vadd.f32 0.0, %v676
      %678 = vmatmul.f32.gmra.mxu0 %v635
      %v679 = vpop.f32.mrf.mxu0
      %v680 = vadd.f32 0.0, %v679
      %681 = vmatmul.f32.gmra.mxu0 %v638
      %v682 = vpop.f32.mrf.mxu0
      %v683 = vadd.f32 0.0, %v682
      %684 = vmatmul.f32.gmra.mxu0 %v641
      %v685 = vpop.f32.mrf.mxu0
      %v686 = vadd.f32 0.0, %v685
      %687 = vmatmul.f32.gmra.mxu0 %v644
      %v688 = vpop.f32.mrf.mxu0
      %v689 = vadd.f32 0.0, %v688
      %690 = vdwg.mxu0
      %v692 = vsel %vm621, %v519, 0
      %v695 = vsel %vm621, %v520, 0
      %v698 = vsel %vm621, %v521, 0
      %v701 = vsel %vm621, %v522, 0
      %v704 = vsel %vm621, %v523, 0
      %v707 = vsel %vm621, %v524, 0
      %v710 = vsel %vm621, %v525, 0
      %v713 = vsel %vm621, %v526, 0
      %v716 = vsel %vm646, %v531, 0
      %718 = vmatpush.msra.mxu0 0.0
      %719 = vmatpush.msra.mxu0 0.0
      %720 = vmatpush.msra.mxu0 0.0
      %721 = vmatpush.msra.mxu0 0.0
      %722 = vmatpush.msra.mxu0 0.0
      %723 = vmatpush.msra.mxu0 0.0
      %724 = vmatpush.msra.mxu0 0.0
      %725 = vmatpush.msra.mxu0 0.0
      %726 = vmatpush.msra.mxu0 0.0
      %727 = vmatpush.msra.mxu0 0.0
      %728 = vmatpush.msra.mxu0 0.0
      %729 = vmatpush.msra.mxu0 %v716
      %730 = vmatpush.msra.mxu0 %v530
      %731 = vmatpush.msra.mxu0 %v529
      %732 = vmatpush.msra.mxu0 %v528
      %733 = vmatpush.msra.mxu0 %v527
      %734 = vmatmul.f32.gmra.mxu0 %v692
      %v735 = vpop.f32.mrf.mxu0
      %v736 = vadd.f32 %v668, %v735
      %737 = vmatmul.f32.gmra.mxu0 %v695
      %v738 = vpop.f32.mrf.mxu0
      %v739 = vadd.f32 %v671, %v738
      %740 = vmatmul.f32.gmra.mxu0 %v698
      %v741 = vpop.f32.mrf.mxu0
      %v742 = vadd.f32 %v674, %v741
      %743 = vmatmul.f32.gmra.mxu0 %v701
      %v744 = vpop.f32.mrf.mxu0
      %v745 = vadd.f32 %v677, %v744
      %746 = vmatmul.f32.gmra.mxu0 %v704
      %v747 = vpop.f32.mrf.mxu0
      %v748 = vadd.f32 %v680, %v747
      %749 = vmatmul.f32.gmra.mxu0 %v707
      %v750 = vpop.f32.mrf.mxu0
      %v751 = vadd.f32 %v683, %v750
      %752 = vmatmul.f32.gmra.mxu0 %v710
      %v753 = vpop.f32.mrf.mxu0
      %v754 = vadd.f32 %v686, %v753
      %755 = vmatmul.f32.gmra.mxu0 %v713
      %v756 = vpop.f32.mrf.mxu0
      %v757 = vadd.f32 %v689, %v756
      %758 = vdwg.mxu0
      %v759 = vld [vmem:[%s250 + $0x2] sm:$0xff]
      %v760 = vld [vmem:[%s250 + $0xa] sm:$0xff]
      %v761 = vld [vmem:[%s250 + $0x12] sm:$0xff]
      %v762 = vld [vmem:[%s250 + $0x1a] sm:$0xff]
      %v763 = vld [vmem:[%s250 + $0x22] sm:$0xff]
      %v764 = vld [vmem:[%s250 + $0x2a] sm:$0xff]
      %v765 = vld [vmem:[%s250 + $0x32] sm:$0xff]
      %v766 = vld [vmem:[%s250 + $0x3a] sm:$0xff]
      %v767 = vld [vmem:[%s250 + $0x42] sm:$0xff]
      %v768 = vld [vmem:[%s250 + $0x4a] sm:$0xff]
      %vm769 = vcmp.lt.s32.totalorder %v392, 7
      %vm770 = vcmp.lt.s32.totalorder %v393, 7
      %vm771 = vcmp.lt.s32.totalorder %v394, 7
      %vm772 = vcmp.lt.s32.totalorder %v395, 7
      %vm773 = vcmp.lt.s32.totalorder %v396, 7
      %vm774 = vcmp.lt.s32.totalorder %v397, 7
      %vm775 = vcmp.lt.s32.totalorder %v398, 7
      %vm776 = vcmp.lt.s32.totalorder %v399, 7
      %vm777 = vcmp.lt.s32.totalorder %v400, 7
      %vm778 = vcmp.lt.s32.totalorder %v401, 7
      %v779 = vsel %vm769, 1, 0
      %v780 = vsel %vm770, 1, 0
      %v781 = vsel %vm771, 1, 0
      %v782 = vsel %vm772, 1, 0
      %v783 = vsel %vm773, 1, 0
      %v784 = vsel %vm774, 1, 0
      %v785 = vsel %vm775, 1, 0
      %v786 = vsel %vm776, 1, 0
      %v787 = vsel %vm777, 1, 0
      %v788 = vsel %vm778, 1, 0
      %v789 = vcvt.s32.f32 %v779
      %v790 = vcvt.s32.f32 %v780
      %v791 = vcvt.s32.f32 %v781
      %v792 = vcvt.s32.f32 %v782
      %v793 = vcvt.s32.f32 %v783
      %v794 = vcvt.s32.f32 %v784
      %v795 = vcvt.s32.f32 %v785
      %v796 = vcvt.s32.f32 %v786
      %v797 = vcvt.s32.f32 %v787
      %v798 = vcvt.s32.f32 %v788
      %v799 = vmul.f32 %v759, %v789
      %v800 = vmul.f32 %v760, %v790
      %v801 = vmul.f32 %v761, %v791
      %v802 = vmul.f32 %v762, %v792
      %v803 = vmul.f32 %v763, %v793
      %v804 = vmul.f32 %v764, %v794
      %v805 = vmul.f32 %v765, %v795
      %v806 = vmul.f32 %v766, %v796
      %v807 = vmul.f32 %v767, %v797
      %v808 = vmul.f32 %v768, %v798
      %817 = vrot.lane.b32.xlu0 %v800, 12
      %v818 = vpop.permute.xlu0 %817
      %819 = vrot.lane.b32.xlu0 %v801, 12
      %v820 = vpop.permute.xlu0 %819
      %821 = vrot.lane.b32.xlu0 %v802, 12
      %v822 = vpop.permute.xlu0 %821
      %823 = vrot.lane.b32.xlu0 %v803, 12
      %v824 = vpop.permute.xlu0 %823
      %825 = vrot.lane.b32.xlu0 %v804, 12
      %v826 = vpop.permute.xlu0 %825
      %827 = vrot.lane.b32.xlu0 %v805, 12
      %v828 = vpop.permute.xlu0 %827
      %829 = vrot.lane.b32.xlu0 %v806, 12
      %v830 = vpop.permute.xlu0 %829
      %831 = vrot.lane.b32.xlu0 %v807, 12
      %v832 = vpop.permute.xlu0 %831
      %842 = vrot.lane.b32.xlu0 %v801, 24
      %v843 = vpop.permute.xlu0 %842
      %844 = vrot.lane.b32.xlu0 %v802, 24
      %v845 = vpop.permute.xlu0 %844
      %846 = vrot.lane.b32.xlu0 %v803, 24
      %v847 = vpop.permute.xlu0 %846
      %848 = vrot.lane.b32.xlu0 %v804, 24
      %v849 = vpop.permute.xlu0 %848
      %850 = vrot.lane.b32.xlu0 %v805, 24
      %v851 = vpop.permute.xlu0 %850
      %852 = vrot.lane.b32.xlu0 %v806, 24
      %v853 = vpop.permute.xlu0 %852
      %854 = vrot.lane.b32.xlu0 %v807, 24
      %v855 = vpop.permute.xlu0 %854
      %856 = vrot.lane.b32.xlu0 %v808, 24
      %v857 = vpop.permute.xlu0 %856
      %v866 = vsel %vm509, %v799, %v818
      %v867 = vsel %vm509, %v800, %v820
      %v868 = vsel %vm509, %v801, %v822
      %v869 = vsel %vm509, %v802, %v824
      %v870 = vsel %vm509, %v803, %v826
      %v871 = vsel %vm509, %v804, %v828
      %v872 = vsel %vm509, %v805, %v830
      %v873 = vsel %vm509, %v806, %v832
      %v874 = vsel %vm518, %v866, %v843
      %v875 = vsel %vm518, %v867, %v845
      %v876 = vsel %vm518, %v868, %v847
      %v877 = vsel %vm518, %v869, %v849
      %v878 = vsel %vm518, %v870, %v851
      %v879 = vsel %vm518, %v871, %v853
      %v880 = vsel %vm518, %v872, %v855
      %v881 = vsel %vm518, %v873, %v857
      %s882 = scalar_lea.vmem %s1, 80
      %v883 = vld [vmem:[%s882] sm:$0xff]
      %v884 = vld [vmem:[%s882 + $0x8] sm:$0xff]
      %v885 = vld [vmem:[%s882 + $0x10] sm:$0xff]
      %v886 = vld [vmem:[%s882 + $0x18] sm:$0xff]
      %v887 = vld [vmem:[%s882 + $0x20] sm:$0xf]
      %v889 = vsel %vm621, %v874, 0
      %v892 = vsel %vm621, %v875, 0
      %v895 = vsel %vm621, %v876, 0
      %v898 = vsel %vm621, %v877, 0
      %v901 = vsel %vm621, %v878, 0
      %v904 = vsel %vm621, %v879, 0
      %v907 = vsel %vm621, %v880, 0
      %v910 = vsel %vm621, %v881, 0
      %v913 = vsel %vm646, %v887, 0
      %915 = vmatpush.msra.mxu0 0.0
      %916 = vmatpush.msra.mxu0 0.0
      %917 = vmatpush.msra.mxu0 0.0
      %918 = vmatpush.msra.mxu0 0.0
      %919 = vmatpush.msra.mxu0 0.0
      %920 = vmatpush.msra.mxu0 0.0
      %921 = vmatpush.msra.mxu0 0.0
      %922 = vmatpush.msra.mxu0 0.0
      %923 = vmatpush.msra.mxu0 0.0
      %924 = vmatpush.msra.mxu0 0.0
      %925 = vmatpush.msra.mxu0 0.0
      %926 = vmatpush.msra.mxu0 %v913
      %927 = vmatpush.msra.mxu0 %v886
      %928 = vmatpush.msra.mxu0 %v885
      %929 = vmatpush.msra.mxu0 %v884
      %930 = vmatpush.msra.mxu0 %v883
      %931 = vmatmul.f32.gmra.mxu0 %v889
      %v932 = vpop.f32.mrf.mxu0
      %v933 = vadd.f32 0.0, %v932
      %934 = vmatmul.f32.gmra.mxu0 %v892
      %v935 = vpop.f32.mrf.mxu0
      %v936 = vadd.f32 0.0, %v935
      %937 = vmatmul.f32.gmra.mxu0 %v895
      %v938 = vpop.f32.mrf.mxu0
      %v939 = vadd.f32 0.0, %v938
      %940 = vmatmul.f32.gmra.mxu0 %v898
      %v941 = vpop.f32.mrf.mxu0
      %v942 = vadd.f32 0.0, %v941
      %943 = vmatmul.f32.gmra.mxu0 %v901
      %v944 = vpop.f32.mrf.mxu0
      %v945 = vadd.f32 0.0, %v944
      %946 = vmatmul.f32.gmra.mxu0 %v904
      %v947 = vpop.f32.mrf.mxu0
      %v948 = vadd.f32 0.0, %v947
      %949 = vmatmul.f32.gmra.mxu0 %v907
      %v950 = vpop.f32.mrf.mxu0
      %v951 = vadd.f32 0.0, %v950
      %952 = vmatmul.f32.gmra.mxu0 %v910
      %v953 = vpop.f32.mrf.mxu0
      %v954 = vadd.f32 0.0, %v953
      %955 = vdwg.mxu0
      %v956 = vadd.f32 %v736, %v933
      %v957 = vadd.f32 %v739, %v936
      %v958 = vadd.f32 %v742, %v939
      %v959 = vadd.f32 %v745, %v942
      %v960 = vadd.f32 %v748, %v945
      %v961 = vadd.f32 %v751, %v948
      %v962 = vadd.f32 %v754, %v951
      %v963 = vadd.f32 %v757, %v954
      %v964 = vld [vmem:[%s2] sm:$0x1]
      %v966 = vperm.slane %v964, 0
      %v968 = vadd.f32 %v956, %v966
      %v969 = vadd.f32 %v957, %v966
      %v970 = vadd.f32 %v958, %v966
      %v971 = vadd.f32 %v959, %v966
      %v972 = vadd.f32 %v960, %v966
      %v973 = vadd.f32 %v961, %v966
      %v974 = vadd.f32 %v962, %v966
      %v975 = vadd.f32 %v963, %v966
      %v976 = vld [vmem:[%s259] sm:$0xff]
      %v977 = vld [vmem:[%s259 + $0x8] sm:$0xff]
      %v978 = vld [vmem:[%s259 + $0x10] sm:$0xff]
      %v979 = vld [vmem:[%s259 + $0x18] sm:$0xff]
      %v980 = vld [vmem:[%s259 + $0x20] sm:$0xff]
      %v981 = vld [vmem:[%s259 + $0x28] sm:$0xff]
      %v982 = vld [vmem:[%s259 + $0x30] sm:$0xff]
      %v983 = vld [vmem:[%s259 + $0x38] sm:$0xff]
      %v984 = vadd.f32 %v968, %v976
      %v985 = vadd.f32 %v969, %v977
      %v986 = vadd.f32 %v970, %v978
      %v987 = vadd.f32 %v971, %v979
      %v988 = vadd.f32 %v972, %v980
      %v989 = vadd.f32 %v973, %v981
      %v990 = vadd.f32 %v974, %v982
      %v991 = vadd.f32 %v975, %v983
      %992 = vst.msk [vmem:[%s269] sm:$0xff] %vm509, %v984
      %993 = vst.msk [vmem:[%s269 + $0x8] sm:$0xff] %vm509, %v985
      %994 = vst.msk [vmem:[%s269 + $0x10] sm:$0xff] %vm509, %v986
      %995 = vst.msk [vmem:[%s269 + $0x18] sm:$0xff] %vm509, %v987
      %996 = vst.msk [vmem:[%s269 + $0x20] sm:$0xff] %vm509, %v988
      %997 = vst.msk [vmem:[%s269 + $0x28] sm:$0xff] %vm509, %v989
      %998 = vst.msk [vmem:[%s269 + $0x30] sm:$0xff] %vm509, %v990
      %999 = vst.msk [vmem:[%s269 + $0x38] sm:$0xff] %vm509, %v991
      %s1000 = smul.u32 8, %s20
      %p1001 = scmp.lt.s32.totalorder %s19, 1
      %s1002 = scalar_select %p1001, %s19, 1
      %p1003 = scmp.lt.s32.totalorder %s1000, 7
      %s1004 = scalar_select %p1003, %s1000, 7
      %s1005 = smul.addr %s1002, 8
      %s1006 = sadd.s32 %s1004, %s1005
      %s1007 = smul.addr %s1006, 8
      %s1008 = scalar_lea.vmem %s4, %s1007
      // Predicated region
      $region37: #{clip_image_preprocessor_forward.8} parent=35 // pred_check
        %p1009 = pneg %p145
      $region38: #{clip_image_preprocessor_forward.8} parent=35 // pred_check_branch
        %1011 = sbr.rel (%p1009) target = $region40
      $region39: #{clip_image_preprocessor_forward.8} parent=35 // pred_region
        %s1012 = smul.u32 8, %s20
      $region40: #{clip_image_preprocessor_forward.8} parent=35 // pred_fallthru
        _
    $region36: #{clip_image_preprocessor_forward.8} parent=5 // pred_fallthru
      _
    %p1013 = scmp.le.s32.totalorder 2, %s10
    // Predicated region
    $region41: #{clip_image_preprocessor_forward.8} parent=5 // pred_check
      %p1014 = pneg %p1013
    $region42: #{clip_image_preprocessor_forward.8} parent=5 // pred_check_branch
      %1016 = sbr.rel (%p1014) target = $region44
    $region43: #{clip_image_preprocessor_forward.8} parent=5 // pred_region
      %s1017 = ssub.s32 %s10, 2
      // Predicated region
      $region45: #{clip_image_preprocessor_forward.8} parent=43 // pred_check
        %p1018 = pneg %p151
      $region46: #{clip_image_preprocessor_forward.8} parent=43 // pred_check_branch
        %1020 = sbr.rel (%p1018) target = $region48
      $region47: #{clip_image_preprocessor_forward.8} parent=43 // pred_region
        %s1021 = smul.u32 8, %s22
        %p1022 = scmp.lt.s32.totalorder %s21, 1
        %s1023 = scalar_select %p1022, %s21, 1
        %p1024 = scmp.lt.s32.totalorder %s1021, 7
        %s1025 = scalar_select %p1024, %s1021, 7
        %s1026 = smul.addr %s1023, 8
        %s1027 = sadd.s32 %s1025, %s1026
        %s1028 = smul.addr %s1027, 8
        %s1029 = scalar_lea.vmem %s4, %s1028
      $region48: #{clip_image_preprocessor_forward.8} parent=43 // pred_fallthru
        _
    $region44: #{clip_image_preprocessor_forward.8} parent=5 // pred_fallthru
      _
  $region6: #{clip_image_preprocessor_forward.8} parent=0 // loop_footer
    %s14 = sadd.s32 1, %s10
  $region7: #{clip_image_preprocessor_forward.8} parent=0 // loop_footer_branch
    %9 = sbr.rel target = $region3
  $region8: #{clip_image_preprocessor_forward.8} parent=0 // loop_exit
    _

// kernel: clip_image_preprocessor_forward.9
$region0: #{clip_image_preprocessor_forward.9}
  #allocation0 [shape = 'u32[]', space=smem, size = 0x4, offset = 0x4, fixed_abs, tag = 'smem constant byte address 0x4 - core index']
  #allocation1 [shape = 'u32[72,128]{1,0:T(1,128)}', space=vmem, size = 0x9000, scoped, tag = 'internal scratch']
  #allocation2 [shape = 'f32[1]{0:T(128)S(6)}', space=smem, size = 0x200, scoped, tag = 'scoped memory for clip_image_preprocessor_forward.9']
  %s0 = inlined_call_operand.<no memory space> [shape: f32[1], index: 0, kind: input, shape index: {}]
  %s1 = inlined_call_operand.vmem [shape: f32[2,12,82], index: 1, kind: input, shape index: {}]
  %s2 = inlined_call_operand.vmem [shape: f32[9,3,12], index: 2, kind: input, shape index: {}]
  %s3 = inlined_call_operand.vmem [shape: f32[3,1], index: 3, kind: input, shape index: {}]
  %s4 = inlined_call_operand.vmem [shape: f32[2,3,64], index: 4, kind: input, shape index: {}]
  %s5 = inlined_call_operand.vmem [shape: f32[2,3,64], index: 5, kind: output, shape index: {}]
  %s6 = sld [smem:[#allocation0]]
  $region53: #{clip_image_preprocessor_forward.9} parent=0
    _
  %s8 = ssub.s32 1, %s6
  %s9 = scalar_select 0, %s8, %s6
  %10 = sst [smem:[#allocation2]] %s0
  loop: start=0, step=1, limit=4
  $region2: #{clip_image_preprocessor_forward.9} parent=0 // loop_pre_header
    _
  $region3: #{clip_image_preprocessor_forward.9} parent=0 // loop_header
    %s12 = sphi 0, %s16
    %p13 = scmp.ge.s32.totalorder %s12, 4
    %s20 = sphi 0, %s20
    %s22 = sphi 0, %s20
    %s23 = sphi 0, %s22
    %s37 = sphi 0, %s23
    %s43 = sphi 0, %s45
    %s46 = sphi 0, %s43
    %s47 = sphi 0, %s46
    %s63 = sphi 0, %s47
    %s67 = sphi 0, %s67
    %s69 = sphi 0, %s67
    %s70 = sphi 0, %s69
    %s84 = sphi 0, %s70
    %s88 = sphi 0, %s88
    %s90 = sphi 0, %s88
    %s91 = sphi 0, %s90
    %s105 = sphi 0, %s91
    %s111 = sphi 0, %s113
    %s114 = sphi 0, %s111
    %s115 = sphi 0, %s114
    %s131 = sphi 0, %s115
    %s137 = sphi 0, %s139
    %s140 = sphi 0, %s137
    %s141 = sphi 0, %s140
    %s157 = sphi 0, %s141
  $region4: #{clip_image_preprocessor_forward.9} parent=0 // loop_header_branch
    %15 = sbr.rel (%p13) target = $region8
  $region5: #{clip_image_preprocessor_forward.9} parent=0 // loop_body
    %s17 = ssub.s32 %s12, 1
    %s18 = ssub.s32 %s12, 2
    %s19 = sadd.s32 %s12, 1
    %s21 = sadd.s32 %s20, 1
    %p24 = scmp.eq.s32.totalorder %s12, 1
    %p25 = scmp.ne.s32.totalorder %s20, %s22
    %p26 = scmp.eq.s32.totalorder %s12, 0
    %p27 = por %p25, %p26
    %p28 = scmp.ne.s32.totalorder %s20, %s22
    %p29 = scmp.eq.s32.totalorder %s17, 1
    %p30 = por %p28, %p29
    %p31 = scmp.ne.s32.totalorder %s22, %s23
    %p32 = scmp.eq.s32.totalorder %s17, 0
    %p33 = por %p31, %p32
    %p34 = scmp.ne.s32.totalorder %s22, %s23
    %p35 = scmp.eq.s32.totalorder %s18, 1
    %p36 = por %p34, %p35
    %p38 = scmp.ne.s32.totalorder %s23, %s37
    %p39 = scmp.eq.s32.totalorder %s18, 0
    %p40 = por %p38, %p39
    %s41 = ssub.s32 %s12, %s19
    %p42 = scmp.eq.s32.totalorder %s41, 0
    %s44 = sadd.s32 %s43, 1
    %s45 = scalar_select %p42, %s43, %s44
    %p48 = pneg %p42
    %p49 = scmp.eq.s32.totalorder %s12, 1
    %p50 = por %p48, %p49
    %p51 = scmp.ne.s32.totalorder %s43, %s46
    %p52 = scmp.eq.s32.totalorder %s12, 0
    %p53 = por %p51, %p52
    %p54 = scmp.ne.s32.totalorder %s43, %s46
    %p55 = scmp.eq.s32.totalorder %s17, 1
    %p56 = por %p54, %p55
    %p57 = scmp.ne.s32.totalorder %s46, %s47
    %p58 = scmp.eq.s32.totalorder %s17, 0
    %p59 = por %p57, %p58
    %p60 = scmp.ne.s32.totalorder %s46, %s47
    %p61 = scmp.eq.s32.totalorder %s18, 1
    %p62 = por %p60, %p61
    %p64 = scmp.ne.s32.totalorder %s47, %s63
    %p65 = scmp.eq.s32.totalorder %s18, 0
    %p66 = por %p64, %p65
    %s68 = sadd.s32 %s67, 1
    %p71 = scmp.eq.s32.totalorder %s12, 1
    %p72 = scmp.ne.s32.totalorder %s67, %s69
    %p73 = scmp.eq.s32.totalorder %s12, 0
    %p74 = por %p72, %p73
    %p75 = scmp.ne.s32.totalorder %s67, %s69
    %p76 = scmp.eq.s32.totalorder %s17, 1
    %p77 = por %p75, %p76
    %p78 = scmp.ne.s32.totalorder %s69, %s70
    %p79 = scmp.eq.s32.totalorder %s17, 0
    %p80 = por %p78, %p79
    %p81 = scmp.ne.s32.totalorder %s69, %s70
    %p82 = scmp.eq.s32.totalorder %s18, 1
    %p83 = por %p81, %p82
    %p85 = scmp.ne.s32.totalorder %s70, %s84
    %p86 = scmp.eq.s32.totalorder %s18, 0
    %p87 = por %p85, %p86
    %s89 = sadd.s32 %s88, 1
    %p92 = scmp.eq.s32.totalorder %s12, 1
    %p93 = scmp.ne.s32.totalorder %s88, %s90
    %p94 = scmp.eq.s32.totalorder %s12, 0
    %p95 = por %p93, %p94
    %p96 = scmp.ne.s32.totalorder %s88, %s90
    %p97 = scmp.eq.s32.totalorder %s17, 1
    %p98 = por %p96, %p97
    %p99 = scmp.ne.s32.totalorder %s90, %s91
    %p100 = scmp.eq.s32.totalorder %s17, 0
    %p101 = por %p99, %p100
    %p102 = scmp.ne.s32.totalorder %s90, %s91
    %p103 = scmp.eq.s32.totalorder %s18, 1
    %p104 = por %p102, %p103
    %p106 = scmp.ne.s32.totalorder %s91, %s105
    %p107 = scmp.eq.s32.totalorder %s18, 0
    %p108 = por %p106, %p107
    %s109 = ssub.s32 %s12, %s19
    %p110 = scmp.eq.s32.totalorder %s109, 0
    %s112 = sadd.s32 %s111, 1
    %s113 = scalar_select %p110, %s111, %s112
    %p116 = pneg %p110
    %p117 = scmp.eq.s32.totalorder %s12, 1
    %p118 = por %p116, %p117
    %p119 = scmp.ne.s32.totalorder %s111, %s114
    %p120 = scmp.eq.s32.totalorder %s12, 0
    %p121 = por %p119, %p120
    %p122 = scmp.ne.s32.totalorder %s111, %s114
    %p123 = scmp.eq.s32.totalorder %s17, 1
    %p124 = por %p122, %p123
    %p125 = scmp.ne.s32.totalorder %s114, %s115
    %p126 = scmp.eq.s32.totalorder %s17, 0
    %p127 = por %p125, %p126
    %p128 = scmp.ne.s32.totalorder %s114, %s115
    %p129 = scmp.eq.s32.totalorder %s18, 1
    %p130 = por %p128, %p129
    %p132 = scmp.ne.s32.totalorder %s115, %s131
    %p133 = scmp.eq.s32.totalorder %s18, 0
    %p134 = por %p132, %p133
    %s135 = ssub.s32 %s12, %s19
    %p136 = scmp.eq.s32.totalorder %s135, 0
    %s138 = sadd.s32 %s137, 1
    %s139 = scalar_select %p136, %s137, %s138
    %p142 = pneg %p136
    %p143 = scmp.eq.s32.totalorder %s12, 1
    %p144 = por %p142, %p143
    %p145 = scmp.ne.s32.totalorder %s137, %s140
    %p146 = scmp.eq.s32.totalorder %s12, 0
    %p147 = por %p145, %p146
    %p148 = scmp.ne.s32.totalorder %s137, %s140
    %p149 = scmp.eq.s32.totalorder %s17, 1
    %p150 = por %p148, %p149
    %p151 = scmp.ne.s32.totalorder %s140, %s141
    %p152 = scmp.eq.s32.totalorder %s17, 0
    %p153 = por %p151, %p152
    %p154 = scmp.ne.s32.totalorder %s140, %s141
    %p155 = scmp.eq.s32.totalorder %s18, 1
    %p156 = por %p154, %p155
    %p158 = scmp.ne.s32.totalorder %s141, %s157
    %p159 = scmp.eq.s32.totalorder %s18, 0
    %p160 = por %p158, %p159
    %p161 = scmp.le.s32.totalorder 1, %s12
    %p162 = scmp.lt.s32.totalorder %s12, 3
    %p163 = pnand %p161, %p162
    %p164 = pneg %p163
    // Predicated region
    $region9: #{clip_image_preprocessor_forward.9} parent=5 // pred_check
      _
    $region10: #{clip_image_preprocessor_forward.9} parent=5 // pred_check_branch
      %166 = sbr.rel (%p163) target = $region12
    $region11: #{clip_image_preprocessor_forward.9} parent=5 // pred_region
      %s167 = ssub.s32 %s12, 1
      // Predicated region
      $region13: #{clip_image_preprocessor_forward.9} parent=11 // pred_check
        %p168 = pneg %p33
      $region14: #{clip_image_preprocessor_forward.9} parent=11 // pred_check_branch
        %170 = sbr.rel (%p168) target = $region16
      $region15: #{clip_image_preprocessor_forward.9} parent=11 // pred_region
        _
      $region16: #{clip_image_preprocessor_forward.9} parent=11 // pred_fallthru
        _
      // Predicated region
      $region17: #{clip_image_preprocessor_forward.9} parent=11 // pred_check
        %p171 = pneg %p80
      $region18: #{clip_image_preprocessor_forward.9} parent=11 // pred_check_branch
        %173 = sbr.rel (%p171) target = $region20
      $region19: #{clip_image_preprocessor_forward.9} parent=11 // pred_region
        _
      $region20: #{clip_image_preprocessor_forward.9} parent=11 // pred_fallthru
        _
      // Predicated region
      $region21: #{clip_image_preprocessor_forward.9} parent=11 // pred_check
        %p174 = pneg %p101
      $region22: #{clip_image_preprocessor_forward.9} parent=11 // pred_check_branch
        %176 = sbr.rel (%p174) target = $region24
      $region23: #{clip_image_preprocessor_forward.9} parent=11 // pred_region
        _
      $region24: #{clip_image_preprocessor_forward.9} parent=11 // pred_fallthru
        _
    $region12: #{clip_image_preprocessor_forward.9} parent=5 // pred_fallthru
      _
    %p177 = scmp.lt.s32.totalorder %s12, 2
    // Predicated region
    $region25: #{clip_image_preprocessor_forward.9} parent=5 // pred_check
      %p178 = pneg %p177
    $region26: #{clip_image_preprocessor_forward.9} parent=5 // pred_check_branch
      %180 = sbr.rel (%p178) target = $region28
    $region27: #{clip_image_preprocessor_forward.9} parent=5 // pred_region
      // Predicated region
      $region29: #{clip_image_preprocessor_forward.9} parent=27 // pred_check
        %p181 = pneg %p53
      $region30: #{clip_image_preprocessor_forward.9} parent=27 // pred_check_branch
        %183 = sbr.rel (%p181) target = $region32
      $region31: #{clip_image_preprocessor_forward.9} parent=27 // pred_region
        %p184 = scmp.lt.s32.totalorder %s12, 1
        %s185 = scalar_select %p184, %s12, 1
        %s186 = smul.addr %s185, 2
        %s187 = smul.addr %s186, 8
        %s188 = scalar_lea.vmem %s1, %s187
      $region32: #{clip_image_preprocessor_forward.9} parent=27 // pred_fallthru
        _
      // Predicated region
      $region33: #{clip_image_preprocessor_forward.9} parent=27 // pred_check
        %p189 = pneg %p121
      $region34: #{clip_image_preprocessor_forward.9} parent=27 // pred_check_branch
        %191 = sbr.rel (%p189) target = $region36
      $region35: #{clip_image_preprocessor_forward.9} parent=27 // pred_region
        %p192 = scmp.lt.s32.totalorder %s12, 1
        %s193 = scalar_select %p192, %s12, 1
        %s194 = smul.addr %s193, 4
        %s195 = scalar_lea.vmem %s4, %s194
      $region36: #{clip_image_preprocessor_forward.9} parent=27 // pred_fallthru
        _
    $region28: #{clip_image_preprocessor_forward.9} parent=5 // pred_fallthru
      _
    %p196 = scmp.le.s32.totalorder 1, %s12
    %p197 = scmp.lt.s32.totalorder %s12, 3
    %p198 = pnand %p196, %p197
    %p199 = pneg %p198
    // Predicated region
    $region37: #{clip_image_preprocessor_forward.9} parent=5 // pred_check
      _
    $region38: #{clip_image_preprocessor_forward.9} parent=5 // pred_check_branch
      %201 = sbr.rel (%p198) target = $region40
    $region39: #{clip_image_preprocessor_forward.9} parent=5 // pred_region
      %s202 = ssub.s32 %s12, 1
      %p203 = pneg %p33
      %p204 = pneg %p30
      %p205 = scmp.lt.s32.totalorder %s17, 1
      %s206 = scalar_select %p205, %s17, 1
      %s207 = smul.addr %s206, 2
      %s208 = smul.addr %s207, 8
      %s209 = scalar_lea.vmem %s1, %s208
      %p210 = pneg %p59
      %p211 = pneg %p56
      %p212 = pneg %p80
      %p213 = pneg %p77
      %p214 = pneg %p101
      %p215 = pneg %p98
      %p216 = scmp.lt.s32.totalorder %s17, 1
      %s217 = scalar_select %p216, %s17, 1
      %s218 = smul.addr %s217, 4
      %s219 = scalar_lea.vmem %s4, %s218
      %p220 = pneg %p127
      %p221 = pneg %p124
      %p222 = pneg %p153
      %p223 = pneg %p150
      %p224 = scmp.lt.s32.totalorder %s17, 1
      %s225 = scalar_select %p224, %s17, 1
      %s226 = smul.addr %s225, 4
      %s227 = scalar_lea.vmem %s5, %s226
      %p228 = scmp.lt.s32.totalorder %s17, 1
      %s229 = scalar_select %p228, %s17, 1
      %s230 = smul.addr %s229, 2
      %s231 = smul.addr %s230, 8
      %s232 = scalar_lea.vmem %s1, %s231
      %p233 = scmp.lt.s32.totalorder %s17, 1
      %s234 = scalar_select %p233, %s17, 1
      %s235 = smul.addr %s234, 4
      %s236 = scalar_lea.vmem %s4, %s235
      %p237 = scmp.lt.s32.totalorder %s17, 1
      %s238 = scalar_select %p237, %s17, 1
      %s239 = smul.addr %s238, 4
      %s240 = scalar_lea.vmem %s5, %s239
      %v241 = vld [vmem:[%s232] sm:$0xff]
      %v242 = vld [vmem:[%s232 + $0x8] sm:$0xf]
      %v243 = vld [vmem:[%s2] sm:$0x7]
      %s244 = scalar_lea.vmem %s2, 4
      %v245 = vld [vmem:[%s244] sm:$0x7]
      %s246 = scalar_lea.vmem %s2, 8
      %v247 = vld [vmem:[%s246] sm:$0x7]
      %s248 = scalar_lea.vmem %s2, 12
      %v249 = vld [vmem:[%s248] sm:$0x7]
      %252 = vrot.lane.b32.xlu0 %v241, 120
      %v253 = vpop.permute.xlu0 %252
      %254 = vrot.lane.b32.xlu0 %v242, 120
      %v255 = vpop.permute.xlu0 %254
      %vm257 = vcmask 97280
      %v259 = vsel %vm257, %v249, 0
      %vm261 = vcmask 1043456
      %v262 = vsel %vm261, %v255, 0
      %264 = vmatpush.msra.mxu0 0.0
      %265 = vmatpush.msra.mxu0 0.0
      %266 = vmatpush.msra.mxu0 0.0
      %267 = vmatpush.msra.mxu0 0.0
      %268 = vmatpush.msra.mxu0 0.0
      %269 = vmatpush.msra.mxu0 0.0
      %270 = vmatpush.msra.mxu0 0.0
      %271 = vmatpush.msra.mxu0 0.0
      %272 = vmatpush.msra.mxu0 0.0
      %273 = vmatpush.msra.mxu0 0.0
      %274 = vmatpush.msra.mxu0 0.0
      %275 = vmatpush.msra.mxu0 0.0
      %276 = vmatpush.msra.mxu0 0.0
      %277 = vmatpush.msra.mxu0 0.0
      %278 = vmatpush.msra.mxu0 %v262
      %279 = vmatpush.msra.mxu0 %v253
      %280 = vmatmul.f32.gmra.mxu0 %v259
      %v281 = vpop.f32.mrf.mxu0
      %v282 = vadd.f32 0.0, %v281
      %283 = vdwg.mxu0
      %v285 = vsel %vm257, %v243, 0
      %v287 = vsel %vm261, %v242, 0
      %289 = vmatpush.msra.mxu0 0.0
      %290 = vmatpush.msra.mxu0 0.0
      %291 = vmatpush.msra.mxu0 0.0
      %292 = vmatpush.msra.mxu0 0.0
      %293 = vmatpush.msra.mxu0 0.0
      %294 = vmatpush.msra.mxu0 0.0
      %295 = vmatpush.msra.mxu0 0.0
      %296 = vmatpush.msra.mxu0 0.0
      %297 = vmatpush.msra.mxu0 0.0
      %298 = vmatpush.msra.mxu0 0.0
      %299 = vmatpush.msra.mxu0 0.0
      %300 = vmatpush.msra.mxu0 0.0
      %301 = vmatpush.msra.mxu0 0.0
      %302 = vmatpush.msra.mxu0 0.0
      %303 = vmatpush.msra.mxu0 %v287
      %304 = vmatpush.msra.mxu0 %v241
      %305 = vmatmul.f32.gmra.mxu0 %v285
      %v306 = vpop.f32.mrf.mxu0
      %v307 = vadd.f32 %v282, %v306
      %308 = vdwg.mxu0
      %s309 = scalar_lea.vmem %s2, 16
      %v310 = vld [vmem:[%s309] sm:$0x7]
      %311 = vrot.lane.b32.xlu0 %v241, 119
      %v312 = vpop.permute.xlu0 %311
      %313 = vrot.lane.b32.xlu0 %v242, 119
      %v314 = vpop.permute.xlu0 %313
      %v317 = vsel %vm257, %v310, 0
      %v319 = vsel %vm261, %v314, 0
      %321 = vmatpush.msra.mxu0 0.0
      %322 = vmatpush.msra.mxu0 0.0
      %323 = vmatpush.msra.mxu0 0.0
      %324 = vmatpush.msra.mxu0 0.0
      %325 = vmatpush.msra.mxu0 0.0
      %326 = vmatpush.msra.mxu0 0.0
      %327 = vmatpush.msra.mxu0 0.0
      %328 = vmatpush.msra.mxu0 0.0
      %329 = vmatpush.msra.mxu0 0.0
      %330 = vmatpush.msra.mxu0 0.0
      %331 = vmatpush.msra.mxu0 0.0
      %332 = vmatpush.msra.mxu0 0.0
      %333 = vmatpush.msra.mxu0 0.0
      %334 = vmatpush.msra.mxu0 0.0
      %335 = vmatpush.msra.mxu0 %v319
      %336 = vmatpush.msra.mxu0 %v312
      %337 = vmatmul.f32.gmra.mxu0 %v317
      %v338 = vpop.f32.mrf.mxu0
      %v339 = vadd.f32 0.0, %v338
      %340 = vdwg.mxu0
      %341 = vrot.lane.b32.xlu0 %v241, 127
      %v342 = vpop.permute.xlu0 %341
      %343 = vrot.lane.b32.xlu0 %v242, 127
      %v344 = vpop.permute.xlu0 %343
      %v347 = vsel %vm257, %v245, 0
      %v349 = vsel %vm261, %v344, 0
      %351 = vmatpush.msra.mxu0 0.0
      %352 = vmatpush.msra.mxu0 0.0
      %353 = vmatpush.msra.mxu0 0.0
      %354 = vmatpush.msra.mxu0 0.0
      %355 = vmatpush.msra.mxu0 0.0
      %356 = vmatpush.msra.mxu0 0.0
      %357 = vmatpush.msra.mxu0 0.0
      %358 = vmatpush.msra.mxu0 0.0
      %359 = vmatpush.msra.mxu0 0.0
      %360 = vmatpush.msra.mxu0 0.0
      %361 = vmatpush.msra.mxu0 0.0
      %362 = vmatpush.msra.mxu0 0.0
      %363 = vmatpush.msra.mxu0 0.0
      %364 = vmatpush.msra.mxu0 0.0
      %365 = vmatpush.msra.mxu0 %v349
      %366 = vmatpush.msra.mxu0 %v342
      %367 = vmatmul.f32.gmra.mxu0 %v347
      %v368 = vpop.f32.mrf.mxu0
      %v369 = vadd.f32 %v339, %v368
      %370 = vdwg.mxu0
      %s371 = scalar_lea.vmem %s2, 20
      %v372 = vld [vmem:[%s371] sm:$0x7]
      %373 = vrot.lane.b32.xlu0 %v241, 118
      %v374 = vpop.permute.xlu0 %373
      %375 = vrot.lane.b32.xlu0 %v242, 118
      %v376 = vpop.permute.xlu0 %375
      %v379 = vsel %vm257, %v372, 0
      %v381 = vsel %vm261, %v376, 0
      %383 = vmatpush.msra.mxu0 0.0
      %384 = vmatpush.msra.mxu0 0.0
      %385 = vmatpush.msra.mxu0 0.0
      %386 = vmatpush.msra.mxu0 0.0
      %387 = vmatpush.msra.mxu0 0.0
      %388 = vmatpush.msra.mxu0 0.0
      %389 = vmatpush.msra.mxu0 0.0
      %390 = vmatpush.msra.mxu0 0.0
      %391 = vmatpush.msra.mxu0 0.0
      %392 = vmatpush.msra.mxu0 0.0
      %393 = vmatpush.msra.mxu0 0.0
      %394 = vmatpush.msra.mxu0 0.0
      %395 = vmatpush.msra.mxu0 0.0
      %396 = vmatpush.msra.mxu0 0.0
      %397 = vmatpush.msra.mxu0 %v381
      %398 = vmatpush.msra.mxu0 %v374
      %399 = vmatmul.f32.gmra.mxu0 %v379
      %v400 = vpop.f32.mrf.mxu0
      %v401 = vadd.f32 0.0, %v400
      %402 = vdwg.mxu0
      %403 = vrot.lane.b32.xlu0 %v241, 126
      %v404 = vpop.permute.xlu0 %403
      %405 = vrot.lane.b32.xlu0 %v242, 126
      %v406 = vpop.permute.xlu0 %405
      %v409 = vsel %vm257, %v247, 0
      %v411 = vsel %vm261, %v406, 0
      %413 = vmatpush.msra.mxu0 0.0
      %414 = vmatpush.msra.mxu0 0.0
      %415 = vmatpush.msra.mxu0 0.0
      %416 = vmatpush.msra.mxu0 0.0
      %417 = vmatpush.msra.mxu0 0.0
      %418 = vmatpush.msra.mxu0 0.0
      %419 = vmatpush.msra.mxu0 0.0
      %420 = vmatpush.msra.mxu0 0.0
      %421 = vmatpush.msra.mxu0 0.0
      %422 = vmatpush.msra.mxu0 0.0
      %423 = vmatpush.msra.mxu0 0.0
      %424 = vmatpush.msra.mxu0 0.0
      %425 = vmatpush.msra.mxu0 0.0
      %426 = vmatpush.msra.mxu0 0.0
      %427 = vmatpush.msra.mxu0 %v411
      %428 = vmatpush.msra.mxu0 %v404
      %429 = vmatmul.f32.gmra.mxu0 %v409
      %v430 = vpop.f32.mrf.mxu0
      %v431 = vadd.f32 %v401, %v430
      %432 = vdwg.mxu0
      %s433 = scalar_lea.vmem %s2, 24
      %v434 = vld [vmem:[%s433] sm:$0x7]
      %435 = vrot.lane.b32.xlu0 %v241, 112
      %v436 = vpop.permute.xlu0 %435
      %437 = vrot.lane.b32.xlu0 %v242, 112
      %v438 = vpop.permute.xlu0 %437
      %v441 = vsel %vm257, %v434, 0
      %v443 = vsel %vm261, %v438, 0
      %445 = vmatpush.msra.mxu0 0.0
      %446 = vmatpush.msra.mxu0 0.0
      %447 = vmatpush.msra.mxu0 0.0
      %448 = vmatpush.msra.mxu0 0.0
      %449 = vmatpush.msra.mxu0 0.0
      %450 = vmatpush.msra.mxu0 0.0
      %451 = vmatpush.msra.mxu0 0.0
      %452 = vmatpush.msra.mxu0 0.0
      %453 = vmatpush.msra.mxu0 0.0
      %454 = vmatpush.msra.mxu0 0.0
      %455 = vmatpush.msra.mxu0 0.0
      %456 = vmatpush.msra.mxu0 0.0
      %457 = vmatpush.msra.mxu0 0.0
      %458 = vmatpush.msra.mxu0 0.0
      %459 = vmatpush.msra.mxu0 %v443
      %460 = vmatpush.msra.mxu0 %v436
      %461 = vmatmul.f32.gmra.mxu0 %v441
      %v462 = vpop.f32.mrf.mxu0
      %v463 = vadd.f32 0.0, %v462
      %464 = vdwg.mxu0
      %v465 = vadd.f32 %v307, %v463
      %s466 = scalar_lea.vmem %s2, 28
      %v467 = vld [vmem:[%s466] sm:$0x7]
      %468 = vrot.lane.b32.xlu0 %v241, 111
      %v469 = vpop.permute.xlu0 %468
      %470 = vrot.lane.b32.xlu0 %v242, 111
      %v471 = vpop.permute.xlu0 %470
      %v474 = vsel %vm257, %v467, 0
      %v476 = vsel %vm261, %v471, 0
      %478 = vmatpush.msra.mxu0 0.0
      %479 = vmatpush.msra.mxu0 0.0
      %480 = vmatpush.msra.mxu0 0.0
      %481 = vmatpush.msra.mxu0 0.0
      %482 = vmatpush.msra.mxu0 0.0
      %483 = vmatpush.msra.mxu0 0.0
      %484 = vmatpush.msra.mxu0 0.0
      %485 = vmatpush.msra.mxu0 0.0
      %486 = vmatpush.msra.mxu0 0.0
      %487 = vmatpush.msra.mxu0 0.0
      %488 = vmatpush.msra.mxu0 0.0
      %489 = vmatpush.msra.mxu0 0.0
      %490 = vmatpush.msra.mxu0 0.0
      %491 = vmatpush.msra.mxu0 0.0
      %492 = vmatpush.msra.mxu0 %v476
      %493 = vmatpush.msra.mxu0 %v469
      %494 = vmatmul.f32.gmra.mxu0 %v474
      %v495 = vpop.f32.mrf.mxu0
      %v496 = vadd.f32 0.0, %v495
      %497 = vdwg.mxu0
      %v498 = vadd.f32 %v369, %v496
      %s499 = scalar_lea.vmem %s2, 32
      %v500 = vld [vmem:[%s499] sm:$0x7]
      %501 = vrot.lane.b32.xlu0 %v241, 110
      %v502 = vpop.permute.xlu0 %501
      %503 = vrot.lane.b32.xlu0 %v242, 110
      %v504 = vpop.permute.xlu0 %503
      %v507 = vsel %vm257, %v500, 0
      %v509 = vsel %vm261, %v504, 0
      %511 = vmatpush.msra.mxu0 0.0
      %512 = vmatpush.msra.mxu0 0.0
      %513 = vmatpush.msra.mxu0 0.0
      %514 = vmatpush.msra.mxu0 0.0
      %515 = vmatpush.msra.mxu0 0.0
      %516 = vmatpush.msra.mxu0 0.0
      %517 = vmatpush.msra.mxu0 0.0
      %518 = vmatpush.msra.mxu0 0.0
      %519 = vmatpush.msra.mxu0 0.0
      %520 = vmatpush.msra.mxu0 0.0
      %521 = vmatpush.msra.mxu0 0.0
      %522 = vmatpush.msra.mxu0 0.0
      %523 = vmatpush.msra.mxu0 0.0
      %524 = vmatpush.msra.mxu0 0.0
      %525 = vmatpush.msra.mxu0 %v509
      %526 = vmatpush.msra.mxu0 %v502
      %527 = vmatmul.f32.gmra.mxu0 %v507
      %v528 = vpop.f32.mrf.mxu0
      %v529 = vadd.f32 0.0, %v528
      %530 = vdwg.mxu0
      %v531 = vadd.f32 %v431, %v529
      %v532 = vlaneseq
      %v533 = vand.u32 %v532, 127
      %vm534 = vcmp.lt.s32.totalorder %v533, 0
      %v535 = vsub.s32 0, %v533
      %v536 = vsel %vm534, %v535, %v533
      %v537 = vshrl.u32 %v536, 3
      %v538 = vand.u32 %v536, 7
      %v539 = vsub.s32 0, %v538
      %v540 = vsel %vm534, %v539, %v538
      %vm541 = vcmp.ne.s32.totalorder %v540, 0
      %vm542 = vcmp.lt.s32.totalorder %v540, 0
      %vm543 = vmand %vm542, %vm541
      %v544 = vadd.s32 %v540, 8
      %v545 = vsel %vm543, %v544, %v540
      %vm546 = vcmp.gt.s32.totalorder %v545, 0
      %v547 = vsel %vm546, 1, 0
      %v548 = vcvt.s32.f32 %v547
      %vm549 = vcmp.lt.s32.totalorder %v545, 7
      %v550 = vsel %vm549, 1, 0
      %v551 = vcvt.s32.f32 %v550
      %v552 = vmul.f32 %v465, %v548
      %v553 = vadd.f32 %v498, %v552
      %v554 = vmul.f32 %v531, %v551
      %v555 = vadd.f32 %v553, %v554
      %v556 = vld [vmem:[%s3] sm:$0x7]
      %558 = vset.pattern.permute.xlu0 0
      %559 = vperm.xlu0 %558, %v556
      %v560 = vpop.permute.xlu0 %559
      %v562 = vadd.f32 %v555, %v560
      %s563 = sld [smem:[#allocation2]]
      %v564 = vstv %s563
      %v565 = vmul.f32 %v562, %v564
      %v566 = vld [vmem:[%s236] sm:$0x7]
      %v567 = vadd.f32 %v565, %v566
      %vm568 = vcmask 518144
      %569 = vst.msk [vmem:[%s240] sm:$0x7] %vm568, %v567
      %p570 = scmp.lt.s32.totalorder %s17, 1
      %s571 = scalar_select %p570, %s17, 1
      %s572 = smul.addr %s571, 4
      %s573 = scalar_lea.vmem %s5, %s572
      // Predicated region
      $region41: #{clip_image_preprocessor_forward.9} parent=39 // pred_check
        %p574 = pneg %p150
      $region42: #{clip_image_preprocessor_forward.9} parent=39 // pred_check_branch
        %576 = sbr.rel (%p574) target = $region44
      $region43: #{clip_image_preprocessor_forward.9} parent=39 // pred_region
        _
      $region44: #{clip_image_preprocessor_forward.9} parent=39 // pred_fallthru
        _
    $region40: #{clip_image_preprocessor_forward.9} parent=5 // pred_fallthru
      _
    %p577 = scmp.le.s32.totalorder 2, %s12
    // Predicated region
    $region45: #{clip_image_preprocessor_forward.9} parent=5 // pred_check
      %p578 = pneg %p577
    $region46: #{clip_image_preprocessor_forward.9} parent=5 // pred_check_branch
      %580 = sbr.rel (%p578) target = $region48
    $region47: #{clip_image_preprocessor_forward.9} parent=5 // pred_region
      %s581 = ssub.s32 %s12, 2
      // Predicated region
      $region49: #{clip_image_preprocessor_forward.9} parent=47 // pred_check
        %p582 = pneg %p156
      $region50: #{clip_image_preprocessor_forward.9} parent=47 // pred_check_branch
        %584 = sbr.rel (%p582) target = $region52
      $region51: #{clip_image_preprocessor_forward.9} parent=47 // pred_region
        %p585 = scmp.lt.s32.totalorder %s18, 1
        %s586 = scalar_select %p585, %s18, 1
        %s587 = smul.addr %s586, 4
        %s588 = scalar_lea.vmem %s5, %s587
      $region52: #{clip_image_preprocessor_forward.9} parent=47 // pred_fallthru
        _
    $region48: #{clip_image_preprocessor_forward.9} parent=5 // pred_fallthru
      _
  $region6: #{clip_image_preprocessor_forward.9} parent=0 // loop_footer
    %s16 = sadd.s32 1, %s12
  $region7: #{clip_image_preprocessor_forward.9} parent=0 // loop_footer_branch
    %11 = sbr.rel target = $region3
  $region8: #{clip_image_preprocessor_forward.9} parent=0 // loop_exit
    _

</llo_original>
